<compile_context>
chip_gen: v6e
topology: v6e:2x2x1
jax: 0.10.0
libtpu: 0.0.40
codegen_flags: <defaults>
</compile_context>

<pallas_src>
import jax
import jax.numpy as jnp
from jax.experimental import pallas as pl
from jax.experimental.pallas import tpu as pltpu

# ----------------------------- config ---------------------------------------
B = 2               # batch
T = 4               # sequence length
C, IMG_H, IMG_W = 3, 16, 16
CHW = C * IMG_H * IMG_W            # 768
STATE_DIM = 9
ACTION_DIM = 7
HIDDEN_DIM = 128    # module default; keeps gate slices 128-lane aligned
IMG_FEAT_DIM = 128  # stand-in for resnet18's 512
T5_DIM = 128        # stand-in for 768


# --------------------------- fused Pallas kernel -----------------------------
def _discriminator_kernel(img_ref, state_ref, act_ref, lang_ref,
                          w_img_ref, b_img_ref,
                          wih0_s_ref, wih0_i_ref, wih0_l_ref, whh0_ref, b0_ref,
                          wih1_ref, whh1_ref, b1_ref,
                          w1h_ref, w1a_ref, fb1_ref, w2_ref, fb2_ref,
                          out_ref):
    """Single invocation over the full (small) batch.

    img:   [T*B, C*H*W]  (time-major)    state: [T*B, S]  (time-major)
    act:   [B, A]                        lang:  [B, T5]
    out:   [B, 2]   (logits || sigmoid(logits))
    """
    Hk = whh0_ref.shape[0]
    Bk = act_ref.shape[0]
    Tk = state_ref.shape[0] // Bk

    # --- image features (linear proxy for the ResNet18 backbone) ------------
    # TODO(synk): pretrained ResNet18 conv backbone not reproduced; linear proxy.
    img_feat = (jnp.dot(img_ref[...], w_img_ref[...],
                        preferred_element_type=jnp.float32)
                + b_img_ref[...])                       # [T*B, F]

    # --- LSTM layer-0 input projection, hoisted out of the time loop --------
    # g0_base[t*B + b] = state@W_s + img_feat@W_i + b0   (one matmul per slice)
    g0_base = (jnp.dot(state_ref[...], wih0_s_ref[...],
                       preferred_element_type=jnp.float32)
               + jnp.dot(img_feat, wih0_i_ref[...],
                         preferred_element_type=jnp.float32)
               + b0_ref[...])                           # [T*B, 4H]
    # language term is time-invariant: computed once, broadcast over T
    g0_lang = jnp.dot(lang_ref[...], wih0_l_ref[...],
                      preferred_element_type=jnp.float32)   # [B, 4H]

    whh0 = whh0_ref[...]
    wih1 = wih1_ref[...]
    whh1 = whh1_ref[...]
    b1 = b1_ref[...]

    def gates(g):
        # PyTorch gate order (i, f, g, o); each slice is a full 128-lane slab.
        i = jax.nn.sigmoid(g[:, 0 * Hk:1 * Hk])
        f = jax.nn.sigmoid(g[:, 1 * Hk:2 * Hk])
        gg = jnp.tanh(g[:, 2 * Hk:3 * Hk])
        o = jax.nn.sigmoid(g[:, 3 * Hk:4 * Hk])
        return i, f, gg, o

    h0 = jnp.zeros((Bk, Hk), jnp.float32)
    c0 = jnp.zeros((Bk, Hk), jnp.float32)
    h1 = jnp.zeros((Bk, Hk), jnp.float32)
    c1 = jnp.zeros((Bk, Hk), jnp.float32)

    # TODO(synk): switch to lax.fori_loop(..., unroll=True) if T grows beyond a
    # handful of steps; static unroll is fine at T=4.
    for t in range(Tk):
        g0 = (g0_base[t * Bk:(t + 1) * Bk, :] + g0_lang
              + jnp.dot(h0, whh0, preferred_element_type=jnp.float32))
        i0, f0, gg0, o0 = gates(g0)
        c0 = f0 * c0 + i0 * gg0
        h0 = o0 * jnp.tanh(c0)

        g1 = (jnp.dot(h0, wih1, preferred_element_type=jnp.float32)
              + jnp.dot(h1, whh1, preferred_element_type=jnp.float32)
              + b1)
        i1, f1, gg1, o1 = gates(g1)
        c1 = f1 * c1 + i1 * gg1
        h1 = o1 * jnp.tanh(c1)

    # --- action_fc head (weights pre-split, no concat of [h_last, action]) --
    hid = jnp.maximum(
        jnp.dot(h1, w1h_ref[...], preferred_element_type=jnp.float32)
        + jnp.dot(act_ref[...], w1a_ref[...], preferred_element_type=jnp.float32)
        + fb1_ref[...], 0.0)                            # [B, H]
    logit = (jnp.dot(hid, w2_ref[...], preferred_element_type=jnp.float32)
             + fb2_ref[...])                            # [B, 1]
    out_ref[...] = jnp.concatenate([logit, jax.nn.sigmoid(logit)], axis=-1)


# ------------------------------ wrapper ---------------------------------------
def discriminator_forward(params, image_seq, state_seq, action, lang_feat):
    """image_seq [B,T,C,H,W]  state_seq [B,T,S]  action [B,A]  lang_feat [B,T5]."""
    Bk, Tk = image_seq.shape[0], image_seq.shape[1]

    # time-major flattening: row (t*B + b) holds time step t of batch element b,
    # so each LSTM step is a contiguous static row slice inside the kernel.
    img2d = jnp.transpose(image_seq.reshape(Bk, Tk, -1).astype(jnp.float32),
                          (1, 0, 2)).reshape(Tk * Bk, -1)
    st2d = jnp.transpose(state_seq.astype(jnp.float32),
                         (1, 0, 2)).reshape(Tk * Bk, -1)
    act2d = action.astype(jnp.float32)
    lang2d = lang_feat.astype(jnp.float32)

    def full(arr):
        # full-array block every grid step (block == array dims -> always legal)
        return pl.BlockSpec(arr.shape, lambda i, _n=arr.ndim: (0,) * _n)

    args = (img2d, st2d, act2d, lang2d,
            params["w_img"], params["b_img"],
            params["wih0_s"], params["wih0_i"], params["wih0_l"],
            params["whh0"], params["b0"],
            params["wih1"], params["whh1"], params["b1"],
            params["fc_w1h"], params["fc_w1a"], params["fc_b1"],
            params["fc_w2"], params["fc_b2"])

    out = pl.pallas_call(
        _discriminator_kernel,
        out_shape=jax.ShapeDtypeStruct((Bk, 2), jnp.float32),
        grid=(1,),
        in_specs=[full(a) for a in args],
        out_specs=pl.BlockSpec((Bk, 2), lambda i: (0, 0)),
        compiler_params=pltpu.CompilerParams(
            dimension_semantics=("arbitrary",)),
    )(*args)

    return out[:, 0:1], out[:, 1:2]


# ------------------------- parameter construction ----------------------------
def init_params(key):
    ks = jax.random.split(key, 15)
    s = 0.05
    H4 = 4 * HIDDEN_DIM
    p = {}
    # image feature proxy (stand-in for resnet18 backbone)
    p["w_img"] = s * jax.random.normal(ks[0], (CHW, IMG_FEAT_DIM), jnp.float32)
    p["b_img"] = s * jax.random.normal(ks[1], (1, IMG_FEAT_DIM), jnp.float32)
    # LSTM layer 0, W_ih split into row blocks [state | image | lang]
    p["wih0_s"] = s * jax.random.normal(ks[2], (STATE_DIM, H4), jnp.float32)
    p["wih0_i"] = s * jax.random.normal(ks[3], (IMG_FEAT_DIM, H4), jnp.float32)
    p["wih0_l"] = s * jax.random.normal(ks[4], (T5_DIM, H4), jnp.float32)
    p["whh0"] = s * jax.random.normal(ks[5], (HIDDEN_DIM, H4), jnp.float32)
    p["b0"] = s * jax.random.normal(ks[6], (1, H4), jnp.float32)       # b_ih + b_hh pre-summed
    # LSTM layer 1
    p["wih1"] = s * jax.random.normal(ks[7], (HIDDEN_DIM, H4), jnp.float32)
    p["whh1"] = s * jax.random.normal(ks[8], (HIDDEN_DIM, H4), jnp.float32)
    p["b1"] = s * jax.random.normal(ks[9], (1, H4), jnp.float32)
    # action_fc, first linear split into row blocks [hidden | action]
    p["fc_w1h"] = s * jax.random.normal(ks[10], (HIDDEN_DIM, HIDDEN_DIM), jnp.float32)
    p["fc_w1a"] = s * jax.random.normal(ks[11], (ACTION_DIM, HIDDEN_DIM), jnp.float32)
    p["fc_b1"] = s * jax.random.normal(ks[12], (1, HIDDEN_DIM), jnp.float32)
    p["fc_w2"] = s * jax.random.normal(ks[13], (HIDDEN_DIM, 1), jnp.float32)
    p["fc_b2"] = s * jax.random.normal(ks[14], (1, 1), jnp.float32)
    return p


# --------------------------- pure-JAX reference -------------------------------
def reference_forward(params, image_seq, state_seq, action, lang_feat):
    # Mirrors the original PyTorch module structure (stack / repeat / concat).
    Bk, Tk = image_seq.shape[0], image_seq.shape[1]
    x_flat = image_seq.reshape(Bk * Tk, -1).astype(jnp.float32)
    img_feat = (x_flat @ params["w_img"] + params["b_img"]).reshape(Bk, Tk, IMG_FEAT_DIM)
    lang_rep = jnp.repeat(lang_feat[:, None, :], Tk, axis=1)
    x = jnp.concatenate([state_seq, img_feat, lang_rep], axis=-1)
    wih0 = jnp.concatenate([params["wih0_s"], params["wih0_i"], params["wih0_l"]], axis=0)
    Hk = HIDDEN_DIM

    def cell(x_t, h, c, wih, whh, b):
        g = x_t @ wih + h @ whh + b
        i = jax.nn.sigmoid(g[:, :Hk]); f = jax.nn.sigmoid(g[:, Hk:2 * Hk])
        gg = jnp.tanh(g[:, 2 * Hk:3 * Hk]); o = jax.nn.sigmoid(g[:, 3 * Hk:])
        c = f * c + i * gg
        return o * jnp.tanh(c), c

    h0 = c0 = h1 = c1 = jnp.zeros((Bk, Hk), jnp.float32)
    for t in range(Tk):
        h0, c0 = cell(x[:, t, :], h0, c0, wih0, params["whh0"], params["b0"])
        h1, c1 = cell(h0, h1, c1, params["wih1"], params["whh1"], params["b1"])

    fc_w1 = jnp.concatenate([params["fc_w1h"], params["fc_w1a"]], axis=0)
    feat = jnp.concatenate([h1, action], axis=-1)
    hid = jnp.maximum(feat @ fc_w1 + params["fc_b1"], 0.0)
    logits = hid @ params["fc_w2"] + params["fc_b2"]
    return logits, jax.nn.sigmoid(logits)


# ------------------------------- main -----------------------------------------
if __name__ == "__main__":
    key = jax.random.PRNGKey(0)
    k_p, k_img, k_st, k_act, k_lang = jax.random.split(key, 5)

    params = init_params(k_p)
    image_seq = jax.random.normal(k_img, (B, T, C, IMG_H, IMG_W), jnp.float32)
    state_seq = jax.random.normal(k_st, (B, T, STATE_DIM), jnp.float32)
    action = jax.random.normal(k_act, (B, ACTION_DIM), jnp.float32)
    # TODO(synk): T5Encoder.embed_text (tokenizer + transformer) not translatable;
    # language features are supplied pre-embedded.
    lang_feat = jax.random.normal(k_lang, (B, T5_DIM), jnp.float32)

    logits, classes = discriminator_forward(params, image_seq, state_seq, action, lang_feat)
    logits = jax.block_until_ready(logits)
    classes = jax.block_until_ready(classes)

    ref_logits, ref_classes = reference_forward(params, image_seq, state_seq, action, lang_feat)
    assert logits.shape == (B, 1) and classes.shape == (B, 1)
    assert jnp.allclose(logits, ref_logits, rtol=2e-3, atol=2e-3)
    assert jnp.allclose(classes, ref_classes, rtol=2e-3, atol=2e-3)

    print("KERNEL_OK")
</pallas_src>

<mosaic_0001>
module attributes {stable_mosaic.version = 11 : i64} {
  func.func @_discriminator_kernel(%arg0: i32, %arg1: memref<8x768xf32, #tpu.memory_space<vmem>>, %arg2: memref<8x9xf32, #tpu.memory_space<vmem>>, %arg3: memref<2x7xf32, #tpu.memory_space<vmem>>, %arg4: memref<2x128xf32, #tpu.memory_space<vmem>>, %arg5: memref<768x128xf32, #tpu.memory_space<vmem>>, %arg6: memref<1x128xf32, #tpu.memory_space<vmem>>, %arg7: memref<9x512xf32, #tpu.memory_space<vmem>>, %arg8: memref<128x512xf32, #tpu.memory_space<vmem>>, %arg9: memref<128x512xf32, #tpu.memory_space<vmem>>, %arg10: memref<128x512xf32, #tpu.memory_space<vmem>>, %arg11: memref<1x512xf32, #tpu.memory_space<vmem>>, %arg12: memref<128x512xf32, #tpu.memory_space<vmem>>, %arg13: memref<128x512xf32, #tpu.memory_space<vmem>>, %arg14: memref<1x512xf32, #tpu.memory_space<vmem>>, %arg15: memref<128x128xf32, #tpu.memory_space<vmem>>, %arg16: memref<7x128xf32, #tpu.memory_space<vmem>>, %arg17: memref<1x128xf32, #tpu.memory_space<vmem>>, %arg18: memref<128x1xf32, #tpu.memory_space<vmem>>, %arg19: memref<1x1xf32, #tpu.memory_space<vmem>>, %arg20: memref<2x2xf32, #tpu.memory_space<vmem>>) attributes {dimension_semantics = [#tpu.dimension_semantics<arbitrary>], iteration_bounds = array<i64: 1>, scalar_prefetch = 0 : i64, scratch_operands = 0 : i64, tpu.core_type = #tpu.core_type<tc>, window_params = [{pipeline_mode = #tpu.pipeline_mode<synchronous>, transform_indices = @transform_0, window_bounds = array<i64: 8, 768>}, {pipeline_mode = #tpu.pipeline_mode<synchronous>, transform_indices = @transform_1, window_bounds = array<i64: 8, 9>}, {pipeline_mode = #tpu.pipeline_mode<synchronous>, transform_indices = @transform_2, window_bounds = array<i64: 2, 7>}, {pipeline_mode = #tpu.pipeline_mode<synchronous>, transform_indices = @transform_3, window_bounds = array<i64: 2, 128>}, {pipeline_mode = #tpu.pipeline_mode<synchronous>, transform_indices = @transform_4, window_bounds = array<i64: 768, 128>}, {pipeline_mode = #tpu.pipeline_mode<synchronous>, transform_indices = @transform_5, window_bounds = array<i64: 1, 128>}, {pipeline_mode = #tpu.pipeline_mode<synchronous>, transform_indices = @transform_6, window_bounds = array<i64: 9, 512>}, {pipeline_mode = #tpu.pipeline_mode<synchronous>, transform_indices = @transform_7, window_bounds = array<i64: 128, 512>}, {pipeline_mode = #tpu.pipeline_mode<synchronous>, transform_indices = @transform_8, window_bounds = array<i64: 128, 512>}, {pipeline_mode = #tpu.pipeline_mode<synchronous>, transform_indices = @transform_9, window_bounds = array<i64: 128, 512>}, {pipeline_mode = #tpu.pipeline_mode<synchronous>, transform_indices = @transform_10, window_bounds = array<i64: 1, 512>}, {pipeline_mode = #tpu.pipeline_mode<synchronous>, transform_indices = @transform_11, window_bounds = array<i64: 128, 512>}, {pipeline_mode = #tpu.pipeline_mode<synchronous>, transform_indices = @transform_12, window_bounds = array<i64: 128, 512>}, {pipeline_mode = #tpu.pipeline_mode<synchronous>, transform_indices = @transform_13, window_bounds = array<i64: 1, 512>}, {pipeline_mode = #tpu.pipeline_mode<synchronous>, transform_indices = @transform_14, window_bounds = array<i64: 128, 128>}, {pipeline_mode = #tpu.pipeline_mode<synchronous>, transform_indices = @transform_15, window_bounds = array<i64: 7, 128>}, {pipeline_mode = #tpu.pipeline_mode<synchronous>, transform_indices = @transform_16, window_bounds = array<i64: 1, 128>}, {pipeline_mode = #tpu.pipeline_mode<synchronous>, transform_indices = @transform_17, window_bounds = array<i64: 128, 1>}, {pipeline_mode = #tpu.pipeline_mode<synchronous>, transform_indices = @transform_18, window_bounds = array<i64: 1, 1>}, {pipeline_mode = #tpu.pipeline_mode<synchronous>, transform_indices = @transform_19, window_bounds = array<i64: 2, 2>}]} {
    %c0 = arith.constant 0 : index
    %c0_0 = arith.constant 0 : index
    %0 = vector.load %arg1[%c0, %c0_0] : memref<8x768xf32, #tpu.memory_space<vmem>>, vector<8x768xf32>
    %c0_1 = arith.constant 0 : index
    %c0_2 = arith.constant 0 : index
    %1 = vector.load %arg5[%c0_1, %c0_2] : memref<768x128xf32, #tpu.memory_space<vmem>>, vector<768x128xf32>
    %cst = arith.constant dense<0.000000e+00> : vector<8x128xf32>
    %2 = tpu.matmul %0, %1, %cst {dimension_numbers = #tpu.dot_dimension_numbers<[1], [0], [0], [1], [0, 0, 1, 1], [], []>} : vector<8x768xf32>, vector<768x128xf32>, vector<8x128xf32> -> vector<8x128xf32>
    %c0_3 = arith.constant 0 : index
    %c0_4 = arith.constant 0 : index
    %3 = vector.load %arg6[%c0_3, %c0_4] : memref<1x128xf32, #tpu.memory_space<vmem>>, vector<1x128xf32>
    %4 = vector.broadcast %3 : vector<1x128xf32> to vector<8x128xf32>
    %5 = arith.addf %2, %4 : vector<8x128xf32>
    %c0_5 = arith.constant 0 : index
    %c0_6 = arith.constant 0 : index
    %6 = vector.load %arg2[%c0_5, %c0_6] : memref<8x9xf32, #tpu.memory_space<vmem>>, vector<8x9xf32>
    %c0_7 = arith.constant 0 : index
    %c0_8 = arith.constant 0 : index
    %7 = vector.load %arg7[%c0_7, %c0_8] : memref<9x512xf32, #tpu.memory_space<vmem>>, vector<9x512xf32>
    %cst_9 = arith.constant dense<0.000000e+00> : vector<8x512xf32>
    %8 = tpu.matmul %6, %7, %cst_9 {dimension_numbers = #tpu.dot_dimension_numbers<[1], [0], [0], [1], [0, 0, 1, 1], [], []>} : vector<8x9xf32>, vector<9x512xf32>, vector<8x512xf32> -> vector<8x512xf32>
    %c0_10 = arith.constant 0 : index
    %c0_11 = arith.constant 0 : index
    %9 = vector.load %arg8[%c0_10, %c0_11] : memref<128x512xf32, #tpu.memory_space<vmem>>, vector<128x512xf32>
    %cst_12 = arith.constant dense<0.000000e+00> : vector<8x512xf32>
    %10 = tpu.matmul %5, %9, %cst_12 {dimension_numbers = #tpu.dot_dimension_numbers<[1], [0], [0], [1], [0, 0, 1, 1], [], []>} : vector<8x128xf32>, vector<128x512xf32>, vector<8x512xf32> -> vector<8x512xf32>
    %11 = arith.addf %8, %10 : vector<8x512xf32>
    %c0_13 = arith.constant 0 : index
    %c0_14 = arith.constant 0 : index
    %12 = vector.load %arg11[%c0_13, %c0_14] : memref<1x512xf32, #tpu.memory_space<vmem>>, vector<1x512xf32>
    %13 = vector.broadcast %12 : vector<1x512xf32> to vector<8x512xf32>
    %14 = arith.addf %11, %13 : vector<8x512xf32>
    %c0_15 = arith.constant 0 : index
    %c0_16 = arith.constant 0 : index
    %15 = vector.load %arg4[%c0_15, %c0_16] : memref<2x128xf32, #tpu.memory_space<vmem>>, vector<2x128xf32>
    %c0_17 = arith.constant 0 : index
    %c0_18 = arith.constant 0 : index
    %16 = vector.load %arg9[%c0_17, %c0_18] : memref<128x512xf32, #tpu.memory_space<vmem>>, vector<128x512xf32>
    %cst_19 = arith.constant dense<0.000000e+00> : vector<2x512xf32>
    %17 = tpu.matmul %15, %16, %cst_19 {dimension_numbers = #tpu.dot_dimension_numbers<[1], [0], [0], [1], [0, 0, 1, 1], [], []>} : vector<2x128xf32>, vector<128x512xf32>, vector<2x512xf32> -> vector<2x512xf32>
    %c0_20 = arith.constant 0 : index
    %c0_21 = arith.constant 0 : index
    %18 = vector.load %arg10[%c0_20, %c0_21] : memref<128x512xf32, #tpu.memory_space<vmem>>, vector<128x512xf32>
    %c0_22 = arith.constant 0 : index
    %c0_23 = arith.constant 0 : index
    %19 = vector.load %arg12[%c0_22, %c0_23] : memref<128x512xf32, #tpu.memory_space<vmem>>, vector<128x512xf32>
    %c0_24 = arith.constant 0 : index
    %c0_25 = arith.constant 0 : index
    %20 = vector.load %arg13[%c0_24, %c0_25] : memref<128x512xf32, #tpu.memory_space<vmem>>, vector<128x512xf32>
    %c0_26 = arith.constant 0 : index
    %c0_27 = arith.constant 0 : index
    %21 = vector.load %arg14[%c0_26, %c0_27] : memref<1x512xf32, #tpu.memory_space<vmem>>, vector<1x512xf32>
    %cst_28 = arith.constant 0.000000e+00 : f32
    %22 = vector.broadcast %cst_28 : f32 to vector<2x128xf32>
    %cst_29 = arith.constant 0.000000e+00 : f32
    %23 = vector.broadcast %cst_29 : f32 to vector<2x128xf32>
    %cst_30 = arith.constant 0.000000e+00 : f32
    %24 = vector.broadcast %cst_30 : f32 to vector<2x128xf32>
    %cst_31 = arith.constant 0.000000e+00 : f32
    %25 = vector.broadcast %cst_31 : f32 to vector<2x128xf32>
    %26 = vector.extract_strided_slice %14 {offsets = [0, 0], sizes = [2, 512], strides = [1, 1]} : vector<8x512xf32> to vector<2x512xf32>
    %27 = arith.addf %26, %17 : vector<2x512xf32>
    %cst_32 = arith.constant dense<0.000000e+00> : vector<2x512xf32>
    %28 = tpu.matmul %22, %18, %cst_32 {dimension_numbers = #tpu.dot_dimension_numbers<[1], [0], [0], [1], [0, 0, 1, 1], [], []>} : vector<2x128xf32>, vector<128x512xf32>, vector<2x512xf32> -> vector<2x512xf32>
    %29 = arith.addf %27, %28 : vector<2x512xf32>
    %30 = vector.extract_strided_slice %29 {offsets = [0, 0], sizes = [2, 128], strides = [1, 1]} : vector<2x512xf32> to vector<2x128xf32>
    %31 = arith.negf %30 : vector<2x128xf32>
    %32 = math.exp %31 : vector<2x128xf32>
    %cst_33 = arith.constant 1.000000e+00 : f32
    %33 = vector.broadcast %cst_33 : f32 to vector<2x128xf32>
    %34 = arith.addf %33, %32 : vector<2x128xf32>
    %35 = arith.divf %33, %34 : vector<2x128xf32>
    %36 = vector.extract_strided_slice %29 {offsets = [0, 128], sizes = [2, 128], strides = [1, 1]} : vector<2x512xf32> to vector<2x128xf32>
    %37 = arith.negf %36 : vector<2x128xf32>
    %38 = math.exp %37 : vector<2x128xf32>
    %cst_34 = arith.constant 1.000000e+00 : f32
    %39 = vector.broadcast %cst_34 : f32 to vector<2x128xf32>
    %40 = arith.addf %39, %38 : vector<2x128xf32>
    %41 = arith.divf %39, %40 : vector<2x128xf32>
    %42 = vector.extract_strided_slice %29 {offsets = [0, 256], sizes = [2, 128], strides = [1, 1]} : vector<2x512xf32> to vector<2x128xf32>
    %43 = math.tanh %42 : vector<2x128xf32>
    %44 = vector.extract_strided_slice %29 {offsets = [0, 384], sizes = [2, 128], strides = [1, 1]} : vector<2x512xf32> to vector<2x128xf32>
    %45 = arith.negf %44 : vector<2x128xf32>
    %46 = math.exp %45 : vector<2x128xf32>
    %cst_35 = arith.constant 1.000000e+00 : f32
    %47 = vector.broadcast %cst_35 : f32 to vector<2x128xf32>
    %48 = arith.addf %47, %46 : vector<2x128xf32>
    %49 = arith.divf %47, %48 : vector<2x128xf32>
    %50 = arith.mulf %41, %23 : vector<2x128xf32>
    %51 = arith.mulf %35, %43 : vector<2x128xf32>
    %52 = arith.addf %50, %51 : vector<2x128xf32>
    %53 = math.tanh %52 : vector<2x128xf32>
    %54 = arith.mulf %49, %53 : vector<2x128xf32>
    %cst_36 = arith.constant dense<0.000000e+00> : vector<2x512xf32>
    %55 = tpu.matmul %54, %19, %cst_36 {dimension_numbers = #tpu.dot_dimension_numbers<[1], [0], [0], [1], [0, 0, 1, 1], [], []>} : vector<2x128xf32>, vector<128x512xf32>, vector<2x512xf32> -> vector<2x512xf32>
    %cst_37 = arith.constant dense<0.000000e+00> : vector<2x512xf32>
    %56 = tpu.matmul %24, %20, %cst_37 {dimension_numbers = #tpu.dot_dimension_numbers<[1], [0], [0], [1], [0, 0, 1, 1], [], []>} : vector<2x128xf32>, vector<128x512xf32>, vector<2x512xf32> -> vector<2x512xf32>
    %57 = arith.addf %55, %56 : vector<2x512xf32>
    %58 = vector.broadcast %21 : vector<1x512xf32> to vector<2x512xf32>
    %59 = arith.addf %57, %58 : vector<2x512xf32>
    %60 = vector.extract_strided_slice %59 {offsets = [0, 0], sizes = [2, 128], strides = [1, 1]} : vector<2x512xf32> to vector<2x128xf32>
    %61 = arith.negf %60 : vector<2x128xf32>
    %62 = math.exp %61 : vector<2x128xf32>
    %cst_38 = arith.constant 1.000000e+00 : f32
    %63 = vector.broadcast %cst_38 : f32 to vector<2x128xf32>
    %64 = arith.addf %63, %62 : vector<2x128xf32>
    %65 = arith.divf %63, %64 : vector<2x128xf32>
    %66 = vector.extract_strided_slice %59 {offsets = [0, 128], sizes = [2, 128], strides = [1, 1]} : vector<2x512xf32> to vector<2x128xf32>
    %67 = arith.negf %66 : vector<2x128xf32>
    %68 = math.exp %67 : vector<2x128xf32>
    %cst_39 = arith.constant 1.000000e+00 : f32
    %69 = vector.broadcast %cst_39 : f32 to vector<2x128xf32>
    %70 = arith.addf %69, %68 : vector<2x128xf32>
    %71 = arith.divf %69, %70 : vector<2x128xf32>
    %72 = vector.extract_strided_slice %59 {offsets = [0, 256], sizes = [2, 128], strides = [1, 1]} : vector<2x512xf32> to vector<2x128xf32>
    %73 = math.tanh %72 : vector<2x128xf32>
    %74 = vector.extract_strided_slice %59 {offsets = [0, 384], sizes = [2, 128], strides = [1, 1]} : vector<2x512xf32> to vector<2x128xf32>
    %75 = arith.negf %74 : vector<2x128xf32>
    %76 = math.exp %75 : vector<2x128xf32>
    %cst_40 = arith.constant 1.000000e+00 : f32
    %77 = vector.broadcast %cst_40 : f32 to vector<2x128xf32>
    %78 = arith.addf %77, %76 : vector<2x128xf32>
    %79 = arith.divf %77, %78 : vector<2x128xf32>
    %80 = arith.mulf %71, %25 : vector<2x128xf32>
    %81 = arith.mulf %65, %73 : vector<2x128xf32>
    %82 = arith.addf %80, %81 : vector<2x128xf32>
    %83 = math.tanh %82 : vector<2x128xf32>
    %84 = arith.mulf %79, %83 : vector<2x128xf32>
    %85 = vector.extract_strided_slice %14 {offsets = [2, 0], sizes = [2, 512], strides = [1, 1]} : vector<8x512xf32> to vector<2x512xf32>
    %86 = arith.addf %85, %17 : vector<2x512xf32>
    %cst_41 = arith.constant dense<0.000000e+00> : vector<2x512xf32>
    %87 = tpu.matmul %54, %18, %cst_41 {dimension_numbers = #tpu.dot_dimension_numbers<[1], [0], [0], [1], [0, 0, 1, 1], [], []>} : vector<2x128xf32>, vector<128x512xf32>, vector<2x512xf32> -> vector<2x512xf32>
    %88 = arith.addf %86, %87 : vector<2x512xf32>
    %89 = vector.extract_strided_slice %88 {offsets = [0, 0], sizes = [2, 128], strides = [1, 1]} : vector<2x512xf32> to vector<2x128xf32>
    %90 = arith.negf %89 : vector<2x128xf32>
    %91 = math.exp %90 : vector<2x128xf32>
    %cst_42 = arith.constant 1.000000e+00 : f32
    %92 = vector.broadcast %cst_42 : f32 to vector<2x128xf32>
    %93 = arith.addf %92, %91 : vector<2x128xf32>
    %94 = arith.divf %92, %93 : vector<2x128xf32>
    %95 = vector.extract_strided_slice %88 {offsets = [0, 128], sizes = [2, 128], strides = [1, 1]} : vector<2x512xf32> to vector<2x128xf32>
    %96 = arith.negf %95 : vector<2x128xf32>
    %97 = math.exp %96 : vector<2x128xf32>
    %cst_43 = arith.constant 1.000000e+00 : f32
    %98 = vector.broadcast %cst_43 : f32 to vector<2x128xf32>
    %99 = arith.addf %98, %97 : vector<2x128xf32>
    %100 = arith.divf %98, %99 : vector<2x128xf32>
    %101 = vector.extract_strided_slice %88 {offsets = [0, 256], sizes = [2, 128], strides = [1, 1]} : vector<2x512xf32> to vector<2x128xf32>
    %102 = math.tanh %101 : vector<2x128xf32>
    %103 = vector.extract_strided_slice %88 {offsets = [0, 384], sizes = [2, 128], strides = [1, 1]} : vector<2x512xf32> to vector<2x128xf32>
    %104 = arith.negf %103 : vector<2x128xf32>
    %105 = math.exp %104 : vector<2x128xf32>
    %cst_44 = arith.constant 1.000000e+00 : f32
    %106 = vector.broadcast %cst_44 : f32 to vector<2x128xf32>
    %107 = arith.addf %106, %105 : vector<2x128xf32>
    %108 = arith.divf %106, %107 : vector<2x128xf32>
    %109 = arith.mulf %100, %52 : vector<2x128xf32>
    %110 = arith.mulf %94, %102 : vector<2x128xf32>
    %111 = arith.addf %109, %110 : vector<2x128xf32>
    %112 = math.tanh %111 : vector<2x128xf32>
    %113 = arith.mulf %108, %112 : vector<2x128xf32>
    %cst_45 = arith.constant dense<0.000000e+00> : vector<2x512xf32>
    %114 = tpu.matmul %113, %19, %cst_45 {dimension_numbers = #tpu.dot_dimension_numbers<[1], [0], [0], [1], [0, 0, 1, 1], [], []>} : vector<2x128xf32>, vector<128x512xf32>, vector<2x512xf32> -> vector<2x512xf32>
    %cst_46 = arith.constant dense<0.000000e+00> : vector<2x512xf32>
    %115 = tpu.matmul %84, %20, %cst_46 {dimension_numbers = #tpu.dot_dimension_numbers<[1], [0], [0], [1], [0, 0, 1, 1], [], []>} : vector<2x128xf32>, vector<128x512xf32>, vector<2x512xf32> -> vector<2x512xf32>
    %116 = arith.addf %114, %115 : vector<2x512xf32>
    %117 = vector.broadcast %21 : vector<1x512xf32> to vector<2x512xf32>
    %118 = arith.addf %116, %117 : vector<2x512xf32>
    %119 = vector.extract_strided_slice %118 {offsets = [0, 0], sizes = [2, 128], strides = [1, 1]} : vector<2x512xf32> to vector<2x128xf32>
    %120 = arith.negf %119 : vector<2x128xf32>
    %121 = math.exp %120 : vector<2x128xf32>
    %cst_47 = arith.constant 1.000000e+00 : f32
    %122 = vector.broadcast %cst_47 : f32 to vector<2x128xf32>
    %123 = arith.addf %122, %121 : vector<2x128xf32>
    %124 = arith.divf %122, %123 : vector<2x128xf32>
    %125 = vector.extract_strided_slice %118 {offsets = [0, 128], sizes = [2, 128], strides = [1, 1]} : vector<2x512xf32> to vector<2x128xf32>
    %126 = arith.negf %125 : vector<2x128xf32>
    %127 = math.exp %126 : vector<2x128xf32>
    %cst_48 = arith.constant 1.000000e+00 : f32
    %128 = vector.broadcast %cst_48 : f32 to vector<2x128xf32>
    %129 = arith.addf %128, %127 : vector<2x128xf32>
    %130 = arith.divf %128, %129 : vector<2x128xf32>
    %131 = vector.extract_strided_slice %118 {offsets = [0, 256], sizes = [2, 128], strides = [1, 1]} : vector<2x512xf32> to vector<2x128xf32>
    %132 = math.tanh %131 : vector<2x128xf32>
    %133 = vector.extract_strided_slice %118 {offsets = [0, 384], sizes = [2, 128], strides = [1, 1]} : vector<2x512xf32> to vector<2x128xf32>
    %134 = arith.negf %133 : vector<2x128xf32>
    %135 = math.exp %134 : vector<2x128xf32>
    %cst_49 = arith.constant 1.000000e+00 : f32
    %136 = vector.broadcast %cst_49 : f32 to vector<2x128xf32>
    %137 = arith.addf %136, %135 : vector<2x128xf32>
    %138 = arith.divf %136, %137 : vector<2x128xf32>
    %139 = arith.mulf %130, %82 : vector<2x128xf32>
    %140 = arith.mulf %124, %132 : vector<2x128xf32>
    %141 = arith.addf %139, %140 : vector<2x128xf32>
    %142 = math.tanh %141 : vector<2x128xf32>
    %143 = arith.mulf %138, %142 : vector<2x128xf32>
    %144 = vector.extract_strided_slice %14 {offsets = [4, 0], sizes = [2, 512], strides = [1, 1]} : vector<8x512xf32> to vector<2x512xf32>
    %145 = arith.addf %144, %17 : vector<2x512xf32>
    %cst_50 = arith.constant dense<0.000000e+00> : vector<2x512xf32>
    %146 = tpu.matmul %113, %18, %cst_50 {dimension_numbers = #tpu.dot_dimension_numbers<[1], [0], [0], [1], [0, 0, 1, 1], [], []>} : vector<2x128xf32>, vector<128x512xf32>, vector<2x512xf32> -> vector<2x512xf32>
    %147 = arith.addf %145, %146 : vector<2x512xf32>
    %148 = vector.extract_strided_slice %147 {offsets = [0, 0], sizes = [2, 128], strides = [1, 1]} : vector<2x512xf32> to vector<2x128xf32>
    %149 = arith.negf %148 : vector<2x128xf32>
    %150 = math.exp %149 : vector<2x128xf32>
    %cst_51 = arith.constant 1.000000e+00 : f32
    %151 = vector.broadcast %cst_51 : f32 to vector<2x128xf32>
    %152 = arith.addf %151, %150 : vector<2x128xf32>
    %153 = arith.divf %151, %152 : vector<2x128xf32>
    %154 = vector.extract_strided_slice %147 {offsets = [0, 128], sizes = [2, 128], strides = [1, 1]} : vector<2x512xf32> to vector<2x128xf32>
    %155 = arith.negf %154 : vector<2x128xf32>
    %156 = math.exp %155 : vector<2x128xf32>
    %cst_52 = arith.constant 1.000000e+00 : f32
    %157 = vector.broadcast %cst_52 : f32 to vector<2x128xf32>
    %158 = arith.addf %157, %156 : vector<2x128xf32>
    %159 = arith.divf %157, %158 : vector<2x128xf32>
    %160 = vector.extract_strided_slice %147 {offsets = [0, 256], sizes = [2, 128], strides = [1, 1]} : vector<2x512xf32> to vector<2x128xf32>
    %161 = math.tanh %160 : vector<2x128xf32>
    %162 = vector.extract_strided_slice %147 {offsets = [0, 384], sizes = [2, 128], strides = [1, 1]} : vector<2x512xf32> to vector<2x128xf32>
    %163 = arith.negf %162 : vector<2x128xf32>
    %164 = math.exp %163 : vector<2x128xf32>
    %cst_53 = arith.constant 1.000000e+00 : f32
    %165 = vector.broadcast %cst_53 : f32 to vector<2x128xf32>
    %166 = arith.addf %165, %164 : vector<2x128xf32>
    %167 = arith.divf %165, %166 : vector<2x128xf32>
    %168 = arith.mulf %159, %111 : vector<2x128xf32>
    %169 = arith.mulf %153, %161 : vector<2x128xf32>
    %170 = arith.addf %168, %169 : vector<2x128xf32>
    %171 = math.tanh %170 : vector<2x128xf32>
    %172 = arith.mulf %167, %171 : vector<2x128xf32>
    %cst_54 = arith.constant dense<0.000000e+00> : vector<2x512xf32>
    %173 = tpu.matmul %172, %19, %cst_54 {dimension_numbers = #tpu.dot_dimension_numbers<[1], [0], [0], [1], [0, 0, 1, 1], [], []>} : vector<2x128xf32>, vector<128x512xf32>, vector<2x512xf32> -> vector<2x512xf32>
    %cst_55 = arith.constant dense<0.000000e+00> : vector<2x512xf32>
    %174 = tpu.matmul %143, %20, %cst_55 {dimension_numbers = #tpu.dot_dimension_numbers<[1], [0], [0], [1], [0, 0, 1, 1], [], []>} : vector<2x128xf32>, vector<128x512xf32>, vector<2x512xf32> -> vector<2x512xf32>
    %175 = arith.addf %173, %174 : vector<2x512xf32>
    %176 = vector.broadcast %21 : vector<1x512xf32> to vector<2x512xf32>
    %177 = arith.addf %175, %176 : vector<2x512xf32>
    %178 = vector.extract_strided_slice %177 {offsets = [0, 0], sizes = [2, 128], strides = [1, 1]} : vector<2x512xf32> to vector<2x128xf32>
    %179 = arith.negf %178 : vector<2x128xf32>
    %180 = math.exp %179 : vector<2x128xf32>
    %cst_56 = arith.constant 1.000000e+00 : f32
    %181 = vector.broadcast %cst_56 : f32 to vector<2x128xf32>
    %182 = arith.addf %181, %180 : vector<2x128xf32>
    %183 = arith.divf %181, %182 : vector<2x128xf32>
    %184 = vector.extract_strided_slice %177 {offsets = [0, 128], sizes = [2, 128], strides = [1, 1]} : vector<2x512xf32> to vector<2x128xf32>
    %185 = arith.negf %184 : vector<2x128xf32>
    %186 = math.exp %185 : vector<2x128xf32>
    %cst_57 = arith.constant 1.000000e+00 : f32
    %187 = vector.broadcast %cst_57 : f32 to vector<2x128xf32>
    %188 = arith.addf %187, %186 : vector<2x128xf32>
    %189 = arith.divf %187, %188 : vector<2x128xf32>
    %190 = vector.extract_strided_slice %177 {offsets = [0, 256], sizes = [2, 128], strides = [1, 1]} : vector<2x512xf32> to vector<2x128xf32>
    %191 = math.tanh %190 : vector<2x128xf32>
    %192 = vector.extract_strided_slice %177 {offsets = [0, 384], sizes = [2, 128], strides = [1, 1]} : vector<2x512xf32> to vector<2x128xf32>
    %193 = arith.negf %192 : vector<2x128xf32>
    %194 = math.exp %193 : vector<2x128xf32>
    %cst_58 = arith.constant 1.000000e+00 : f32
    %195 = vector.broadcast %cst_58 : f32 to vector<2x128xf32>
    %196 = arith.addf %195, %194 : vector<2x128xf32>
    %197 = arith.divf %195, %196 : vector<2x128xf32>
    %198 = arith.mulf %189, %141 : vector<2x128xf32>
    %199 = arith.mulf %183, %191 : vector<2x128xf32>
    %200 = arith.addf %198, %199 : vector<2x128xf32>
    %201 = math.tanh %200 : vector<2x128xf32>
    %202 = arith.mulf %197, %201 : vector<2x128xf32>
    %203 = vector.extract_strided_slice %14 {offsets = [6, 0], sizes = [2, 512], strides = [1, 1]} : vector<8x512xf32> to vector<2x512xf32>
    %204 = arith.addf %203, %17 : vector<2x512xf32>
    %cst_59 = arith.constant dense<0.000000e+00> : vector<2x512xf32>
    %205 = tpu.matmul %172, %18, %cst_59 {dimension_numbers = #tpu.dot_dimension_numbers<[1], [0], [0], [1], [0, 0, 1, 1], [], []>} : vector<2x128xf32>, vector<128x512xf32>, vector<2x512xf32> -> vector<2x512xf32>
    %206 = arith.addf %204, %205 : vector<2x512xf32>
    %207 = vector.extract_strided_slice %206 {offsets = [0, 0], sizes = [2, 128], strides = [1, 1]} : vector<2x512xf32> to vector<2x128xf32>
    %208 = arith.negf %207 : vector<2x128xf32>
    %209 = math.exp %208 : vector<2x128xf32>
    %cst_60 = arith.constant 1.000000e+00 : f32
    %210 = vector.broadcast %cst_60 : f32 to vector<2x128xf32>
    %211 = arith.addf %210, %209 : vector<2x128xf32>
    %212 = arith.divf %210, %211 : vector<2x128xf32>
    %213 = vector.extract_strided_slice %206 {offsets = [0, 128], sizes = [2, 128], strides = [1, 1]} : vector<2x512xf32> to vector<2x128xf32>
    %214 = arith.negf %213 : vector<2x128xf32>
    %215 = math.exp %214 : vector<2x128xf32>
    %cst_61 = arith.constant 1.000000e+00 : f32
    %216 = vector.broadcast %cst_61 : f32 to vector<2x128xf32>
    %217 = arith.addf %216, %215 : vector<2x128xf32>
    %218 = arith.divf %216, %217 : vector<2x128xf32>
    %219 = vector.extract_strided_slice %206 {offsets = [0, 256], sizes = [2, 128], strides = [1, 1]} : vector<2x512xf32> to vector<2x128xf32>
    %220 = math.tanh %219 : vector<2x128xf32>
    %221 = vector.extract_strided_slice %206 {offsets = [0, 384], sizes = [2, 128], strides = [1, 1]} : vector<2x512xf32> to vector<2x128xf32>
    %222 = arith.negf %221 : vector<2x128xf32>
    %223 = math.exp %222 : vector<2x128xf32>
    %cst_62 = arith.constant 1.000000e+00 : f32
    %224 = vector.broadcast %cst_62 : f32 to vector<2x128xf32>
    %225 = arith.addf %224, %223 : vector<2x128xf32>
    %226 = arith.divf %224, %225 : vector<2x128xf32>
    %227 = arith.mulf %218, %170 : vector<2x128xf32>
    %228 = arith.mulf %212, %220 : vector<2x128xf32>
    %229 = arith.addf %227, %228 : vector<2x128xf32>
    %230 = math.tanh %229 : vector<2x128xf32>
    %231 = arith.mulf %226, %230 : vector<2x128xf32>
    %cst_63 = arith.constant dense<0.000000e+00> : vector<2x512xf32>
    %232 = tpu.matmul %231, %19, %cst_63 {dimension_numbers = #tpu.dot_dimension_numbers<[1], [0], [0], [1], [0, 0, 1, 1], [], []>} : vector<2x128xf32>, vector<128x512xf32>, vector<2x512xf32> -> vector<2x512xf32>
    %cst_64 = arith.constant dense<0.000000e+00> : vector<2x512xf32>
    %233 = tpu.matmul %202, %20, %cst_64 {dimension_numbers = #tpu.dot_dimension_numbers<[1], [0], [0], [1], [0, 0, 1, 1], [], []>} : vector<2x128xf32>, vector<128x512xf32>, vector<2x512xf32> -> vector<2x512xf32>
    %234 = arith.addf %232, %233 : vector<2x512xf32>
    %235 = vector.broadcast %21 : vector<1x512xf32> to vector<2x512xf32>
    %236 = arith.addf %234, %235 : vector<2x512xf32>
    %237 = vector.extract_strided_slice %236 {offsets = [0, 0], sizes = [2, 128], strides = [1, 1]} : vector<2x512xf32> to vector<2x128xf32>
    %238 = arith.negf %237 : vector<2x128xf32>
    %239 = math.exp %238 : vector<2x128xf32>
    %cst_65 = arith.constant 1.000000e+00 : f32
    %240 = vector.broadcast %cst_65 : f32 to vector<2x128xf32>
    %241 = arith.addf %240, %239 : vector<2x128xf32>
    %242 = arith.divf %240, %241 : vector<2x128xf32>
    %243 = vector.extract_strided_slice %236 {offsets = [0, 128], sizes = [2, 128], strides = [1, 1]} : vector<2x512xf32> to vector<2x128xf32>
    %244 = arith.negf %243 : vector<2x128xf32>
    %245 = math.exp %244 : vector<2x128xf32>
    %cst_66 = arith.constant 1.000000e+00 : f32
    %246 = vector.broadcast %cst_66 : f32 to vector<2x128xf32>
    %247 = arith.addf %246, %245 : vector<2x128xf32>
    %248 = arith.divf %246, %247 : vector<2x128xf32>
    %249 = vector.extract_strided_slice %236 {offsets = [0, 256], sizes = [2, 128], strides = [1, 1]} : vector<2x512xf32> to vector<2x128xf32>
    %250 = math.tanh %249 : vector<2x128xf32>
    %251 = vector.extract_strided_slice %236 {offsets = [0, 384], sizes = [2, 128], strides = [1, 1]} : vector<2x512xf32> to vector<2x128xf32>
    %252 = arith.negf %251 : vector<2x128xf32>
    %253 = math.exp %252 : vector<2x128xf32>
    %cst_67 = arith.constant 1.000000e+00 : f32
    %254 = vector.broadcast %cst_67 : f32 to vector<2x128xf32>
    %255 = arith.addf %254, %253 : vector<2x128xf32>
    %256 = arith.divf %254, %255 : vector<2x128xf32>
    %257 = arith.mulf %248, %200 : vector<2x128xf32>
    %258 = arith.mulf %242, %250 : vector<2x128xf32>
    %259 = arith.addf %257, %258 : vector<2x128xf32>
    %260 = math.tanh %259 : vector<2x128xf32>
    %261 = arith.mulf %256, %260 : vector<2x128xf32>
    %c0_68 = arith.constant 0 : index
    %c0_69 = arith.constant 0 : index
    %262 = vector.load %arg15[%c0_68, %c0_69] : memref<128x128xf32, #tpu.memory_space<vmem>>, vector<128x128xf32>
    %cst_70 = arith.constant dense<0.000000e+00> : vector<2x128xf32>
    %263 = tpu.matmul %261, %262, %cst_70 {dimension_numbers = #tpu.dot_dimension_numbers<[1], [0], [0], [1], [0, 0, 1, 1], [], []>} : vector<2x128xf32>, vector<128x128xf32>, vector<2x128xf32> -> vector<2x128xf32>
    %c0_71 = arith.constant 0 : index
    %c0_72 = arith.constant 0 : index
    %264 = vector.load %arg3[%c0_71, %c0_72] : memref<2x7xf32, #tpu.memory_space<vmem>>, vector<2x7xf32>
    %c0_73 = arith.constant 0 : index
    %c0_74 = arith.constant 0 : index
    %265 = vector.load %arg16[%c0_73, %c0_74] : memref<7x128xf32, #tpu.memory_space<vmem>>, vector<7x128xf32>
    %cst_75 = arith.constant dense<0.000000e+00> : vector<2x128xf32>
    %266 = tpu.matmul %264, %265, %cst_75 {dimension_numbers = #tpu.dot_dimension_numbers<[1], [0], [0], [1], [0, 0, 1, 1], [], []>} : vector<2x7xf32>, vector<7x128xf32>, vector<2x128xf32> -> vector<2x128xf32>
    %267 = arith.addf %263, %266 : vector<2x128xf32>
    %c0_76 = arith.constant 0 : index
    %c0_77 = arith.constant 0 : index
    %268 = vector.load %arg17[%c0_76, %c0_77] : memref<1x128xf32, #tpu.memory_space<vmem>>, vector<1x128xf32>
    %269 = vector.broadcast %268 : vector<1x128xf32> to vector<2x128xf32>
    %270 = arith.addf %267, %269 : vector<2x128xf32>
    %cst_78 = arith.constant 0.000000e+00 : f32
    %271 = vector.broadcast %cst_78 : f32 to vector<2x128xf32>
    %272 = arith.maximumf %270, %271 : vector<2x128xf32>
    %c0_79 = arith.constant 0 : index
    %c0_80 = arith.constant 0 : index
    %273 = vector.load %arg18[%c0_79, %c0_80] : memref<128x1xf32, #tpu.memory_space<vmem>>, vector<128x1xf32>
    %cst_81 = arith.constant dense<0.000000e+00> : vector<2x1xf32>
    %274 = tpu.matmul %272, %273, %cst_81 {dimension_numbers = #tpu.dot_dimension_numbers<[1], [0], [0], [1], [0, 0, 1, 1], [], []>} : vector<2x128xf32>, vector<128x1xf32>, vector<2x1xf32> -> vector<2x1xf32>
    %c0_82 = arith.constant 0 : index
    %c0_83 = arith.constant 0 : index
    %275 = vector.load %arg19[%c0_82, %c0_83] : memref<1x1xf32, #tpu.memory_space<vmem>>, vector<1x1xf32>
    %276 = vector.broadcast %275 : vector<1x1xf32> to vector<2x1xf32>
    %277 = arith.addf %274, %276 : vector<2x1xf32>
    %278 = arith.negf %277 : vector<2x1xf32>
    %279 = math.exp %278 : vector<2x1xf32>
    %cst_84 = arith.constant 1.000000e+00 : f32
    %280 = vector.broadcast %cst_84 : f32 to vector<2x1xf32>
    %281 = arith.addf %280, %279 : vector<2x1xf32>
    %282 = arith.divf %280, %281 : vector<2x1xf32>
    %283 = tpu.concatenate %277, %282 in 1 : vector<2x1xf32>, vector<2x1xf32> -> vector<2x2xf32>
    %c0_85 = arith.constant 0 : index
    %c0_86 = arith.constant 0 : index
    %284 = vector.load %arg20[%c0_85, %c0_86] : memref<2x2xf32, #tpu.memory_space<vmem>>, vector<2x2xf32>
    tpu.vector_store %arg20[%c0_85, %c0_86], %283 {strides = array<i32>} : memref<2x2xf32, #tpu.memory_space<vmem>>, vector<2x2xf32>,
    return
  }
  func.func @transform_0(%arg0: i32) -> (i32, i32) {
    %c0_i32 = arith.constant 0 : i32
    %c0_i32_0 = arith.constant 0 : i32
    %c0_i32_1 = arith.constant 0 : i32
    return %c0_i32, %c0_i32_0 : i32, i32
  }
  func.func @transform_1(%arg0: i32) -> (i32, i32) {
    %c0_i32 = arith.constant 0 : i32
    %c0_i32_0 = arith.constant 0 : i32
    %c0_i32_1 = arith.constant 0 : i32
    return %c0_i32, %c0_i32_0 : i32, i32
  }
  func.func @transform_2(%arg0: i32) -> (i32, i32) {
    %c0_i32 = arith.constant 0 : i32
    %c0_i32_0 = arith.constant 0 : i32
    %c0_i32_1 = arith.constant 0 : i32
    return %c0_i32, %c0_i32_0 : i32, i32
  }
  func.func @transform_3(%arg0: i32) -> (i32, i32) {
    %c0_i32 = arith.constant 0 : i32
    %c0_i32_0 = arith.constant 0 : i32
    %c0_i32_1 = arith.constant 0 : i32
    return %c0_i32, %c0_i32_0 : i32, i32
  }
  func.func @transform_4(%arg0: i32) -> (i32, i32) {
    %c0_i32 = arith.constant 0 : i32
    %c0_i32_0 = arith.constant 0 : i32
    %c0_i32_1 = arith.constant 0 : i32
    return %c0_i32, %c0_i32_0 : i32, i32
  }
  func.func @transform_5(%arg0: i32) -> (i32, i32) {
    %c0_i32 = arith.constant 0 : i32
    %c0_i32_0 = arith.constant 0 : i32
    %c0_i32_1 = arith.constant 0 : i32
    return %c0_i32, %c0_i32_0 : i32, i32
  }
  func.func @transform_6(%arg0: i32) -> (i32, i32) {
    %c0_i32 = arith.constant 0 : i32
    %c0_i32_0 = arith.constant 0 : i32
    %c0_i32_1 = arith.constant 0 : i32
    return %c0_i32, %c0_i32_0 : i32, i32
  }
  func.func @transform_7(%arg0: i32) -> (i32, i32) {
    %c0_i32 = arith.constant 0 : i32
    %c0_i32_0 = arith.constant 0 : i32
    %c0_i32_1 = arith.constant 0 : i32
    return %c0_i32, %c0_i32_0 : i32, i32
  }
  func.func @transform_8(%arg0: i32) -> (i32, i32) {
    %c0_i32 = arith.constant 0 : i32
    %c0_i32_0 = arith.constant 0 : i32
    %c0_i32_1 = arith.constant 0 : i32
    return %c0_i32, %c0_i32_0 : i32, i32
  }
  func.func @transform_9(%arg0: i32) -> (i32, i32) {
    %c0_i32 = arith.constant 0 : i32
    %c0_i32_0 = arith.constant 0 : i32
    %c0_i32_1 = arith.constant 0 : i32
    return %c0_i32, %c0_i32_0 : i32, i32
  }
  func.func @transform_10(%arg0: i32) -> (i32, i32) {
    %c0_i32 = arith.constant 0 : i32
    %c0_i32_0 = arith.constant 0 : i32
    %c0_i32_1 = arith.constant 0 : i32
    return %c0_i32, %c0_i32_0 : i32, i32
  }
  func.func @transform_11(%arg0: i32) -> (i32, i32) {
    %c0_i32 = arith.constant 0 : i32
    %c0_i32_0 = arith.constant 0 : i32
    %c0_i32_1 = arith.constant 0 : i32
    return %c0_i32, %c0_i32_0 : i32, i32
  }
  func.func @transform_12(%arg0: i32) -> (i32, i32) {
    %c0_i32 = arith.constant 0 : i32
    %c0_i32_0 = arith.constant 0 : i32
    %c0_i32_1 = arith.constant 0 : i32
    return %c0_i32, %c0_i32_0 : i32, i32
  }
  func.func @transform_13(%arg0: i32) -> (i32, i32) {
    %c0_i32 = arith.constant 0 : i32
    %c0_i32_0 = arith.constant 0 : i32
    %c0_i32_1 = arith.constant 0 : i32
    return %c0_i32, %c0_i32_0 : i32, i32
  }
  func.func @transform_14(%arg0: i32) -> (i32, i32) {
    %c0_i32 = arith.constant 0 : i32
    %c0_i32_0 = arith.constant 0 : i32
    %c0_i32_1 = arith.constant 0 : i32
    return %c0_i32, %c0_i32_0 : i32, i32
  }
  func.func @transform_15(%arg0: i32) -> (i32, i32) {
    %c0_i32 = arith.constant 0 : i32
    %c0_i32_0 = arith.constant 0 : i32
    %c0_i32_1 = arith.constant 0 : i32
    return %c0_i32, %c0_i32_0 : i32, i32
  }
  func.func @transform_16(%arg0: i32) -> (i32, i32) {
    %c0_i32 = arith.constant 0 : i32
    %c0_i32_0 = arith.constant 0 : i32
    %c0_i32_1 = arith.constant 0 : i32
    return %c0_i32, %c0_i32_0 : i32, i32
  }
  func.func @transform_17(%arg0: i32) -> (i32, i32) {
    %c0_i32 = arith.constant 0 : i32
    %c0_i32_0 = arith.constant 0 : i32
    %c0_i32_1 = arith.constant 0 : i32
    return %c0_i32, %c0_i32_0 : i32, i32
  }
  func.func @transform_18(%arg0: i32) -> (i32, i32) {
    %c0_i32 = arith.constant 0 : i32
    %c0_i32_0 = arith.constant 0 : i32
    %c0_i32_1 = arith.constant 0 : i32
    return %c0_i32, %c0_i32_0 : i32, i32
  }
  func.func @transform_19(%arg0: i32) -> (i32, i32) {
    %c0_i32 = arith.constant 0 : i32
    %c0_i32_0 = arith.constant 0 : i32
    %c0_i32_1 = arith.constant 0 : i32
    return %c0_i32, %c0_i32_0 : i32, i32
  }
}

</mosaic_0001>

<llo_original>
// kernel: tpu_custom_call.1
$region0: #{tpu_custom_call.1}
  #allocation0 [shape = 'u32[]', space=smem, size = 0x4, offset = 0x4, fixed_abs, tag = 'smem constant byte address 0x4 - core index']
  #allocation1 [shape = 'u32[144,128]{1,0:T(1,128)}', space=vmem, size = 0x12000, scoped, tag = 'internal scratch']
  #allocation2 [shape = 'f32[1,1]{1,0:T(1,128)S(1)}', space=vmem, size = 0x200, scoped, tag = 'scoped memory for tpu_custom_call.1']
  %s0 = inlined_call_operand.hbm [shape: f32[8,768], index: 0, kind: input, shape index: {}]
  %s1 = inlined_call_operand.vmem [shape: f32[8,9], index: 1, kind: input, shape index: {}]
  %s2 = inlined_call_operand.vmem [shape: f32[2,7], index: 2, kind: input, shape index: {}]
  %s3 = inlined_call_operand.vmem [shape: f32[2,128], index: 3, kind: input, shape index: {}]
  %s4 = inlined_call_operand.hbm [shape: f32[768,128], index: 4, kind: input, shape index: {}]
  %s5 = inlined_call_operand.hbm [shape: f32[1,128], index: 5, kind: input, shape index: {}]
  %s6 = inlined_call_operand.hbm [shape: f32[9,512], index: 6, kind: input, shape index: {}]
  %s7 = inlined_call_operand.hbm [shape: f32[128,512], index: 7, kind: input, shape index: {}]
  %s8 = inlined_call_operand.hbm [shape: f32[128,512], index: 8, kind: input, shape index: {}]
  %s9 = inlined_call_operand.hbm [shape: f32[128,512], index: 9, kind: input, shape index: {}]
  %s10 = inlined_call_operand.vmem [shape: f32[1,512], index: 10, kind: input, shape index: {}]
  %s11 = inlined_call_operand.hbm [shape: f32[128,512], index: 11, kind: input, shape index: {}]
  %s12 = inlined_call_operand.hbm [shape: f32[128,512], index: 12, kind: input, shape index: {}]
  %s13 = inlined_call_operand.vmem [shape: f32[1,512], index: 13, kind: input, shape index: {}]
  %s14 = inlined_call_operand.vmem [shape: f32[128,128], index: 14, kind: input, shape index: {}]
  %s15 = inlined_call_operand.vmem [shape: f32[7,128], index: 15, kind: input, shape index: {}]
  %s16 = inlined_call_operand.vmem [shape: f32[1,128], index: 16, kind: input, shape index: {}]
  %s17 = inlined_call_operand.vmem [shape: f32[128,1], index: 17, kind: input, shape index: {}]
  %s18 = inlined_call_operand.<no memory space> [shape: f32[1,1], index: 18, kind: input, shape index: {}]
  %s19 = inlined_call_operand.hbm [shape: f32[2,2], index: 19, kind: output, shape index: {}]
  %s20 = sld [smem:[#allocation0]]
  $region122: #{tpu_custom_call.1} parent=0
    _
  %s22 = ssub.s32 1, %s20
  %s23 = scalar_select 0, %s22, %s20
  %v24 = vstv %s18
  %25 = vst [vmem:[#allocation2] sm:$0x1] %v24
  $region1: #{tpu_custom_call.1} parent=0
    #allocation3 [shape = 'u8[24576]{0}', space=vmem, size = 0x6000, scoped, tag = 'input window, operand 0, single buffered']
    #allocation4 [shape = 's32[1]{0}', space=sflag, size = 0x4, scoped, tag = 'scoped memory for tpu_custom_call.1']
    #allocation5 [shape = 's32[1]{0}', space=sflag, size = 0x4, scoped, tag = 'scoped memory for tpu_custom_call.1']
    #allocation6 [shape = 'u8[393216]{0}', space=vmem, size = 0x60000, scoped, tag = 'input window, operand 4, single buffered']
    #allocation7 [shape = 's32[1]{0}', space=sflag, size = 0x4, scoped, tag = 'scoped memory for tpu_custom_call.1']
    #allocation8 [shape = 'u8[512]{0}', space=vmem, size = 0x400, scoped, tag = 'input window, operand 5, single buffered']
    #allocation9 [shape = 'u8[32768]{0}', space=vmem, size = 0x8000, scoped, tag = 'input window, operand 6, single buffered']
    #allocation10 [shape = 's32[1]{0}', space=sflag, size = 0x4, scoped, tag = 'scoped memory for tpu_custom_call.1']
    #allocation11 [shape = 'u8[262144]{0}', space=vmem, size = 0x40000, scoped, tag = 'input window, operand 7, single buffered']
    #allocation12 [shape = 'u8[262144]{0}', space=vmem, size = 0x40000, scoped, tag = 'input window, operand 8, single buffered']
    #allocation13 [shape = 's32[1]{0}', space=sflag, size = 0x4, scoped, tag = 'scoped memory for tpu_custom_call.1']
    #allocation14 [shape = 'u8[262144]{0}', space=vmem, size = 0x40000, scoped, tag = 'input window, operand 9, single buffered']
    #allocation15 [shape = 'u8[262144]{0}', space=vmem, size = 0x40000, scoped, tag = 'input window, operand 11, single buffered']
    #allocation16 [shape = 's32[1]{0}', space=sflag, size = 0x4, scoped, tag = 'scoped memory for tpu_custom_call.1']
    #allocation17 [shape = 'u8[262144]{0}', space=vmem, size = 0x40000, scoped, tag = 'input window, operand 12, single buffered']
    #allocation18 [shape = 'u8[1024]{0}', space=vmem, size = 0x400, scoped, tag = 'output window, operand 0, single buffered']
    %26 = vsyncpa [#allocation4], 0
    %27 = vsyncpa [#allocation7], 0
    %28 = vsyncpa [#allocation10], 0
    %29 = vsyncpa [#allocation13], 0
    %30 = vsyncpa [#allocation16], 0
    %31 = vsyncpa [#allocation5], 0
    // Predicated region
    $region2: #{tpu_custom_call.1} parent=1 // pred_check
      _
    $region3: #{tpu_custom_call.1} parent=1 // pred_check_branch
      %33 = sbr.rel (0) target = $region5
    $region4: #{tpu_custom_call.1} parent=1 // pred_region
      %s35 = ssub.s32 768, 768
      %36 = vsyncadd [#allocation4], %s35
      %s38 = sshll.u32 [#allocation3], 4
      %s39 = int_to_ptr.vmem [resolvable:$true] %s38
      %41 = dma.hbm_to_vmem [thread:$0]  %s0, 768, %s39, [#allocation4]
    $region5: #{tpu_custom_call.1} parent=1 // pred_fallthru
      _
    // Predicated region
    $region6: #{tpu_custom_call.1} parent=1 // pred_check
      _
    $region7: #{tpu_custom_call.1} parent=1 // pred_check_branch
      %43 = sbr.rel (0) target = $region9
    $region8: #{tpu_custom_call.1} parent=1 // pred_region
      _
    $region9: #{tpu_custom_call.1} parent=1 // pred_fallthru
      _
    // Predicated region
    $region10: #{tpu_custom_call.1} parent=1 // pred_check
      _
    $region11: #{tpu_custom_call.1} parent=1 // pred_check_branch
      %45 = sbr.rel (0) target = $region13
    $region12: #{tpu_custom_call.1} parent=1 // pred_region
      _
    $region13: #{tpu_custom_call.1} parent=1 // pred_fallthru
      _
    // Predicated region
    $region14: #{tpu_custom_call.1} parent=1 // pred_check
      _
    $region15: #{tpu_custom_call.1} parent=1 // pred_check_branch
      %47 = sbr.rel (0) target = $region17
    $region16: #{tpu_custom_call.1} parent=1 // pred_region
      _
    $region17: #{tpu_custom_call.1} parent=1 // pred_fallthru
      _
    // Predicated region
    $region18: #{tpu_custom_call.1} parent=1 // pred_check
      _
    $region19: #{tpu_custom_call.1} parent=1 // pred_check_branch
      %49 = sbr.rel (0) target = $region21
    $region20: #{tpu_custom_call.1} parent=1 // pred_region
      %s51 = ssub.s32 12288, 12288
      %52 = vsyncadd [#allocation7], %s51
      %s53 = sshll.u32 [#allocation6], 4
      %s54 = int_to_ptr.vmem [resolvable:$true] %s53
      %59 = dma.hbm_to_vmem [thread:$0]  %s4, 12288, %s54, [#allocation7], 128, 128, 8
    $region21: #{tpu_custom_call.1} parent=1 // pred_fallthru
      _
    // Predicated region
    $region22: #{tpu_custom_call.1} parent=1 // pred_check
      _
    $region23: #{tpu_custom_call.1} parent=1 // pred_check_branch
      %61 = sbr.rel (0) target = $region25
    $region24: #{tpu_custom_call.1} parent=1 // pred_region
      %s63 = ssub.s32 16, 16
      %64 = vsyncadd [#allocation7], %s63
      %s66 = sshll.u32 [#allocation8], 4
      %s67 = int_to_ptr.vmem [resolvable:$true] %s66
      %69 = dma.hbm_to_vmem [thread:$0]  %s5, 16, %s67, [#allocation7]
    $region25: #{tpu_custom_call.1} parent=1 // pred_fallthru
      _
    // Predicated region
    $region26: #{tpu_custom_call.1} parent=1 // pred_check
      _
    $region27: #{tpu_custom_call.1} parent=1 // pred_check_branch
      %71 = sbr.rel (0) target = $region29
    $region28: #{tpu_custom_call.1} parent=1 // pred_region
      %s73 = ssub.s32 1024, 1024
      %74 = vsyncadd [#allocation10], %s73
      %s75 = sshll.u32 [#allocation9], 4
      %s76 = int_to_ptr.vmem [resolvable:$true] %s75
      %81 = dma.hbm_to_vmem [thread:$0]  %s6, 1024, %s76, [#allocation10], 512, 512, 32
    $region29: #{tpu_custom_call.1} parent=1 // pred_fallthru
      _
    // Predicated region
    $region30: #{tpu_custom_call.1} parent=1 // pred_check
      _
    $region31: #{tpu_custom_call.1} parent=1 // pred_check_branch
      %83 = sbr.rel (0) target = $region33
    $region32: #{tpu_custom_call.1} parent=1 // pred_region
      %s85 = ssub.s32 8192, 8192
      %86 = vsyncadd [#allocation10], %s85
      %s87 = sshll.u32 [#allocation11], 4
      %s88 = int_to_ptr.vmem [resolvable:$true] %s87
      %93 = dma.hbm_to_vmem [thread:$0]  %s7, 8192, %s88, [#allocation10], 512, 512, 32
    $region33: #{tpu_custom_call.1} parent=1 // pred_fallthru
      _
    // Predicated region
    $region34: #{tpu_custom_call.1} parent=1 // pred_check
      _
    $region35: #{tpu_custom_call.1} parent=1 // pred_check_branch
      %95 = sbr.rel (0) target = $region37
    $region36: #{tpu_custom_call.1} parent=1 // pred_region
      %s97 = ssub.s32 8192, 8192
      %98 = vsyncadd [#allocation13], %s97
      %s99 = sshll.u32 [#allocation12], 4
      %s100 = int_to_ptr.vmem [resolvable:$true] %s99
      %105 = dma.hbm_to_vmem [thread:$0]  %s8, 8192, %s100, [#allocation13], 512, 512, 32
    $region37: #{tpu_custom_call.1} parent=1 // pred_fallthru
      _
    // Predicated region
    $region38: #{tpu_custom_call.1} parent=1 // pred_check
      _
    $region39: #{tpu_custom_call.1} parent=1 // pred_check_branch
      %107 = sbr.rel (0) target = $region41
    $region40: #{tpu_custom_call.1} parent=1 // pred_region
      %s109 = ssub.s32 8192, 8192
      %110 = vsyncadd [#allocation13], %s109
      %s111 = sshll.u32 [#allocation14], 4
      %s112 = int_to_ptr.vmem [resolvable:$true] %s111
      %117 = dma.hbm_to_vmem [thread:$0]  %s9, 8192, %s112, [#allocation13], 512, 512, 32
    $region41: #{tpu_custom_call.1} parent=1 // pred_fallthru
      _
    // Predicated region
    $region42: #{tpu_custom_call.1} parent=1 // pred_check
      _
    $region43: #{tpu_custom_call.1} parent=1 // pred_check_branch
      %119 = sbr.rel (0) target = $region45
    $region44: #{tpu_custom_call.1} parent=1 // pred_region
      _
    $region45: #{tpu_custom_call.1} parent=1 // pred_fallthru
      _
    // Predicated region
    $region46: #{tpu_custom_call.1} parent=1 // pred_check
      _
    $region47: #{tpu_custom_call.1} parent=1 // pred_check_branch
      %121 = sbr.rel (0) target = $region49
    $region48: #{tpu_custom_call.1} parent=1 // pred_region
      %s123 = ssub.s32 8192, 8192
      %124 = vsyncadd [#allocation16], %s123
      %s125 = sshll.u32 [#allocation15], 4
      %s126 = int_to_ptr.vmem [resolvable:$true] %s125
      %131 = dma.hbm_to_vmem [thread:$0]  %s11, 8192, %s126, [#allocation16], 512, 512, 32
    $region49: #{tpu_custom_call.1} parent=1 // pred_fallthru
      _
    // Predicated region
    $region50: #{tpu_custom_call.1} parent=1 // pred_check
      _
    $region51: #{tpu_custom_call.1} parent=1 // pred_check_branch
      %133 = sbr.rel (0) target = $region53
    $region52: #{tpu_custom_call.1} parent=1 // pred_region
      %s135 = ssub.s32 8192, 8192
      %136 = vsyncadd [#allocation16], %s135
      %s137 = sshll.u32 [#allocation17], 4
      %s138 = int_to_ptr.vmem [resolvable:$true] %s137
      %143 = dma.hbm_to_vmem [thread:$0]  %s12, 8192, %s138, [#allocation16], 512, 512, 32
    $region53: #{tpu_custom_call.1} parent=1 // pred_fallthru
      _
    // Predicated region
    $region54: #{tpu_custom_call.1} parent=1 // pred_check
      _
    $region55: #{tpu_custom_call.1} parent=1 // pred_check_branch
      %145 = sbr.rel (0) target = $region57
    $region56: #{tpu_custom_call.1} parent=1 // pred_region
      _
    $region57: #{tpu_custom_call.1} parent=1 // pred_fallthru
      _
    // Predicated region
    $region58: #{tpu_custom_call.1} parent=1 // pred_check
      _
    $region59: #{tpu_custom_call.1} parent=1 // pred_check_branch
      %147 = sbr.rel (0) target = $region61
    $region60: #{tpu_custom_call.1} parent=1 // pred_region
      _
    $region61: #{tpu_custom_call.1} parent=1 // pred_fallthru
      _
    // Predicated region
    $region62: #{tpu_custom_call.1} parent=1 // pred_check
      _
    $region63: #{tpu_custom_call.1} parent=1 // pred_check_branch
      %149 = sbr.rel (0) target = $region65
    $region64: #{tpu_custom_call.1} parent=1 // pred_region
      _
    $region65: #{tpu_custom_call.1} parent=1 // pred_fallthru
      _
    // Predicated region
    $region66: #{tpu_custom_call.1} parent=1 // pred_check
      _
    $region67: #{tpu_custom_call.1} parent=1 // pred_check_branch
      %151 = sbr.rel (0) target = $region69
    $region68: #{tpu_custom_call.1} parent=1 // pred_region
      _
    $region69: #{tpu_custom_call.1} parent=1 // pred_fallthru
      _
    // Predicated region
    $region70: #{tpu_custom_call.1} parent=1 // pred_check
      _
    $region71: #{tpu_custom_call.1} parent=1 // pred_check_branch
      %153 = sbr.rel (0) target = $region73
    $region72: #{tpu_custom_call.1} parent=1 // pred_region
      _
    $region73: #{tpu_custom_call.1} parent=1 // pred_fallthru
      _
    // Predicated region
    $region74: #{tpu_custom_call.1} parent=1 // pred_check
      _
    $region75: #{tpu_custom_call.1} parent=1 // pred_check_branch
      %155 = sbr.rel (0) target = $region77
    $region76: #{tpu_custom_call.1} parent=1 // pred_region
      _
    $region77: #{tpu_custom_call.1} parent=1 // pred_fallthru
      _
    // Predicated region
    $region78: #{tpu_custom_call.1} parent=1 // pred_check
      _
    $region79: #{tpu_custom_call.1} parent=1 // pred_check_branch
      %157 = sbr.rel (0) target = $region81
    $region80: #{tpu_custom_call.1} parent=1 // pred_region
      %158 = dma.done [#allocation4], 768
    $region81: #{tpu_custom_call.1} parent=1 // pred_fallthru
      _
    // Predicated region
    $region82: #{tpu_custom_call.1} parent=1 // pred_check
      _
    $region83: #{tpu_custom_call.1} parent=1 // pred_check_branch
      %160 = sbr.rel (0) target = $region85
    $region84: #{tpu_custom_call.1} parent=1 // pred_region
      %161 = dma.done [#allocation7], 12288
    $region85: #{tpu_custom_call.1} parent=1 // pred_fallthru
      _
    // Predicated region
    $region86: #{tpu_custom_call.1} parent=1 // pred_check
      _
    $region87: #{tpu_custom_call.1} parent=1 // pred_check_branch
      %163 = sbr.rel (0) target = $region89
    $region88: #{tpu_custom_call.1} parent=1 // pred_region
      %164 = dma.done [#allocation7], 16
    $region89: #{tpu_custom_call.1} parent=1 // pred_fallthru
      _
    // Predicated region
    $region90: #{tpu_custom_call.1} parent=1 // pred_check
      _
    $region91: #{tpu_custom_call.1} parent=1 // pred_check_branch
      %166 = sbr.rel (0) target = $region93
    $region92: #{tpu_custom_call.1} parent=1 // pred_region
      %167 = dma.done [#allocation10], 1024
    $region93: #{tpu_custom_call.1} parent=1 // pred_fallthru
      _
    // Predicated region
    $region94: #{tpu_custom_call.1} parent=1 // pred_check
      _
    $region95: #{tpu_custom_call.1} parent=1 // pred_check_branch
      %169 = sbr.rel (0) target = $region97
    $region96: #{tpu_custom_call.1} parent=1 // pred_region
      %170 = dma.done [#allocation10], 8192
    $region97: #{tpu_custom_call.1} parent=1 // pred_fallthru
      _
    // Predicated region
    $region98: #{tpu_custom_call.1} parent=1 // pred_check
      _
    $region99: #{tpu_custom_call.1} parent=1 // pred_check_branch
      %172 = sbr.rel (0) target = $region101
    $region100: #{tpu_custom_call.1} parent=1 // pred_region
      %173 = dma.done [#allocation13], 8192
    $region101: #{tpu_custom_call.1} parent=1 // pred_fallthru
      _
    // Predicated region
    $region102: #{tpu_custom_call.1} parent=1 // pred_check
      _
    $region103: #{tpu_custom_call.1} parent=1 // pred_check_branch
      %175 = sbr.rel (0) target = $region105
    $region104: #{tpu_custom_call.1} parent=1 // pred_region
      %176 = dma.done [#allocation13], 8192
    $region105: #{tpu_custom_call.1} parent=1 // pred_fallthru
      _
    // Predicated region
    $region106: #{tpu_custom_call.1} parent=1 // pred_check
      _
    $region107: #{tpu_custom_call.1} parent=1 // pred_check_branch
      %178 = sbr.rel (0) target = $region109
    $region108: #{tpu_custom_call.1} parent=1 // pred_region
      %179 = dma.done [#allocation16], 8192
    $region109: #{tpu_custom_call.1} parent=1 // pred_fallthru
      _
    // Predicated region
    $region110: #{tpu_custom_call.1} parent=1 // pred_check
      _
    $region111: #{tpu_custom_call.1} parent=1 // pred_check_branch
      %181 = sbr.rel (0) target = $region113
    $region112: #{tpu_custom_call.1} parent=1 // pred_region
      %182 = dma.done [#allocation16], 8192
    $region113: #{tpu_custom_call.1} parent=1 // pred_fallthru
      _
    %v183 = vld [vmem:[#allocation3] sm:$0xff]
    %v184 = vld [vmem:[#allocation3 + $0x8] sm:$0xff]
    %v185 = vld [vmem:[#allocation3 + $0x10] sm:$0xff]
    %v186 = vld [vmem:[#allocation3 + $0x18] sm:$0xff]
    %v187 = vld [vmem:[#allocation3 + $0x20] sm:$0xff]
    %v188 = vld [vmem:[#allocation3 + $0x28] sm:$0xff]
    %v189 = vld [vmem:[#allocation6] sm:$0xff]
    %v190 = vld [vmem:[#allocation6 + $0x8] sm:$0xff]
    %v191 = vld [vmem:[#allocation6 + $0x10] sm:$0xff]
    %v192 = vld [vmem:[#allocation6 + $0x18] sm:$0xff]
    %v193 = vld [vmem:[#allocation6 + $0x20] sm:$0xff]
    %v194 = vld [vmem:[#allocation6 + $0x28] sm:$0xff]
    %v195 = vld [vmem:[#allocation6 + $0x30] sm:$0xff]
    %v196 = vld [vmem:[#allocation6 + $0x38] sm:$0xff]
    %v197 = vld [vmem:[#allocation6 + $0x40] sm:$0xff]
    %v198 = vld [vmem:[#allocation6 + $0x48] sm:$0xff]
    %v199 = vld [vmem:[#allocation6 + $0x50] sm:$0xff]
    %v200 = vld [vmem:[#allocation6 + $0x58] sm:$0xff]
    %v201 = vld [vmem:[#allocation6 + $0x60] sm:$0xff]
    %v202 = vld [vmem:[#allocation6 + $0x68] sm:$0xff]
    %v203 = vld [vmem:[#allocation6 + $0x70] sm:$0xff]
    %v204 = vld [vmem:[#allocation6 + $0x78] sm:$0xff]
    %v205 = vld [vmem:[#allocation6 + $0x80] sm:$0xff]
    %v206 = vld [vmem:[#allocation6 + $0x88] sm:$0xff]
    %v207 = vld [vmem:[#allocation6 + $0x90] sm:$0xff]
    %v208 = vld [vmem:[#allocation6 + $0x98] sm:$0xff]
    %v209 = vld [vmem:[#allocation6 + $0xa0] sm:$0xff]
    %v210 = vld [vmem:[#allocation6 + $0xa8] sm:$0xff]
    %v211 = vld [vmem:[#allocation6 + $0xb0] sm:$0xff]
    %v212 = vld [vmem:[#allocation6 + $0xb8] sm:$0xff]
    %v213 = vld [vmem:[#allocation6 + $0xc0] sm:$0xff]
    %v214 = vld [vmem:[#allocation6 + $0xc8] sm:$0xff]
    %v215 = vld [vmem:[#allocation6 + $0xd0] sm:$0xff]
    %v216 = vld [vmem:[#allocation6 + $0xd8] sm:$0xff]
    %v217 = vld [vmem:[#allocation6 + $0xe0] sm:$0xff]
    %v218 = vld [vmem:[#allocation6 + $0xe8] sm:$0xff]
    %v219 = vld [vmem:[#allocation6 + $0xf0] sm:$0xff]
    %v220 = vld [vmem:[#allocation6 + $0xf8] sm:$0xff]
    %v221 = vld [vmem:[#allocation6 + $0x100] sm:$0xff]
    %v222 = vld [vmem:[#allocation6 + $0x108] sm:$0xff]
    %v223 = vld [vmem:[#allocation6 + $0x110] sm:$0xff]
    %v224 = vld [vmem:[#allocation6 + $0x118] sm:$0xff]
    %v225 = vld [vmem:[#allocation6 + $0x120] sm:$0xff]
    %v226 = vld [vmem:[#allocation6 + $0x128] sm:$0xff]
    %v227 = vld [vmem:[#allocation6 + $0x130] sm:$0xff]
    %v228 = vld [vmem:[#allocation6 + $0x138] sm:$0xff]
    %v229 = vld [vmem:[#allocation6 + $0x140] sm:$0xff]
    %v230 = vld [vmem:[#allocation6 + $0x148] sm:$0xff]
    %v231 = vld [vmem:[#allocation6 + $0x150] sm:$0xff]
    %v232 = vld [vmem:[#allocation6 + $0x158] sm:$0xff]
    %v233 = vld [vmem:[#allocation6 + $0x160] sm:$0xff]
    %v234 = vld [vmem:[#allocation6 + $0x168] sm:$0xff]
    %v235 = vld [vmem:[#allocation6 + $0x170] sm:$0xff]
    %v236 = vld [vmem:[#allocation6 + $0x178] sm:$0xff]
    %v237 = vld [vmem:[#allocation6 + $0x180] sm:$0xff]
    %v238 = vld [vmem:[#allocation6 + $0x188] sm:$0xff]
    %v239 = vld [vmem:[#allocation6 + $0x190] sm:$0xff]
    %v240 = vld [vmem:[#allocation6 + $0x198] sm:$0xff]
    %v241 = vld [vmem:[#allocation6 + $0x1a0] sm:$0xff]
    %v242 = vld [vmem:[#allocation6 + $0x1a8] sm:$0xff]
    %v243 = vld [vmem:[#allocation6 + $0x1b0] sm:$0xff]
    %v244 = vld [vmem:[#allocation6 + $0x1b8] sm:$0xff]
    %v245 = vld [vmem:[#allocation6 + $0x1c0] sm:$0xff]
    %v246 = vld [vmem:[#allocation6 + $0x1c8] sm:$0xff]
    %v247 = vld [vmem:[#allocation6 + $0x1d0] sm:$0xff]
    %v248 = vld [vmem:[#allocation6 + $0x1d8] sm:$0xff]
    %v249 = vld [vmem:[#allocation6 + $0x1e0] sm:$0xff]
    %v250 = vld [vmem:[#allocation6 + $0x1e8] sm:$0xff]
    %v251 = vld [vmem:[#allocation6 + $0x1f0] sm:$0xff]
    %v252 = vld [vmem:[#allocation6 + $0x1f8] sm:$0xff]
    %v253 = vld [vmem:[#allocation6 + $0x200] sm:$0xff]
    %v254 = vld [vmem:[#allocation6 + $0x208] sm:$0xff]
    %v255 = vld [vmem:[#allocation6 + $0x210] sm:$0xff]
    %v256 = vld [vmem:[#allocation6 + $0x218] sm:$0xff]
    %v257 = vld [vmem:[#allocation6 + $0x220] sm:$0xff]
    %v258 = vld [vmem:[#allocation6 + $0x228] sm:$0xff]
    %v259 = vld [vmem:[#allocation6 + $0x230] sm:$0xff]
    %v260 = vld [vmem:[#allocation6 + $0x238] sm:$0xff]
    %v261 = vld [vmem:[#allocation6 + $0x240] sm:$0xff]
    %v262 = vld [vmem:[#allocation6 + $0x248] sm:$0xff]
    %v263 = vld [vmem:[#allocation6 + $0x250] sm:$0xff]
    %v264 = vld [vmem:[#allocation6 + $0x258] sm:$0xff]
    %v265 = vld [vmem:[#allocation6 + $0x260] sm:$0xff]
    %v266 = vld [vmem:[#allocation6 + $0x268] sm:$0xff]
    %v267 = vld [vmem:[#allocation6 + $0x270] sm:$0xff]
    %v268 = vld [vmem:[#allocation6 + $0x278] sm:$0xff]
    %v269 = vld [vmem:[#allocation6 + $0x280] sm:$0xff]
    %v270 = vld [vmem:[#allocation6 + $0x288] sm:$0xff]
    %v271 = vld [vmem:[#allocation6 + $0x290] sm:$0xff]
    %v272 = vld [vmem:[#allocation6 + $0x298] sm:$0xff]
    %v273 = vld [vmem:[#allocation6 + $0x2a0] sm:$0xff]
    %v274 = vld [vmem:[#allocation6 + $0x2a8] sm:$0xff]
    %v275 = vld [vmem:[#allocation6 + $0x2b0] sm:$0xff]
    %v276 = vld [vmem:[#allocation6 + $0x2b8] sm:$0xff]
    %v277 = vld [vmem:[#allocation6 + $0x2c0] sm:$0xff]
    %v278 = vld [vmem:[#allocation6 + $0x2c8] sm:$0xff]
    %v279 = vld [vmem:[#allocation6 + $0x2d0] sm:$0xff]
    %v280 = vld [vmem:[#allocation6 + $0x2d8] sm:$0xff]
    %v281 = vld [vmem:[#allocation6 + $0x2e0] sm:$0xff]
    %v282 = vld [vmem:[#allocation6 + $0x2e8] sm:$0xff]
    %v283 = vld [vmem:[#allocation6 + $0x2f0] sm:$0xff]
    %v284 = vld [vmem:[#allocation6 + $0x2f8] sm:$0xff]
    %v285 = vld [vmem:[#allocation8] sm:$0x1]
    %v287 = vlaneseq
    %v288 = vshrl.u32 %v287, 7
    %v289 = vsub.s32 0, %v288
    %v290 = vrot.slane %v285, %v289
    %292 = vmatprep.subr.mxu0 0.0
    %293 = vmatpush1.msra.mxu0 %v204
    %294 = vmatprep.subr.mxu0 0.0
    %295 = vmatpush1.msra.mxu0 %v203
    %296 = vmatprep.subr.mxu0 0.0
    %297 = vmatpush1.msra.mxu0 %v202
    %298 = vmatprep.subr.mxu0 0.0
    %299 = vmatpush1.msra.mxu0 %v201
    %300 = vmatprep.subr.mxu0 0.0
    %301 = vmatpush1.msra.mxu0 %v200
    %302 = vmatprep.subr.mxu0 0.0
    %303 = vmatpush1.msra.mxu0 %v199
    %304 = vmatprep.subr.mxu0 0.0
    %305 = vmatpush1.msra.mxu0 %v198
    %306 = vmatprep.subr.mxu0 0.0
    %307 = vmatpush1.msra.mxu0 %v197
    %308 = vmatprep.subr.mxu0 0.0
    %309 = vmatpush1.msra.mxu0 %v196
    %310 = vmatprep.subr.mxu0 0.0
    %311 = vmatpush1.msra.mxu0 %v195
    %312 = vmatprep.subr.mxu0 0.0
    %313 = vmatpush1.msra.mxu0 %v194
    %314 = vmatprep.subr.mxu0 0.0
    %315 = vmatpush1.msra.mxu0 %v193
    %316 = vmatprep.subr.mxu0 0.0
    %317 = vmatpush1.msra.mxu0 %v192
    %318 = vmatprep.subr.mxu0 0.0
    %319 = vmatpush1.msra.mxu0 %v191
    %320 = vmatprep.subr.mxu0 0.0
    %321 = vmatpush1.msra.mxu0 %v190
    %322 = vmatprep.subr.mxu0 0.0
    %323 = vmatpush1.msra.mxu0 %v189
    %324 = vmatprep.subr.mxu0 0.0
    %325 = vmatpush2.msra.mxu0 %v220
    %326 = vmatprep.subr.mxu0 0.0
    %327 = vmatpush2.msra.mxu0 %v219
    %328 = vmatprep.subr.mxu0 0.0
    %329 = vmatpush2.msra.mxu0 %v218
    %330 = vmatprep.subr.mxu0 0.0
    %331 = vmatpush2.msra.mxu0 %v217
    %332 = vmatprep.subr.mxu0 0.0
    %333 = vmatpush2.msra.mxu0 %v216
    %334 = vmatprep.subr.mxu0 0.0
    %335 = vmatpush2.msra.mxu0 %v215
    %336 = vmatprep.subr.mxu0 0.0
    %337 = vmatpush2.msra.mxu0 %v214
    %338 = vmatprep.subr.mxu0 0.0
    %339 = vmatpush2.msra.mxu0 %v213
    %340 = vmatprep.subr.mxu0 0.0
    %341 = vmatpush2.msra.mxu0 %v212
    %342 = vmatprep.subr.mxu0 0.0
    %343 = vmatpush2.msra.mxu0 %v211
    %344 = vmatprep.subr.mxu0 0.0
    %345 = vmatpush2.msra.mxu0 %v210
    %346 = vmatprep.subr.mxu0 0.0
    %347 = vmatpush2.msra.mxu0 %v209
    %348 = vmatprep.subr.mxu0 0.0
    %349 = vmatpush2.msra.mxu0 %v208
    %350 = vmatprep.subr.mxu0 0.0
    %351 = vmatpush2.msra.mxu0 %v207
    %352 = vmatprep.subr.mxu0 0.0
    %353 = vmatpush2.msra.mxu0 %v206
    %354 = vmatprep.subr.mxu0 0.0
    %355 = vmatpush2.msra.mxu0 %v205
    %356 = vmatprep.mubr.f32.mxu0 %v184
    %357 = vmatmul.mubr.f32.gmra.mxu0 %v183
    %v358 = vpop.f32.mrf.mxu0
    %v359 = vadd.f32 %v290, %v358
    %v360 = vpop.f32.mrf.mxu0
    %361 = vdwg.mxu0
    %362 = vmatprep.subr.mxu0 0.0
    %363 = vmatpush1.msra.mxu0 %v236
    %364 = vmatprep.subr.mxu0 0.0
    %365 = vmatpush1.msra.mxu0 %v235
    %366 = vmatprep.subr.mxu0 0.0
    %367 = vmatpush1.msra.mxu0 %v234
    %368 = vmatprep.subr.mxu0 0.0
    %369 = vmatpush1.msra.mxu0 %v233
    %370 = vmatprep.subr.mxu0 0.0
    %371 = vmatpush1.msra.mxu0 %v232
    %372 = vmatprep.subr.mxu0 0.0
    %373 = vmatpush1.msra.mxu0 %v231
    %374 = vmatprep.subr.mxu0 0.0
    %375 = vmatpush1.msra.mxu0 %v230
    %376 = vmatprep.subr.mxu0 0.0
    %377 = vmatpush1.msra.mxu0 %v229
    %378 = vmatprep.subr.mxu0 0.0
    %379 = vmatpush1.msra.mxu0 %v228
    %380 = vmatprep.subr.mxu0 0.0
    %381 = vmatpush1.msra.mxu0 %v227
    %382 = vmatprep.subr.mxu0 0.0
    %383 = vmatpush1.msra.mxu0 %v226
    %384 = vmatprep.subr.mxu0 0.0
    %385 = vmatpush1.msra.mxu0 %v225
    %386 = vmatprep.subr.mxu0 0.0
    %387 = vmatpush1.msra.mxu0 %v224
    %388 = vmatprep.subr.mxu0 0.0
    %389 = vmatpush1.msra.mxu0 %v223
    %390 = vmatprep.subr.mxu0 0.0
    %391 = vmatpush1.msra.mxu0 %v222
    %392 = vmatprep.subr.mxu0 0.0
    %393 = vmatpush1.msra.mxu0 %v221
    %394 = vmatprep.subr.mxu0 0.0
    %395 = vmatpush2.msra.mxu0 %v252
    %396 = vmatprep.subr.mxu0 0.0
    %397 = vmatpush2.msra.mxu0 %v251
    %398 = vmatprep.subr.mxu0 0.0
    %399 = vmatpush2.msra.mxu0 %v250
    %400 = vmatprep.subr.mxu0 0.0
    %401 = vmatpush2.msra.mxu0 %v249
    %402 = vmatprep.subr.mxu0 0.0
    %403 = vmatpush2.msra.mxu0 %v248
    %404 = vmatprep.subr.mxu0 0.0
    %405 = vmatpush2.msra.mxu0 %v247
    %406 = vmatprep.subr.mxu0 0.0
    %407 = vmatpush2.msra.mxu0 %v246
    %408 = vmatprep.subr.mxu0 0.0
    %409 = vmatpush2.msra.mxu0 %v245
    %410 = vmatprep.subr.mxu0 0.0
    %411 = vmatpush2.msra.mxu0 %v244
    %412 = vmatprep.subr.mxu0 0.0
    %413 = vmatpush2.msra.mxu0 %v243
    %414 = vmatprep.subr.mxu0 0.0
    %415 = vmatpush2.msra.mxu0 %v242
    %416 = vmatprep.subr.mxu0 0.0
    %417 = vmatpush2.msra.mxu0 %v241
    %418 = vmatprep.subr.mxu0 0.0
    %419 = vmatpush2.msra.mxu0 %v240
    %420 = vmatprep.subr.mxu0 0.0
    %421 = vmatpush2.msra.mxu0 %v239
    %422 = vmatprep.subr.mxu0 0.0
    %423 = vmatpush2.msra.mxu0 %v238
    %424 = vmatprep.subr.mxu0 0.0
    %425 = vmatpush2.msra.mxu0 %v237
    %426 = vmatprep.mubr.f32.mxu0 %v186
    %427 = vmatmul.mubr.f32.gmra.mxu0 %v185
    %v428 = vpop.f32.mrf.mxu0
    %v429 = vadd.f32 %v359, %v428
    %v430 = vpop.f32.mrf.mxu0
    %431 = vdwg.mxu0
    %432 = vmatprep.subr.mxu0 0.0
    %433 = vmatpush1.msra.mxu0 %v268
    %434 = vmatprep.subr.mxu0 0.0
    %435 = vmatpush1.msra.mxu0 %v267
    %436 = vmatprep.subr.mxu0 0.0
    %437 = vmatpush1.msra.mxu0 %v266
    %438 = vmatprep.subr.mxu0 0.0
    %439 = vmatpush1.msra.mxu0 %v265
    %440 = vmatprep.subr.mxu0 0.0
    %441 = vmatpush1.msra.mxu0 %v264
    %442 = vmatprep.subr.mxu0 0.0
    %443 = vmatpush1.msra.mxu0 %v263
    %444 = vmatprep.subr.mxu0 0.0
    %445 = vmatpush1.msra.mxu0 %v262
    %446 = vmatprep.subr.mxu0 0.0
    %447 = vmatpush1.msra.mxu0 %v261
    %448 = vmatprep.subr.mxu0 0.0
    %449 = vmatpush1.msra.mxu0 %v260
    %450 = vmatprep.subr.mxu0 0.0
    %451 = vmatpush1.msra.mxu0 %v259
    %452 = vmatprep.subr.mxu0 0.0
    %453 = vmatpush1.msra.mxu0 %v258
    %454 = vmatprep.subr.mxu0 0.0
    %455 = vmatpush1.msra.mxu0 %v257
    %456 = vmatprep.subr.mxu0 0.0
    %457 = vmatpush1.msra.mxu0 %v256
    %458 = vmatprep.subr.mxu0 0.0
    %459 = vmatpush1.msra.mxu0 %v255
    %460 = vmatprep.subr.mxu0 0.0
    %461 = vmatpush1.msra.mxu0 %v254
    %462 = vmatprep.subr.mxu0 0.0
    %463 = vmatpush1.msra.mxu0 %v253
    %464 = vmatprep.subr.mxu0 0.0
    %465 = vmatpush2.msra.mxu0 %v284
    %466 = vmatprep.subr.mxu0 0.0
    %467 = vmatpush2.msra.mxu0 %v283
    %468 = vmatprep.subr.mxu0 0.0
    %469 = vmatpush2.msra.mxu0 %v282
    %470 = vmatprep.subr.mxu0 0.0
    %471 = vmatpush2.msra.mxu0 %v281
    %472 = vmatprep.subr.mxu0 0.0
    %473 = vmatpush2.msra.mxu0 %v280
    %474 = vmatprep.subr.mxu0 0.0
    %475 = vmatpush2.msra.mxu0 %v279
    %476 = vmatprep.subr.mxu0 0.0
    %477 = vmatpush2.msra.mxu0 %v278
    %478 = vmatprep.subr.mxu0 0.0
    %479 = vmatpush2.msra.mxu0 %v277
    %480 = vmatprep.subr.mxu0 0.0
    %481 = vmatpush2.msra.mxu0 %v276
    %482 = vmatprep.subr.mxu0 0.0
    %483 = vmatpush2.msra.mxu0 %v275
    %484 = vmatprep.subr.mxu0 0.0
    %485 = vmatpush2.msra.mxu0 %v274
    %486 = vmatprep.subr.mxu0 0.0
    %487 = vmatpush2.msra.mxu0 %v273
    %488 = vmatprep.subr.mxu0 0.0
    %489 = vmatpush2.msra.mxu0 %v272
    %490 = vmatprep.subr.mxu0 0.0
    %491 = vmatpush2.msra.mxu0 %v271
    %492 = vmatprep.subr.mxu0 0.0
    %493 = vmatpush2.msra.mxu0 %v270
    %494 = vmatprep.subr.mxu0 0.0
    %495 = vmatpush2.msra.mxu0 %v269
    %496 = vmatprep.mubr.f32.mxu0 %v188
    %497 = vmatmul.mubr.f32.gmra.mxu0 %v187
    %v498 = vpop.f32.mrf.mxu0
    %v499 = vadd.f32 %v429, %v498
    %v500 = vpop.f32.mrf.mxu0
    %501 = vdwg.mxu0
    %v502 = vld [vmem:[%s1] sm:$0xff]
    %v503 = vld [vmem:[#allocation9] sm:$0xff]
    %v504 = vld [vmem:[#allocation9 + $0x8] sm:$0xff]
    %v505 = vld [vmem:[#allocation9 + $0x10] sm:$0xff]
    %v506 = vld [vmem:[#allocation9 + $0x18] sm:$0xff]
    %v507 = vld [vmem:[#allocation9 + $0x20] sm:$0x1]
    %v508 = vld [vmem:[#allocation9 + $0x28] sm:$0x1]
    %v509 = vld [vmem:[#allocation9 + $0x30] sm:$0x1]
    %v510 = vld [vmem:[#allocation9 + $0x38] sm:$0x1]
    %v511 = vld [vmem:[#allocation11] sm:$0xff]
    %v512 = vld [vmem:[#allocation11 + $0x8] sm:$0xff]
    %v513 = vld [vmem:[#allocation11 + $0x10] sm:$0xff]
    %v514 = vld [vmem:[#allocation11 + $0x18] sm:$0xff]
    %v515 = vld [vmem:[#allocation11 + $0x20] sm:$0xff]
    %v516 = vld [vmem:[#allocation11 + $0x28] sm:$0xff]
    %v517 = vld [vmem:[#allocation11 + $0x30] sm:$0xff]
    %v518 = vld [vmem:[#allocation11 + $0x38] sm:$0xff]
    %v519 = vld [vmem:[#allocation11 + $0x40] sm:$0xff]
    %v520 = vld [vmem:[#allocation11 + $0x48] sm:$0xff]
    %v521 = vld [vmem:[#allocation11 + $0x50] sm:$0xff]
    %v522 = vld [vmem:[#allocation11 + $0x58] sm:$0xff]
    %v523 = vld [vmem:[#allocation11 + $0x60] sm:$0xff]
    %v524 = vld [vmem:[#allocation11 + $0x68] sm:$0xff]
    %v525 = vld [vmem:[#allocation11 + $0x70] sm:$0xff]
    %v526 = vld [vmem:[#allocation11 + $0x78] sm:$0xff]
    %v527 = vld [vmem:[#allocation11 + $0x80] sm:$0xff]
    %v528 = vld [vmem:[#allocation11 + $0x88] sm:$0xff]
    %v529 = vld [vmem:[#allocation11 + $0x90] sm:$0xff]
    %v530 = vld [vmem:[#allocation11 + $0x98] sm:$0xff]
    %v531 = vld [vmem:[#allocation11 + $0xa0] sm:$0xff]
    %v532 = vld [vmem:[#allocation11 + $0xa8] sm:$0xff]
    %v533 = vld [vmem:[#allocation11 + $0xb0] sm:$0xff]
    %v534 = vld [vmem:[#allocation11 + $0xb8] sm:$0xff]
    %v535 = vld [vmem:[#allocation11 + $0xc0] sm:$0xff]
    %v536 = vld [vmem:[#allocation11 + $0xc8] sm:$0xff]
    %v537 = vld [vmem:[#allocation11 + $0xd0] sm:$0xff]
    %v538 = vld [vmem:[#allocation11 + $0xd8] sm:$0xff]
    %v539 = vld [vmem:[#allocation11 + $0xe0] sm:$0xff]
    %v540 = vld [vmem:[#allocation11 + $0xe8] sm:$0xff]
    %v541 = vld [vmem:[#allocation11 + $0xf0] sm:$0xff]
    %v542 = vld [vmem:[#allocation11 + $0xf8] sm:$0xff]
    %v543 = vld [vmem:[#allocation11 + $0x100] sm:$0xff]
    %v544 = vld [vmem:[#allocation11 + $0x108] sm:$0xff]
    %v545 = vld [vmem:[#allocation11 + $0x110] sm:$0xff]
    %v546 = vld [vmem:[#allocation11 + $0x118] sm:$0xff]
    %v547 = vld [vmem:[#allocation11 + $0x120] sm:$0xff]
    %v548 = vld [vmem:[#allocation11 + $0x128] sm:$0xff]
    %v549 = vld [vmem:[#allocation11 + $0x130] sm:$0xff]
    %v550 = vld [vmem:[#allocation11 + $0x138] sm:$0xff]
    %v551 = vld [vmem:[#allocation11 + $0x140] sm:$0xff]
    %v552 = vld [vmem:[#allocation11 + $0x148] sm:$0xff]
    %v553 = vld [vmem:[#allocation11 + $0x150] sm:$0xff]
    %v554 = vld [vmem:[#allocation11 + $0x158] sm:$0xff]
    %v555 = vld [vmem:[#allocation11 + $0x160] sm:$0xff]
    %v556 = vld [vmem:[#allocation11 + $0x168] sm:$0xff]
    %v557 = vld [vmem:[#allocation11 + $0x170] sm:$0xff]
    %v558 = vld [vmem:[#allocation11 + $0x178] sm:$0xff]
    %v559 = vld [vmem:[#allocation11 + $0x180] sm:$0xff]
    %v560 = vld [vmem:[#allocation11 + $0x188] sm:$0xff]
    %v561 = vld [vmem:[#allocation11 + $0x190] sm:$0xff]
    %v562 = vld [vmem:[#allocation11 + $0x198] sm:$0xff]
    %v563 = vld [vmem:[#allocation11 + $0x1a0] sm:$0xff]
    %v564 = vld [vmem:[#allocation11 + $0x1a8] sm:$0xff]
    %v565 = vld [vmem:[#allocation11 + $0x1b0] sm:$0xff]
    %v566 = vld [vmem:[#allocation11 + $0x1b8] sm:$0xff]
    %v567 = vld [vmem:[#allocation11 + $0x1c0] sm:$0xff]
    %v568 = vld [vmem:[#allocation11 + $0x1c8] sm:$0xff]
    %v569 = vld [vmem:[#allocation11 + $0x1d0] sm:$0xff]
    %v570 = vld [vmem:[#allocation11 + $0x1d8] sm:$0xff]
    %v571 = vld [vmem:[#allocation11 + $0x1e0] sm:$0xff]
    %v572 = vld [vmem:[#allocation11 + $0x1e8] sm:$0xff]
    %v573 = vld [vmem:[#allocation11 + $0x1f0] sm:$0xff]
    %v574 = vld [vmem:[#allocation11 + $0x1f8] sm:$0xff]
    %575 = vmatprep.subr.mxu0 %v572
    %576 = vmatpush1.msra.mxu0 %v571
    %577 = vmatprep.subr.mxu0 %v568
    %578 = vmatpush1.msra.mxu0 %v567
    %579 = vmatprep.subr.mxu0 %v564
    %580 = vmatpush1.msra.mxu0 %v563
    %581 = vmatprep.subr.mxu0 %v560
    %582 = vmatpush1.msra.mxu0 %v559
    %583 = vmatprep.subr.mxu0 %v556
    %584 = vmatpush1.msra.mxu0 %v555
    %585 = vmatprep.subr.mxu0 %v552
    %586 = vmatpush1.msra.mxu0 %v551
    %587 = vmatprep.subr.mxu0 %v548
    %588 = vmatpush1.msra.mxu0 %v547
    %589 = vmatprep.subr.mxu0 %v544
    %590 = vmatpush1.msra.mxu0 %v543
    %591 = vmatprep.subr.mxu0 %v540
    %592 = vmatpush1.msra.mxu0 %v539
    %593 = vmatprep.subr.mxu0 %v536
    %594 = vmatpush1.msra.mxu0 %v535
    %595 = vmatprep.subr.mxu0 %v532
    %596 = vmatpush1.msra.mxu0 %v531
    %597 = vmatprep.subr.mxu0 %v528
    %598 = vmatpush1.msra.mxu0 %v527
    %599 = vmatprep.subr.mxu0 %v524
    %600 = vmatpush1.msra.mxu0 %v523
    %601 = vmatprep.subr.mxu0 %v520
    %602 = vmatpush1.msra.mxu0 %v519
    %603 = vmatprep.subr.mxu0 %v516
    %604 = vmatpush1.msra.mxu0 %v515
    %605 = vmatprep.subr.mxu0 %v512
    %606 = vmatpush1.msra.mxu0 %v511
    %607 = vmatprep.subr.mxu0 0.0
    %608 = vmatpush2.msra.mxu0 0.0
    %609 = vmatprep.subr.mxu0 0.0
    %610 = vmatpush2.msra.mxu0 0.0
    %611 = vmatprep.subr.mxu0 0.0
    %612 = vmatpush2.msra.mxu0 0.0
    %613 = vmatprep.subr.mxu0 0.0
    %614 = vmatpush2.msra.mxu0 0.0
    %615 = vmatprep.subr.mxu0 0.0
    %616 = vmatpush2.msra.mxu0 0.0
    %617 = vmatprep.subr.mxu0 0.0
    %618 = vmatpush2.msra.mxu0 0.0
    %619 = vmatprep.subr.mxu0 0.0
    %620 = vmatpush2.msra.mxu0 0.0
    %621 = vmatprep.subr.mxu0 0.0
    %622 = vmatpush2.msra.mxu0 0.0
    %623 = vmatprep.subr.mxu0 0.0
    %624 = vmatpush2.msra.mxu0 0.0
    %625 = vmatprep.subr.mxu0 0.0
    %626 = vmatpush2.msra.mxu0 0.0
    %627 = vmatprep.subr.mxu0 0.0
    %628 = vmatpush2.msra.mxu0 0.0
    %629 = vmatprep.subr.mxu0 0.0
    %630 = vmatpush2.msra.mxu0 0.0
    %631 = vmatprep.subr.mxu0 0.0
    %632 = vmatpush2.msra.mxu0 0.0
    %633 = vmatprep.subr.mxu0 0.0
    %634 = vmatpush2.msra.mxu0 0.0
    %635 = vmatprep.subr.mxu0 0.0
    %636 = vmatpush2.msra.mxu0 0.0
    %637 = vmatprep.subr.mxu0 0.0
    %638 = vmatpush2.msra.mxu0 0.0
    %639 = vmatprep.mubr.f32.mxu0 0.0
    %640 = vmatmul.mubr.f32.gmra.mxu0 %v499
    %v641 = vpop.f32.mrf.mxu0
    %v642 = vadd.f32 0.0, %v641
    %v643 = vpop.f32.mrf.mxu0
    %v644 = vadd.f32 0.0, %v643
    %645 = vdwg.mxu0
    %646 = vmatprep.subr.mxu0 %v574
    %647 = vmatpush1.msra.mxu0 %v573
    %648 = vmatprep.subr.mxu0 %v570
    %649 = vmatpush1.msra.mxu0 %v569
    %650 = vmatprep.subr.mxu0 %v566
    %651 = vmatpush1.msra.mxu0 %v565
    %652 = vmatprep.subr.mxu0 %v562
    %653 = vmatpush1.msra.mxu0 %v561
    %654 = vmatprep.subr.mxu0 %v558
    %655 = vmatpush1.msra.mxu0 %v557
    %656 = vmatprep.subr.mxu0 %v554
    %657 = vmatpush1.msra.mxu0 %v553
    %658 = vmatprep.subr.mxu0 %v550
    %659 = vmatpush1.msra.mxu0 %v549
    %660 = vmatprep.subr.mxu0 %v546
    %661 = vmatpush1.msra.mxu0 %v545
    %662 = vmatprep.subr.mxu0 %v542
    %663 = vmatpush1.msra.mxu0 %v541
    %664 = vmatprep.subr.mxu0 %v538
    %665 = vmatpush1.msra.mxu0 %v537
    %666 = vmatprep.subr.mxu0 %v534
    %667 = vmatpush1.msra.mxu0 %v533
    %668 = vmatprep.subr.mxu0 %v530
    %669 = vmatpush1.msra.mxu0 %v529
    %670 = vmatprep.subr.mxu0 %v526
    %671 = vmatpush1.msra.mxu0 %v525
    %672 = vmatprep.subr.mxu0 %v522
    %673 = vmatpush1.msra.mxu0 %v521
    %674 = vmatprep.subr.mxu0 %v518
    %675 = vmatpush1.msra.mxu0 %v517
    %676 = vmatprep.subr.mxu0 %v514
    %677 = vmatpush1.msra.mxu0 %v513
    %678 = vmatprep.subr.mxu0 0.0
    %679 = vmatpush2.msra.mxu0 0.0
    %680 = vmatprep.subr.mxu0 0.0
    %681 = vmatpush2.msra.mxu0 0.0
    %682 = vmatprep.subr.mxu0 0.0
    %683 = vmatpush2.msra.mxu0 0.0
    %684 = vmatprep.subr.mxu0 0.0
    %685 = vmatpush2.msra.mxu0 0.0
    %686 = vmatprep.subr.mxu0 0.0
    %687 = vmatpush2.msra.mxu0 0.0
    %688 = vmatprep.subr.mxu0 0.0
    %689 = vmatpush2.msra.mxu0 0.0
    %690 = vmatprep.subr.mxu0 0.0
    %691 = vmatpush2.msra.mxu0 0.0
    %692 = vmatprep.subr.mxu0 0.0
    %693 = vmatpush2.msra.mxu0 0.0
    %694 = vmatprep.subr.mxu0 0.0
    %695 = vmatpush2.msra.mxu0 0.0
    %696 = vmatprep.subr.mxu0 0.0
    %697 = vmatpush2.msra.mxu0 0.0
    %698 = vmatprep.subr.mxu0 0.0
    %699 = vmatpush2.msra.mxu0 0.0
    %700 = vmatprep.subr.mxu0 0.0
    %701 = vmatpush2.msra.mxu0 0.0
    %702 = vmatprep.subr.mxu0 0.0
    %703 = vmatpush2.msra.mxu0 0.0
    %704 = vmatprep.subr.mxu0 0.0
    %705 = vmatpush2.msra.mxu0 0.0
    %706 = vmatprep.subr.mxu0 0.0
    %707 = vmatpush2.msra.mxu0 0.0
    %708 = vmatprep.subr.mxu0 0.0
    %709 = vmatpush2.msra.mxu0 0.0
    %710 = vmatprep.mubr.f32.mxu0 0.0
    %711 = vmatmul.mubr.f32.gmra.mxu0 %v499
    %v712 = vpop.f32.mrf.mxu0
    %v713 = vadd.f32 0.0, %v712
    %v714 = vpop.f32.mrf.mxu0
    %v715 = vadd.f32 0.0, %v714
    %716 = vdwg.mxu0
    %vm717 = vcmask 72704
    %v719 = vsel %vm717, %v502, 0
    %vm721 = vcmask 1040384
    %v723 = vsel %vm721, %v507, 0
    %v726 = vsel %vm721, %v508, 0
    %v729 = vsel %vm721, %v509, 0
    %v732 = vsel %vm721, %v510, 0
    %734 = vmatprep.subr.mxu0 0.0
    %735 = vmatpush1.msra.mxu0 0.0
    %736 = vmatprep.subr.mxu0 0.0
    %737 = vmatpush1.msra.mxu0 0.0
    %738 = vmatprep.subr.mxu0 0.0
    %739 = vmatpush1.msra.mxu0 0.0
    %740 = vmatprep.subr.mxu0 0.0
    %741 = vmatpush1.msra.mxu0 0.0
    %742 = vmatprep.subr.mxu0 0.0
    %743 = vmatpush1.msra.mxu0 0.0
    %744 = vmatprep.subr.mxu0 0.0
    %745 = vmatpush1.msra.mxu0 0.0
    %746 = vmatprep.subr.mxu0 0.0
    %747 = vmatpush1.msra.mxu0 0.0
    %748 = vmatprep.subr.mxu0 0.0
    %749 = vmatpush1.msra.mxu0 0.0
    %750 = vmatprep.subr.mxu0 0.0
    %751 = vmatpush1.msra.mxu0 0.0
    %752 = vmatprep.subr.mxu0 0.0
    %753 = vmatpush1.msra.mxu0 0.0
    %754 = vmatprep.subr.mxu0 0.0
    %755 = vmatpush1.msra.mxu0 0.0
    %756 = vmatprep.subr.mxu0 0.0
    %757 = vmatpush1.msra.mxu0 0.0
    %758 = vmatprep.subr.mxu0 0.0
    %759 = vmatpush1.msra.mxu0 0.0
    %760 = vmatprep.subr.mxu0 0.0
    %761 = vmatpush1.msra.mxu0 0.0
    %762 = vmatprep.subr.mxu0 %v726
    %763 = vmatpush1.msra.mxu0 %v723
    %764 = vmatprep.subr.mxu0 %v504
    %765 = vmatpush1.msra.mxu0 %v503
    %766 = vmatprep.subr.mxu0 0.0
    %767 = vmatpush2.msra.mxu0 0.0
    %768 = vmatprep.subr.mxu0 0.0
    %769 = vmatpush2.msra.mxu0 0.0
    %770 = vmatprep.subr.mxu0 0.0
    %771 = vmatpush2.msra.mxu0 0.0
    %772 = vmatprep.subr.mxu0 0.0
    %773 = vmatpush2.msra.mxu0 0.0
    %774 = vmatprep.subr.mxu0 0.0
    %775 = vmatpush2.msra.mxu0 0.0
    %776 = vmatprep.subr.mxu0 0.0
    %777 = vmatpush2.msra.mxu0 0.0
    %778 = vmatprep.subr.mxu0 0.0
    %779 = vmatpush2.msra.mxu0 0.0
    %780 = vmatprep.subr.mxu0 0.0
    %781 = vmatpush2.msra.mxu0 0.0
    %782 = vmatprep.subr.mxu0 0.0
    %783 = vmatpush2.msra.mxu0 0.0
    %784 = vmatprep.subr.mxu0 0.0
    %785 = vmatpush2.msra.mxu0 0.0
    %786 = vmatprep.subr.mxu0 0.0
    %787 = vmatpush2.msra.mxu0 0.0
    %788 = vmatprep.subr.mxu0 0.0
    %789 = vmatpush2.msra.mxu0 0.0
    %790 = vmatprep.subr.mxu0 0.0
    %791 = vmatpush2.msra.mxu0 0.0
    %792 = vmatprep.subr.mxu0 0.0
    %793 = vmatpush2.msra.mxu0 0.0
    %794 = vmatprep.subr.mxu0 0.0
    %795 = vmatpush2.msra.mxu0 0.0
    %796 = vmatprep.subr.mxu0 0.0
    %797 = vmatpush2.msra.mxu0 0.0
    %798 = vmatprep.mubr.f32.mxu0 0.0
    %799 = vmatmul.mubr.f32.gmra.mxu0 %v719
    %v800 = vpop.f32.mrf.mxu0
    %v801 = vadd.f32 %v642, %v800
    %v802 = vpop.f32.mrf.mxu0
    %v803 = vadd.f32 %v644, %v802
    %804 = vdwg.mxu0
    %805 = vmatprep.subr.mxu0 0.0
    %806 = vmatpush1.msra.mxu0 0.0
    %807 = vmatprep.subr.mxu0 0.0
    %808 = vmatpush1.msra.mxu0 0.0
    %809 = vmatprep.subr.mxu0 0.0
    %810 = vmatpush1.msra.mxu0 0.0
    %811 = vmatprep.subr.mxu0 0.0
    %812 = vmatpush1.msra.mxu0 0.0
    %813 = vmatprep.subr.mxu0 0.0
    %814 = vmatpush1.msra.mxu0 0.0
    %815 = vmatprep.subr.mxu0 0.0
    %816 = vmatpush1.msra.mxu0 0.0
    %817 = vmatprep.subr.mxu0 0.0
    %818 = vmatpush1.msra.mxu0 0.0
    %819 = vmatprep.subr.mxu0 0.0
    %820 = vmatpush1.msra.mxu0 0.0
    %821 = vmatprep.subr.mxu0 0.0
    %822 = vmatpush1.msra.mxu0 0.0
    %823 = vmatprep.subr.mxu0 0.0
    %824 = vmatpush1.msra.mxu0 0.0
    %825 = vmatprep.subr.mxu0 0.0
    %826 = vmatpush1.msra.mxu0 0.0
    %827 = vmatprep.subr.mxu0 0.0
    %828 = vmatpush1.msra.mxu0 0.0
    %829 = vmatprep.subr.mxu0 0.0
    %830 = vmatpush1.msra.mxu0 0.0
    %831 = vmatprep.subr.mxu0 0.0
    %832 = vmatpush1.msra.mxu0 0.0
    %833 = vmatprep.subr.mxu0 %v732
    %834 = vmatpush1.msra.mxu0 %v729
    %835 = vmatprep.subr.mxu0 %v506
    %836 = vmatpush1.msra.mxu0 %v505
    %837 = vmatprep.subr.mxu0 0.0
    %838 = vmatpush2.msra.mxu0 0.0
    %839 = vmatprep.subr.mxu0 0.0
    %840 = vmatpush2.msra.mxu0 0.0
    %841 = vmatprep.subr.mxu0 0.0
    %842 = vmatpush2.msra.mxu0 0.0
    %843 = vmatprep.subr.mxu0 0.0
    %844 = vmatpush2.msra.mxu0 0.0
    %845 = vmatprep.subr.mxu0 0.0
    %846 = vmatpush2.msra.mxu0 0.0
    %847 = vmatprep.subr.mxu0 0.0
    %848 = vmatpush2.msra.mxu0 0.0
    %849 = vmatprep.subr.mxu0 0.0
    %850 = vmatpush2.msra.mxu0 0.0
    %851 = vmatprep.subr.mxu0 0.0
    %852 = vmatpush2.msra.mxu0 0.0
    %853 = vmatprep.subr.mxu0 0.0
    %854 = vmatpush2.msra.mxu0 0.0
    %855 = vmatprep.subr.mxu0 0.0
    %856 = vmatpush2.msra.mxu0 0.0
    %857 = vmatprep.subr.mxu0 0.0
    %858 = vmatpush2.msra.mxu0 0.0
    %859 = vmatprep.subr.mxu0 0.0
    %860 = vmatpush2.msra.mxu0 0.0
    %861 = vmatprep.subr.mxu0 0.0
    %862 = vmatpush2.msra.mxu0 0.0
    %863 = vmatprep.subr.mxu0 0.0
    %864 = vmatpush2.msra.mxu0 0.0
    %865 = vmatprep.subr.mxu0 0.0
    %866 = vmatpush2.msra.mxu0 0.0
    %867 = vmatprep.subr.mxu0 0.0
    %868 = vmatpush2.msra.mxu0 0.0
    %869 = vmatprep.mubr.f32.mxu0 0.0
    %870 = vmatmul.mubr.f32.gmra.mxu0 %v719
    %v871 = vpop.f32.mrf.mxu0
    %v872 = vadd.f32 %v713, %v871
    %v873 = vpop.f32.mrf.mxu0
    %v874 = vadd.f32 %v715, %v873
    %875 = vdwg.mxu0
    %v876 = vld [vmem:[%s10] sm:$0xf]
    %v878 = vlaneseq
    %v879 = vshrl.u32 %v878, 7
    %v880 = vsub.s32 0, %v879
    %v881 = vrot.slane %v876, %v880
    %v882 = vlaneseq
    %v883 = vshrl.u32 %v882, 7
    %v884 = vsub.s32 1, %v883
    %v885 = vrot.slane %v876, %v884
    %v886 = vlaneseq
    %v887 = vshrl.u32 %v886, 7
    %v888 = vsub.s32 2, %v887
    %v889 = vrot.slane %v876, %v888
    %v890 = vlaneseq
    %v891 = vshrl.u32 %v890, 7
    %v892 = vsub.s32 3, %v891
    %v893 = vrot.slane %v876, %v892
    %v898 = vadd.f32 %v801, %v881
    %v899 = vadd.f32 %v803, %v885
    %v900 = vadd.f32 %v872, %v889
    %v901 = vadd.f32 %v874, %v893
    %v902 = vld [vmem:[%s3] sm:$0x3]
    %v903 = vld [vmem:[#allocation12] sm:$0xff]
    %v904 = vld [vmem:[#allocation12 + $0x8] sm:$0xff]
    %v905 = vld [vmem:[#allocation12 + $0x10] sm:$0xff]
    %v906 = vld [vmem:[#allocation12 + $0x18] sm:$0xff]
    %v907 = vld [vmem:[#allocation12 + $0x20] sm:$0xff]
    %v908 = vld [vmem:[#allocation12 + $0x28] sm:$0xff]
    %v909 = vld [vmem:[#allocation12 + $0x30] sm:$0xff]
    %v910 = vld [vmem:[#allocation12 + $0x38] sm:$0xff]
    %v911 = vld [vmem:[#allocation12 + $0x40] sm:$0xff]
    %v912 = vld [vmem:[#allocation12 + $0x48] sm:$0xff]
    %v913 = vld [vmem:[#allocation12 + $0x50] sm:$0xff]
    %v914 = vld [vmem:[#allocation12 + $0x58] sm:$0xff]
    %v915 = vld [vmem:[#allocation12 + $0x60] sm:$0xff]
    %v916 = vld [vmem:[#allocation12 + $0x68] sm:$0xff]
    %v917 = vld [vmem:[#allocation12 + $0x70] sm:$0xff]
    %v918 = vld [vmem:[#allocation12 + $0x78] sm:$0xff]
    %v919 = vld [vmem:[#allocation12 + $0x80] sm:$0xff]
    %v920 = vld [vmem:[#allocation12 + $0x88] sm:$0xff]
    %v921 = vld [vmem:[#allocation12 + $0x90] sm:$0xff]
    %v922 = vld [vmem:[#allocation12 + $0x98] sm:$0xff]
    %v923 = vld [vmem:[#allocation12 + $0xa0] sm:$0xff]
    %v924 = vld [vmem:[#allocation12 + $0xa8] sm:$0xff]
    %v925 = vld [vmem:[#allocation12 + $0xb0] sm:$0xff]
    %v926 = vld [vmem:[#allocation12 + $0xb8] sm:$0xff]
    %v927 = vld [vmem:[#allocation12 + $0xc0] sm:$0xff]
    %v928 = vld [vmem:[#allocation12 + $0xc8] sm:$0xff]
    %v929 = vld [vmem:[#allocation12 + $0xd0] sm:$0xff]
    %v930 = vld [vmem:[#allocation12 + $0xd8] sm:$0xff]
    %v931 = vld [vmem:[#allocation12 + $0xe0] sm:$0xff]
    %v932 = vld [vmem:[#allocation12 + $0xe8] sm:$0xff]
    %v933 = vld [vmem:[#allocation12 + $0xf0] sm:$0xff]
    %v934 = vld [vmem:[#allocation12 + $0xf8] sm:$0xff]
    %v935 = vld [vmem:[#allocation12 + $0x100] sm:$0xff]
    %v936 = vld [vmem:[#allocation12 + $0x108] sm:$0xff]
    %v937 = vld [vmem:[#allocation12 + $0x110] sm:$0xff]
    %v938 = vld [vmem:[#allocation12 + $0x118] sm:$0xff]
    %v939 = vld [vmem:[#allocation12 + $0x120] sm:$0xff]
    %v940 = vld [vmem:[#allocation12 + $0x128] sm:$0xff]
    %v941 = vld [vmem:[#allocation12 + $0x130] sm:$0xff]
    %v942 = vld [vmem:[#allocation12 + $0x138] sm:$0xff]
    %v943 = vld [vmem:[#allocation12 + $0x140] sm:$0xff]
    %v944 = vld [vmem:[#allocation12 + $0x148] sm:$0xff]
    %v945 = vld [vmem:[#allocation12 + $0x150] sm:$0xff]
    %v946 = vld [vmem:[#allocation12 + $0x158] sm:$0xff]
    %v947 = vld [vmem:[#allocation12 + $0x160] sm:$0xff]
    %v948 = vld [vmem:[#allocation12 + $0x168] sm:$0xff]
    %v949 = vld [vmem:[#allocation12 + $0x170] sm:$0xff]
    %v950 = vld [vmem:[#allocation12 + $0x178] sm:$0xff]
    %v951 = vld [vmem:[#allocation12 + $0x180] sm:$0xff]
    %v952 = vld [vmem:[#allocation12 + $0x188] sm:$0xff]
    %v953 = vld [vmem:[#allocation12 + $0x190] sm:$0xff]
    %v954 = vld [vmem:[#allocation12 + $0x198] sm:$0xff]
    %v955 = vld [vmem:[#allocation12 + $0x1a0] sm:$0xff]
    %v956 = vld [vmem:[#allocation12 + $0x1a8] sm:$0xff]
    %v957 = vld [vmem:[#allocation12 + $0x1b0] sm:$0xff]
    %v958 = vld [vmem:[#allocation12 + $0x1b8] sm:$0xff]
    %v959 = vld [vmem:[#allocation12 + $0x1c0] sm:$0xff]
    %v960 = vld [vmem:[#allocation12 + $0x1c8] sm:$0xff]
    %v961 = vld [vmem:[#allocation12 + $0x1d0] sm:$0xff]
    %v962 = vld [vmem:[#allocation12 + $0x1d8] sm:$0xff]
    %v963 = vld [vmem:[#allocation12 + $0x1e0] sm:$0xff]
    %v964 = vld [vmem:[#allocation12 + $0x1e8] sm:$0xff]
    %v965 = vld [vmem:[#allocation12 + $0x1f0] sm:$0xff]
    %v966 = vld [vmem:[#allocation12 + $0x1f8] sm:$0xff]
    %967 = vmatprep.subr.mxu0 %v964
    %968 = vmatpush1.msra.mxu0 %v963
    %969 = vmatprep.subr.mxu0 %v960
    %970 = vmatpush1.msra.mxu0 %v959
    %971 = vmatprep.subr.mxu0 %v956
    %972 = vmatpush1.msra.mxu0 %v955
    %973 = vmatprep.subr.mxu0 %v952
    %974 = vmatpush1.msra.mxu0 %v951
    %975 = vmatprep.subr.mxu0 %v948
    %976 = vmatpush1.msra.mxu0 %v947
    %977 = vmatprep.subr.mxu0 %v944
    %978 = vmatpush1.msra.mxu0 %v943
    %979 = vmatprep.subr.mxu0 %v940
    %980 = vmatpush1.msra.mxu0 %v939
    %981 = vmatprep.subr.mxu0 %v936
    %982 = vmatpush1.msra.mxu0 %v935
    %983 = vmatprep.subr.mxu0 %v932
    %984 = vmatpush1.msra.mxu0 %v931
    %985 = vmatprep.subr.mxu0 %v928
    %986 = vmatpush1.msra.mxu0 %v927
    %987 = vmatprep.subr.mxu0 %v924
    %988 = vmatpush1.msra.mxu0 %v923
    %989 = vmatprep.subr.mxu0 %v920
    %990 = vmatpush1.msra.mxu0 %v919
    %991 = vmatprep.subr.mxu0 %v916
    %992 = vmatpush1.msra.mxu0 %v915
    %993 = vmatprep.subr.mxu0 %v912
    %994 = vmatpush1.msra.mxu0 %v911
    %995 = vmatprep.subr.mxu0 %v908
    %996 = vmatpush1.msra.mxu0 %v907
    %997 = vmatprep.subr.mxu0 %v904
    %998 = vmatpush1.msra.mxu0 %v903
    %999 = vmatprep.subr.mxu0 0.0
    %1000 = vmatpush2.msra.mxu0 0.0
    %1001 = vmatprep.subr.mxu0 0.0
    %1002 = vmatpush2.msra.mxu0 0.0
    %1003 = vmatprep.subr.mxu0 0.0
    %1004 = vmatpush2.msra.mxu0 0.0
    %1005 = vmatprep.subr.mxu0 0.0
    %1006 = vmatpush2.msra.mxu0 0.0
    %1007 = vmatprep.subr.mxu0 0.0
    %1008 = vmatpush2.msra.mxu0 0.0
    %1009 = vmatprep.subr.mxu0 0.0
    %1010 = vmatpush2.msra.mxu0 0.0
    %1011 = vmatprep.subr.mxu0 0.0
    %1012 = vmatpush2.msra.mxu0 0.0
    %1013 = vmatprep.subr.mxu0 0.0
    %1014 = vmatpush2.msra.mxu0 0.0
    %1015 = vmatprep.subr.mxu0 0.0
    %1016 = vmatpush2.msra.mxu0 0.0
    %1017 = vmatprep.subr.mxu0 0.0
    %1018 = vmatpush2.msra.mxu0 0.0
    %1019 = vmatprep.subr.mxu0 0.0
    %1020 = vmatpush2.msra.mxu0 0.0
    %1021 = vmatprep.subr.mxu0 0.0
    %1022 = vmatpush2.msra.mxu0 0.0
    %1023 = vmatprep.subr.mxu0 0.0
    %1024 = vmatpush2.msra.mxu0 0.0
    %1025 = vmatprep.subr.mxu0 0.0
    %1026 = vmatpush2.msra.mxu0 0.0
    %1027 = vmatprep.subr.mxu0 0.0
    %1028 = vmatpush2.msra.mxu0 0.0
    %1029 = vmatprep.subr.mxu0 0.0
    %1030 = vmatpush2.msra.mxu0 0.0
    %1031 = vmatprep.mubr.f32.mxu0 0.0
    %1032 = vmatmul.mubr.f32.gmra.mxu0 %v902
    %v1033 = vpop.f32.mrf.mxu0
    %v1034 = vadd.f32 0.0, %v1033
    %v1035 = vpop.f32.mrf.mxu0
    %v1036 = vadd.f32 0.0, %v1035
    %1037 = vdwg.mxu0
    %1038 = vmatprep.subr.mxu0 %v966
    %1039 = vmatpush1.msra.mxu0 %v965
    %1040 = vmatprep.subr.mxu0 %v962
    %1041 = vmatpush1.msra.mxu0 %v961
    %1042 = vmatprep.subr.mxu0 %v958
    %1043 = vmatpush1.msra.mxu0 %v957
    %1044 = vmatprep.subr.mxu0 %v954
    %1045 = vmatpush1.msra.mxu0 %v953
    %1046 = vmatprep.subr.mxu0 %v950
    %1047 = vmatpush1.msra.mxu0 %v949
    %1048 = vmatprep.subr.mxu0 %v946
    %1049 = vmatpush1.msra.mxu0 %v945
    %1050 = vmatprep.subr.mxu0 %v942
    %1051 = vmatpush1.msra.mxu0 %v941
    %1052 = vmatprep.subr.mxu0 %v938
    %1053 = vmatpush1.msra.mxu0 %v937
    %1054 = vmatprep.subr.mxu0 %v934
    %1055 = vmatpush1.msra.mxu0 %v933
    %1056 = vmatprep.subr.mxu0 %v930
    %1057 = vmatpush1.msra.mxu0 %v929
    %1058 = vmatprep.subr.mxu0 %v926
    %1059 = vmatpush1.msra.mxu0 %v925
    %1060 = vmatprep.subr.mxu0 %v922
    %1061 = vmatpush1.msra.mxu0 %v921
    %1062 = vmatprep.subr.mxu0 %v918
    %1063 = vmatpush1.msra.mxu0 %v917
    %1064 = vmatprep.subr.mxu0 %v914
    %1065 = vmatpush1.msra.mxu0 %v913
    %1066 = vmatprep.subr.mxu0 %v910
    %1067 = vmatpush1.msra.mxu0 %v909
    %1068 = vmatprep.subr.mxu0 %v906
    %1069 = vmatpush1.msra.mxu0 %v905
    %1070 = vmatprep.subr.mxu0 0.0
    %1071 = vmatpush2.msra.mxu0 0.0
    %1072 = vmatprep.subr.mxu0 0.0
    %1073 = vmatpush2.msra.mxu0 0.0
    %1074 = vmatprep.subr.mxu0 0.0
    %1075 = vmatpush2.msra.mxu0 0.0
    %1076 = vmatprep.subr.mxu0 0.0
    %1077 = vmatpush2.msra.mxu0 0.0
    %1078 = vmatprep.subr.mxu0 0.0
    %1079 = vmatpush2.msra.mxu0 0.0
    %1080 = vmatprep.subr.mxu0 0.0
    %1081 = vmatpush2.msra.mxu0 0.0
    %1082 = vmatprep.subr.mxu0 0.0
    %1083 = vmatpush2.msra.mxu0 0.0
    %1084 = vmatprep.subr.mxu0 0.0
    %1085 = vmatpush2.msra.mxu0 0.0
    %1086 = vmatprep.subr.mxu0 0.0
    %1087 = vmatpush2.msra.mxu0 0.0
    %1088 = vmatprep.subr.mxu0 0.0
    %1089 = vmatpush2.msra.mxu0 0.0
    %1090 = vmatprep.subr.mxu0 0.0
    %1091 = vmatpush2.msra.mxu0 0.0
    %1092 = vmatprep.subr.mxu0 0.0
    %1093 = vmatpush2.msra.mxu0 0.0
    %1094 = vmatprep.subr.mxu0 0.0
    %1095 = vmatpush2.msra.mxu0 0.0
    %1096 = vmatprep.subr.mxu0 0.0
    %1097 = vmatpush2.msra.mxu0 0.0
    %1098 = vmatprep.subr.mxu0 0.0
    %1099 = vmatpush2.msra.mxu0 0.0
    %1100 = vmatprep.subr.mxu0 0.0
    %1101 = vmatpush2.msra.mxu0 0.0
    %1102 = vmatprep.mubr.f32.mxu0 0.0
    %1103 = vmatmul.mubr.f32.gmra.mxu0 %v902
    %v1104 = vpop.f32.mrf.mxu0
    %v1105 = vadd.f32 0.0, %v1104
    %v1106 = vpop.f32.mrf.mxu0
    %v1107 = vadd.f32 0.0, %v1106
    %1108 = vdwg.mxu0
    %v1109 = vld [vmem:[#allocation14] sm:$0xff]
    %v1110 = vld [vmem:[#allocation14 + $0x8] sm:$0xff]
    %v1111 = vld [vmem:[#allocation14 + $0x10] sm:$0xff]
    %v1112 = vld [vmem:[#allocation14 + $0x18] sm:$0xff]
    %v1113 = vld [vmem:[#allocation14 + $0x20] sm:$0xff]
    %v1114 = vld [vmem:[#allocation14 + $0x28] sm:$0xff]
    %v1115 = vld [vmem:[#allocation14 + $0x30] sm:$0xff]
    %v1116 = vld [vmem:[#allocation14 + $0x38] sm:$0xff]
    %v1117 = vld [vmem:[#allocation14 + $0x40] sm:$0xff]
    %v1118 = vld [vmem:[#allocation14 + $0x48] sm:$0xff]
    %v1119 = vld [vmem:[#allocation14 + $0x50] sm:$0xff]
    %v1120 = vld [vmem:[#allocation14 + $0x58] sm:$0xff]
    %v1121 = vld [vmem:[#allocation14 + $0x60] sm:$0xff]
    %v1122 = vld [vmem:[#allocation14 + $0x68] sm:$0xff]
    %v1123 = vld [vmem:[#allocation14 + $0x70] sm:$0xff]
    %v1124 = vld [vmem:[#allocation14 + $0x78] sm:$0xff]
    %v1125 = vld [vmem:[#allocation14 + $0x80] sm:$0xff]
    %v1126 = vld [vmem:[#allocation14 + $0x88] sm:$0xff]
    %v1127 = vld [vmem:[#allocation14 + $0x90] sm:$0xff]
    %v1128 = vld [vmem:[#allocation14 + $0x98] sm:$0xff]
    %v1129 = vld [vmem:[#allocation14 + $0xa0] sm:$0xff]
    %v1130 = vld [vmem:[#allocation14 + $0xa8] sm:$0xff]
    %v1131 = vld [vmem:[#allocation14 + $0xb0] sm:$0xff]
    %v1132 = vld [vmem:[#allocation14 + $0xb8] sm:$0xff]
    %v1133 = vld [vmem:[#allocation14 + $0xc0] sm:$0xff]
    %v1134 = vld [vmem:[#allocation14 + $0xc8] sm:$0xff]
    %v1135 = vld [vmem:[#allocation14 + $0xd0] sm:$0xff]
    %v1136 = vld [vmem:[#allocation14 + $0xd8] sm:$0xff]
    %v1137 = vld [vmem:[#allocation14 + $0xe0] sm:$0xff]
    %v1138 = vld [vmem:[#allocation14 + $0xe8] sm:$0xff]
    %v1139 = vld [vmem:[#allocation14 + $0xf0] sm:$0xff]
    %v1140 = vld [vmem:[#allocation14 + $0xf8] sm:$0xff]
    %v1141 = vld [vmem:[#allocation14 + $0x100] sm:$0xff]
    %v1142 = vld [vmem:[#allocation14 + $0x108] sm:$0xff]
    %v1143 = vld [vmem:[#allocation14 + $0x110] sm:$0xff]
    %v1144 = vld [vmem:[#allocation14 + $0x118] sm:$0xff]
    %v1145 = vld [vmem:[#allocation14 + $0x120] sm:$0xff]
    %v1146 = vld [vmem:[#allocation14 + $0x128] sm:$0xff]
    %v1147 = vld [vmem:[#allocation14 + $0x130] sm:$0xff]
    %v1148 = vld [vmem:[#allocation14 + $0x138] sm:$0xff]
    %v1149 = vld [vmem:[#allocation14 + $0x140] sm:$0xff]
    %v1150 = vld [vmem:[#allocation14 + $0x148] sm:$0xff]
    %v1151 = vld [vmem:[#allocation14 + $0x150] sm:$0xff]
    %v1152 = vld [vmem:[#allocation14 + $0x158] sm:$0xff]
    %v1153 = vld [vmem:[#allocation14 + $0x160] sm:$0xff]
    %v1154 = vld [vmem:[#allocation14 + $0x168] sm:$0xff]
    %v1155 = vld [vmem:[#allocation14 + $0x170] sm:$0xff]
    %v1156 = vld [vmem:[#allocation14 + $0x178] sm:$0xff]
    %v1157 = vld [vmem:[#allocation14 + $0x180] sm:$0xff]
    %v1158 = vld [vmem:[#allocation14 + $0x188] sm:$0xff]
    %v1159 = vld [vmem:[#allocation14 + $0x190] sm:$0xff]
    %v1160 = vld [vmem:[#allocation14 + $0x198] sm:$0xff]
    %v1161 = vld [vmem:[#allocation14 + $0x1a0] sm:$0xff]
    %v1162 = vld [vmem:[#allocation14 + $0x1a8] sm:$0xff]
    %v1163 = vld [vmem:[#allocation14 + $0x1b0] sm:$0xff]
    %v1164 = vld [vmem:[#allocation14 + $0x1b8] sm:$0xff]
    %v1165 = vld [vmem:[#allocation14 + $0x1c0] sm:$0xff]
    %v1166 = vld [vmem:[#allocation14 + $0x1c8] sm:$0xff]
    %v1167 = vld [vmem:[#allocation14 + $0x1d0] sm:$0xff]
    %v1168 = vld [vmem:[#allocation14 + $0x1d8] sm:$0xff]
    %v1169 = vld [vmem:[#allocation14 + $0x1e0] sm:$0xff]
    %v1170 = vld [vmem:[#allocation14 + $0x1e8] sm:$0xff]
    %v1171 = vld [vmem:[#allocation14 + $0x1f0] sm:$0xff]
    %v1172 = vld [vmem:[#allocation14 + $0x1f8] sm:$0xff]
    %v1173 = vld [vmem:[#allocation15] sm:$0xff]
    %v1174 = vld [vmem:[#allocation15 + $0x8] sm:$0xff]
    %v1175 = vld [vmem:[#allocation15 + $0x10] sm:$0xff]
    %v1176 = vld [vmem:[#allocation15 + $0x18] sm:$0xff]
    %v1177 = vld [vmem:[#allocation15 + $0x20] sm:$0xff]
    %v1178 = vld [vmem:[#allocation15 + $0x28] sm:$0xff]
    %v1179 = vld [vmem:[#allocation15 + $0x30] sm:$0xff]
    %v1180 = vld [vmem:[#allocation15 + $0x38] sm:$0xff]
    %v1181 = vld [vmem:[#allocation15 + $0x40] sm:$0xff]
    %v1182 = vld [vmem:[#allocation15 + $0x48] sm:$0xff]
    %v1183 = vld [vmem:[#allocation15 + $0x50] sm:$0xff]
    %v1184 = vld [vmem:[#allocation15 + $0x58] sm:$0xff]
    %v1185 = vld [vmem:[#allocation15 + $0x60] sm:$0xff]
    %v1186 = vld [vmem:[#allocation15 + $0x68] sm:$0xff]
    %v1187 = vld [vmem:[#allocation15 + $0x70] sm:$0xff]
    %v1188 = vld [vmem:[#allocation15 + $0x78] sm:$0xff]
    %v1189 = vld [vmem:[#allocation15 + $0x80] sm:$0xff]
    %v1190 = vld [vmem:[#allocation15 + $0x88] sm:$0xff]
    %v1191 = vld [vmem:[#allocation15 + $0x90] sm:$0xff]
    %v1192 = vld [vmem:[#allocation15 + $0x98] sm:$0xff]
    %v1193 = vld [vmem:[#allocation15 + $0xa0] sm:$0xff]
    %v1194 = vld [vmem:[#allocation15 + $0xa8] sm:$0xff]
    %v1195 = vld [vmem:[#allocation15 + $0xb0] sm:$0xff]
    %v1196 = vld [vmem:[#allocation15 + $0xb8] sm:$0xff]
    %v1197 = vld [vmem:[#allocation15 + $0xc0] sm:$0xff]
    %v1198 = vld [vmem:[#allocation15 + $0xc8] sm:$0xff]
    %v1199 = vld [vmem:[#allocation15 + $0xd0] sm:$0xff]
    %v1200 = vld [vmem:[#allocation15 + $0xd8] sm:$0xff]
    %v1201 = vld [vmem:[#allocation15 + $0xe0] sm:$0xff]
    %v1202 = vld [vmem:[#allocation15 + $0xe8] sm:$0xff]
    %v1203 = vld [vmem:[#allocation15 + $0xf0] sm:$0xff]
    %v1204 = vld [vmem:[#allocation15 + $0xf8] sm:$0xff]
    %v1205 = vld [vmem:[#allocation15 + $0x100] sm:$0xff]
    %v1206 = vld [vmem:[#allocation15 + $0x108] sm:$0xff]
    %v1207 = vld [vmem:[#allocation15 + $0x110] sm:$0xff]
    %v1208 = vld [vmem:[#allocation15 + $0x118] sm:$0xff]
    %v1209 = vld [vmem:[#allocation15 + $0x120] sm:$0xff]
    %v1210 = vld [vmem:[#allocation15 + $0x128] sm:$0xff]
    %v1211 = vld [vmem:[#allocation15 + $0x130] sm:$0xff]
    %v1212 = vld [vmem:[#allocation15 + $0x138] sm:$0xff]
    %v1213 = vld [vmem:[#allocation15 + $0x140] sm:$0xff]
    %v1214 = vld [vmem:[#allocation15 + $0x148] sm:$0xff]
    %v1215 = vld [vmem:[#allocation15 + $0x150] sm:$0xff]
    %v1216 = vld [vmem:[#allocation15 + $0x158] sm:$0xff]
    %v1217 = vld [vmem:[#allocation15 + $0x160] sm:$0xff]
    %v1218 = vld [vmem:[#allocation15 + $0x168] sm:$0xff]
    %v1219 = vld [vmem:[#allocation15 + $0x170] sm:$0xff]
    %v1220 = vld [vmem:[#allocation15 + $0x178] sm:$0xff]
    %v1221 = vld [vmem:[#allocation15 + $0x180] sm:$0xff]
    %v1222 = vld [vmem:[#allocation15 + $0x188] sm:$0xff]
    %v1223 = vld [vmem:[#allocation15 + $0x190] sm:$0xff]
    %v1224 = vld [vmem:[#allocation15 + $0x198] sm:$0xff]
    %v1225 = vld [vmem:[#allocation15 + $0x1a0] sm:$0xff]
    %v1226 = vld [vmem:[#allocation15 + $0x1a8] sm:$0xff]
    %v1227 = vld [vmem:[#allocation15 + $0x1b0] sm:$0xff]
    %v1228 = vld [vmem:[#allocation15 + $0x1b8] sm:$0xff]
    %v1229 = vld [vmem:[#allocation15 + $0x1c0] sm:$0xff]
    %v1230 = vld [vmem:[#allocation15 + $0x1c8] sm:$0xff]
    %v1231 = vld [vmem:[#allocation15 + $0x1d0] sm:$0xff]
    %v1232 = vld [vmem:[#allocation15 + $0x1d8] sm:$0xff]
    %v1233 = vld [vmem:[#allocation15 + $0x1e0] sm:$0xff]
    %v1234 = vld [vmem:[#allocation15 + $0x1e8] sm:$0xff]
    %v1235 = vld [vmem:[#allocation15 + $0x1f0] sm:$0xff]
    %v1236 = vld [vmem:[#allocation15 + $0x1f8] sm:$0xff]
    %v1237 = vld [vmem:[#allocation17] sm:$0xff]
    %v1238 = vld [vmem:[#allocation17 + $0x8] sm:$0xff]
    %v1239 = vld [vmem:[#allocation17 + $0x10] sm:$0xff]
    %v1240 = vld [vmem:[#allocation17 + $0x18] sm:$0xff]
    %v1241 = vld [vmem:[#allocation17 + $0x20] sm:$0xff]
    %v1242 = vld [vmem:[#allocation17 + $0x28] sm:$0xff]
    %v1243 = vld [vmem:[#allocation17 + $0x30] sm:$0xff]
    %v1244 = vld [vmem:[#allocation17 + $0x38] sm:$0xff]
    %v1245 = vld [vmem:[#allocation17 + $0x40] sm:$0xff]
    %v1246 = vld [vmem:[#allocation17 + $0x48] sm:$0xff]
    %v1247 = vld [vmem:[#allocation17 + $0x50] sm:$0xff]
    %v1248 = vld [vmem:[#allocation17 + $0x58] sm:$0xff]
    %v1249 = vld [vmem:[#allocation17 + $0x60] sm:$0xff]
    %v1250 = vld [vmem:[#allocation17 + $0x68] sm:$0xff]
    %v1251 = vld [vmem:[#allocation17 + $0x70] sm:$0xff]
    %v1252 = vld [vmem:[#allocation17 + $0x78] sm:$0xff]
    %v1253 = vld [vmem:[#allocation17 + $0x80] sm:$0xff]
    %v1254 = vld [vmem:[#allocation17 + $0x88] sm:$0xff]
    %v1255 = vld [vmem:[#allocation17 + $0x90] sm:$0xff]
    %v1256 = vld [vmem:[#allocation17 + $0x98] sm:$0xff]
    %v1257 = vld [vmem:[#allocation17 + $0xa0] sm:$0xff]
    %v1258 = vld [vmem:[#allocation17 + $0xa8] sm:$0xff]
    %v1259 = vld [vmem:[#allocation17 + $0xb0] sm:$0xff]
    %v1260 = vld [vmem:[#allocation17 + $0xb8] sm:$0xff]
    %v1261 = vld [vmem:[#allocation17 + $0xc0] sm:$0xff]
    %v1262 = vld [vmem:[#allocation17 + $0xc8] sm:$0xff]
    %v1263 = vld [vmem:[#allocation17 + $0xd0] sm:$0xff]
    %v1264 = vld [vmem:[#allocation17 + $0xd8] sm:$0xff]
    %v1265 = vld [vmem:[#allocation17 + $0xe0] sm:$0xff]
    %v1266 = vld [vmem:[#allocation17 + $0xe8] sm:$0xff]
    %v1267 = vld [vmem:[#allocation17 + $0xf0] sm:$0xff]
    %v1268 = vld [vmem:[#allocation17 + $0xf8] sm:$0xff]
    %v1269 = vld [vmem:[#allocation17 + $0x100] sm:$0xff]
    %v1270 = vld [vmem:[#allocation17 + $0x108] sm:$0xff]
    %v1271 = vld [vmem:[#allocation17 + $0x110] sm:$0xff]
    %v1272 = vld [vmem:[#allocation17 + $0x118] sm:$0xff]
    %v1273 = vld [vmem:[#allocation17 + $0x120] sm:$0xff]
    %v1274 = vld [vmem:[#allocation17 + $0x128] sm:$0xff]
    %v1275 = vld [vmem:[#allocation17 + $0x130] sm:$0xff]
    %v1276 = vld [vmem:[#allocation17 + $0x138] sm:$0xff]
    %v1277 = vld [vmem:[#allocation17 + $0x140] sm:$0xff]
    %v1278 = vld [vmem:[#allocation17 + $0x148] sm:$0xff]
    %v1279 = vld [vmem:[#allocation17 + $0x150] sm:$0xff]
    %v1280 = vld [vmem:[#allocation17 + $0x158] sm:$0xff]
    %v1281 = vld [vmem:[#allocation17 + $0x160] sm:$0xff]
    %v1282 = vld [vmem:[#allocation17 + $0x168] sm:$0xff]
    %v1283 = vld [vmem:[#allocation17 + $0x170] sm:$0xff]
    %v1284 = vld [vmem:[#allocation17 + $0x178] sm:$0xff]
    %v1285 = vld [vmem:[#allocation17 + $0x180] sm:$0xff]
    %v1286 = vld [vmem:[#allocation17 + $0x188] sm:$0xff]
    %v1287 = vld [vmem:[#allocation17 + $0x190] sm:$0xff]
    %v1288 = vld [vmem:[#allocation17 + $0x198] sm:$0xff]
    %v1289 = vld [vmem:[#allocation17 + $0x1a0] sm:$0xff]
    %v1290 = vld [vmem:[#allocation17 + $0x1a8] sm:$0xff]
    %v1291 = vld [vmem:[#allocation17 + $0x1b0] sm:$0xff]
    %v1292 = vld [vmem:[#allocation17 + $0x1b8] sm:$0xff]
    %v1293 = vld [vmem:[#allocation17 + $0x1c0] sm:$0xff]
    %v1294 = vld [vmem:[#allocation17 + $0x1c8] sm:$0xff]
    %v1295 = vld [vmem:[#allocation17 + $0x1d0] sm:$0xff]
    %v1296 = vld [vmem:[#allocation17 + $0x1d8] sm:$0xff]
    %v1297 = vld [vmem:[#allocation17 + $0x1e0] sm:$0xff]
    %v1298 = vld [vmem:[#allocation17 + $0x1e8] sm:$0xff]
    %v1299 = vld [vmem:[#allocation17 + $0x1f0] sm:$0xff]
    %v1300 = vld [vmem:[#allocation17 + $0x1f8] sm:$0xff]
    %v1301 = vld [vmem:[%s13] sm:$0xf]
    %v1302 = vadd.f32 %v898, %v1034
    %v1303 = vadd.f32 %v899, %v1036
    %v1304 = vadd.f32 %v900, %v1105
    %v1305 = vadd.f32 %v901, %v1107
    %1306 = vmatprep.subr.mxu0 %v1170
    %1307 = vmatpush1.msra.mxu0 %v1169
    %1308 = vmatprep.subr.mxu0 %v1166
    %1309 = vmatpush1.msra.mxu0 %v1165
    %1310 = vmatprep.subr.mxu0 %v1162
    %1311 = vmatpush1.msra.mxu0 %v1161
    %1312 = vmatprep.subr.mxu0 %v1158
    %1313 = vmatpush1.msra.mxu0 %v1157
    %1314 = vmatprep.subr.mxu0 %v1154
    %1315 = vmatpush1.msra.mxu0 %v1153
    %1316 = vmatprep.subr.mxu0 %v1150
    %1317 = vmatpush1.msra.mxu0 %v1149
    %1318 = vmatprep.subr.mxu0 %v1146
    %1319 = vmatpush1.msra.mxu0 %v1145
    %1320 = vmatprep.subr.mxu0 %v1142
    %1321 = vmatpush1.msra.mxu0 %v1141
    %1322 = vmatprep.subr.mxu0 %v1138
    %1323 = vmatpush1.msra.mxu0 %v1137
    %1324 = vmatprep.subr.mxu0 %v1134
    %1325 = vmatpush1.msra.mxu0 %v1133
    %1326 = vmatprep.subr.mxu0 %v1130
    %1327 = vmatpush1.msra.mxu0 %v1129
    %1328 = vmatprep.subr.mxu0 %v1126
    %1329 = vmatpush1.msra.mxu0 %v1125
    %1330 = vmatprep.subr.mxu0 %v1122
    %1331 = vmatpush1.msra.mxu0 %v1121
    %1332 = vmatprep.subr.mxu0 %v1118
    %1333 = vmatpush1.msra.mxu0 %v1117
    %1334 = vmatprep.subr.mxu0 %v1114
    %1335 = vmatpush1.msra.mxu0 %v1113
    %1336 = vmatprep.subr.mxu0 %v1110
    %1337 = vmatpush1.msra.mxu0 %v1109
    %1338 = vmatprep.subr.mxu0 0.0
    %1339 = vmatpush2.msra.mxu0 0.0
    %1340 = vmatprep.subr.mxu0 0.0
    %1341 = vmatpush2.msra.mxu0 0.0
    %1342 = vmatprep.subr.mxu0 0.0
    %1343 = vmatpush2.msra.mxu0 0.0
    %1344 = vmatprep.subr.mxu0 0.0
    %1345 = vmatpush2.msra.mxu0 0.0
    %1346 = vmatprep.subr.mxu0 0.0
    %1347 = vmatpush2.msra.mxu0 0.0
    %1348 = vmatprep.subr.mxu0 0.0
    %1349 = vmatpush2.msra.mxu0 0.0
    %1350 = vmatprep.subr.mxu0 0.0
    %1351 = vmatpush2.msra.mxu0 0.0
    %1352 = vmatprep.subr.mxu0 0.0
    %1353 = vmatpush2.msra.mxu0 0.0
    %1354 = vmatprep.subr.mxu0 0.0
    %1355 = vmatpush2.msra.mxu0 0.0
    %1356 = vmatprep.subr.mxu0 0.0
    %1357 = vmatpush2.msra.mxu0 0.0
    %1358 = vmatprep.subr.mxu0 0.0
    %1359 = vmatpush2.msra.mxu0 0.0
    %1360 = vmatprep.subr.mxu0 0.0
    %1361 = vmatpush2.msra.mxu0 0.0
    %1362 = vmatprep.subr.mxu0 0.0
    %1363 = vmatpush2.msra.mxu0 0.0
    %1364 = vmatprep.subr.mxu0 0.0
    %1365 = vmatpush2.msra.mxu0 0.0
    %1366 = vmatprep.subr.mxu0 0.0
    %1367 = vmatpush2.msra.mxu0 0.0
    %1368 = vmatprep.subr.mxu0 0.0
    %1369 = vmatpush2.msra.mxu0 0.0
    %1370 = vmatprep.mubr.f32.mxu0 0.0
    %1371 = vmatmul.mubr.f32.gmra.mxu0 0.0
    %v1372 = vpop.f32.mrf.mxu0
    %v1373 = vadd.f32 0.0, %v1372
    %v1374 = vpop.f32.mrf.mxu0
    %v1375 = vadd.f32 0.0, %v1374
    %1376 = vdwg.mxu0
    %1377 = vmatprep.subr.mxu0 %v1172
    %1378 = vmatpush1.msra.mxu0 %v1171
    %1379 = vmatprep.subr.mxu0 %v1168
    %1380 = vmatpush1.msra.mxu0 %v1167
    %1381 = vmatprep.subr.mxu0 %v1164
    %1382 = vmatpush1.msra.mxu0 %v1163
    %1383 = vmatprep.subr.mxu0 %v1160
    %1384 = vmatpush1.msra.mxu0 %v1159
    %1385 = vmatprep.subr.mxu0 %v1156
    %1386 = vmatpush1.msra.mxu0 %v1155
    %1387 = vmatprep.subr.mxu0 %v1152
    %1388 = vmatpush1.msra.mxu0 %v1151
    %1389 = vmatprep.subr.mxu0 %v1148
    %1390 = vmatpush1.msra.mxu0 %v1147
    %1391 = vmatprep.subr.mxu0 %v1144
    %1392 = vmatpush1.msra.mxu0 %v1143
    %1393 = vmatprep.subr.mxu0 %v1140
    %1394 = vmatpush1.msra.mxu0 %v1139
    %1395 = vmatprep.subr.mxu0 %v1136
    %1396 = vmatpush1.msra.mxu0 %v1135
    %1397 = vmatprep.subr.mxu0 %v1132
    %1398 = vmatpush1.msra.mxu0 %v1131
    %1399 = vmatprep.subr.mxu0 %v1128
    %1400 = vmatpush1.msra.mxu0 %v1127
    %1401 = vmatprep.subr.mxu0 %v1124
    %1402 = vmatpush1.msra.mxu0 %v1123
    %1403 = vmatprep.subr.mxu0 %v1120
    %1404 = vmatpush1.msra.mxu0 %v1119
    %1405 = vmatprep.subr.mxu0 %v1116
    %1406 = vmatpush1.msra.mxu0 %v1115
    %1407 = vmatprep.subr.mxu0 %v1112
    %1408 = vmatpush1.msra.mxu0 %v1111
    %1409 = vmatprep.subr.mxu0 0.0
    %1410 = vmatpush2.msra.mxu0 0.0
    %1411 = vmatprep.subr.mxu0 0.0
    %1412 = vmatpush2.msra.mxu0 0.0
    %1413 = vmatprep.subr.mxu0 0.0
    %1414 = vmatpush2.msra.mxu0 0.0
    %1415 = vmatprep.subr.mxu0 0.0
    %1416 = vmatpush2.msra.mxu0 0.0
    %1417 = vmatprep.subr.mxu0 0.0
    %1418 = vmatpush2.msra.mxu0 0.0
    %1419 = vmatprep.subr.mxu0 0.0
    %1420 = vmatpush2.msra.mxu0 0.0
    %1421 = vmatprep.subr.mxu0 0.0
    %1422 = vmatpush2.msra.mxu0 0.0
    %1423 = vmatprep.subr.mxu0 0.0
    %1424 = vmatpush2.msra.mxu0 0.0
    %1425 = vmatprep.subr.mxu0 0.0
    %1426 = vmatpush2.msra.mxu0 0.0
    %1427 = vmatprep.subr.mxu0 0.0
    %1428 = vmatpush2.msra.mxu0 0.0
    %1429 = vmatprep.subr.mxu0 0.0
    %1430 = vmatpush2.msra.mxu0 0.0
    %1431 = vmatprep.subr.mxu0 0.0
    %1432 = vmatpush2.msra.mxu0 0.0
    %1433 = vmatprep.subr.mxu0 0.0
    %1434 = vmatpush2.msra.mxu0 0.0
    %1435 = vmatprep.subr.mxu0 0.0
    %1436 = vmatpush2.msra.mxu0 0.0
    %1437 = vmatprep.subr.mxu0 0.0
    %1438 = vmatpush2.msra.mxu0 0.0
    %1439 = vmatprep.subr.mxu0 0.0
    %1440 = vmatpush2.msra.mxu0 0.0
    %1441 = vmatprep.mubr.f32.mxu0 0.0
    %1442 = vmatmul.mubr.f32.gmra.mxu0 0.0
    %v1443 = vpop.f32.mrf.mxu0
    %v1444 = vadd.f32 0.0, %v1443
    %v1445 = vpop.f32.mrf.mxu0
    %v1446 = vadd.f32 0.0, %v1445
    %1447 = vdwg.mxu0
    %v1448 = vadd.f32 %v1302, %v1373
    %v1449 = vadd.f32 %v1303, %v1375
    %v1450 = vadd.f32 %v1304, %v1444
    %v1451 = vadd.f32 %v1305, %v1446
    %v1452 = vxor.u32 %v1448, 2147483648
    %v1453 = vmul.f32 %v1452, 1.442695
    %v1454 = vpow.pop %v1453
    %v1455 = vadd.f32 %v1454, 1.0
    %v1456 = vrcp.pop %v1455
    %v1457 = vmul.f32 1.0, %v1456
    %v1458 = vxor.u32 %v1449, 2147483648
    %v1459 = vmul.f32 %v1458, 1.442695
    %v1460 = vpow.pop %v1459
    %v1461 = vadd.f32 %v1460, 1.0
    %v1462 = vrcp.pop %v1461
    %v1463 = vmul.f32 1.0, %v1462
    %v1464 = vtanh.pop %v1450
    %v1465 = vxor.u32 %v1451, 2147483648
    %v1466 = vmul.f32 %v1465, 1.442695
    %v1467 = vpow.pop %v1466
    %v1468 = vadd.f32 %v1467, 1.0
    %v1469 = vrcp.pop %v1468
    %v1470 = vmul.f32 1.0, %v1469
    %v1471 = vmul.f32 %v1463, 0.0
    %v1472 = vmul.f32 %v1457, %v1464
    %v1473 = vadd.f32 %v1471, %v1472
    %v1474 = vtanh.pop %v1473
    %v1475 = vmul.f32 %v1470, %v1474
    %1476 = vmatprep.subr.mxu0 %v1298
    %1477 = vmatpush1.msra.mxu0 %v1297
    %1478 = vmatprep.subr.mxu0 %v1294
    %1479 = vmatpush1.msra.mxu0 %v1293
    %1480 = vmatprep.subr.mxu0 %v1290
    %1481 = vmatpush1.msra.mxu0 %v1289
    %1482 = vmatprep.subr.mxu0 %v1286
    %1483 = vmatpush1.msra.mxu0 %v1285
    %1484 = vmatprep.subr.mxu0 %v1282
    %1485 = vmatpush1.msra.mxu0 %v1281
    %1486 = vmatprep.subr.mxu0 %v1278
    %1487 = vmatpush1.msra.mxu0 %v1277
    %1488 = vmatprep.subr.mxu0 %v1274
    %1489 = vmatpush1.msra.mxu0 %v1273
    %1490 = vmatprep.subr.mxu0 %v1270
    %1491 = vmatpush1.msra.mxu0 %v1269
    %1492 = vmatprep.subr.mxu0 %v1266
    %1493 = vmatpush1.msra.mxu0 %v1265
    %1494 = vmatprep.subr.mxu0 %v1262
    %1495 = vmatpush1.msra.mxu0 %v1261
    %1496 = vmatprep.subr.mxu0 %v1258
    %1497 = vmatpush1.msra.mxu0 %v1257
    %1498 = vmatprep.subr.mxu0 %v1254
    %1499 = vmatpush1.msra.mxu0 %v1253
    %1500 = vmatprep.subr.mxu0 %v1250
    %1501 = vmatpush1.msra.mxu0 %v1249
    %1502 = vmatprep.subr.mxu0 %v1246
    %1503 = vmatpush1.msra.mxu0 %v1245
    %1504 = vmatprep.subr.mxu0 %v1242
    %1505 = vmatpush1.msra.mxu0 %v1241
    %1506 = vmatprep.subr.mxu0 %v1238
    %1507 = vmatpush1.msra.mxu0 %v1237
    %1508 = vmatprep.subr.mxu0 0.0
    %1509 = vmatpush2.msra.mxu0 0.0
    %1510 = vmatprep.subr.mxu0 0.0
    %1511 = vmatpush2.msra.mxu0 0.0
    %1512 = vmatprep.subr.mxu0 0.0
    %1513 = vmatpush2.msra.mxu0 0.0
    %1514 = vmatprep.subr.mxu0 0.0
    %1515 = vmatpush2.msra.mxu0 0.0
    %1516 = vmatprep.subr.mxu0 0.0
    %1517 = vmatpush2.msra.mxu0 0.0
    %1518 = vmatprep.subr.mxu0 0.0
    %1519 = vmatpush2.msra.mxu0 0.0
    %1520 = vmatprep.subr.mxu0 0.0
    %1521 = vmatpush2.msra.mxu0 0.0
    %1522 = vmatprep.subr.mxu0 0.0
    %1523 = vmatpush2.msra.mxu0 0.0
    %1524 = vmatprep.subr.mxu0 0.0
    %1525 = vmatpush2.msra.mxu0 0.0
    %1526 = vmatprep.subr.mxu0 0.0
    %1527 = vmatpush2.msra.mxu0 0.0
    %1528 = vmatprep.subr.mxu0 0.0
    %1529 = vmatpush2.msra.mxu0 0.0
    %1530 = vmatprep.subr.mxu0 0.0
    %1531 = vmatpush2.msra.mxu0 0.0
    %1532 = vmatprep.subr.mxu0 0.0
    %1533 = vmatpush2.msra.mxu0 0.0
    %1534 = vmatprep.subr.mxu0 0.0
    %1535 = vmatpush2.msra.mxu0 0.0
    %1536 = vmatprep.subr.mxu0 0.0
    %1537 = vmatpush2.msra.mxu0 0.0
    %1538 = vmatprep.subr.mxu0 0.0
    %1539 = vmatpush2.msra.mxu0 0.0
    %1540 = vmatprep.mubr.f32.mxu0 0.0
    %1541 = vmatmul.mubr.f32.gmra.mxu0 0.0
    %v1542 = vpop.f32.mrf.mxu0
    %v1543 = vadd.f32 0.0, %v1542
    %v1544 = vpop.f32.mrf.mxu0
    %v1545 = vadd.f32 0.0, %v1544
    %1546 = vdwg.mxu0
    %1547 = vmatprep.subr.mxu0 %v1300
    %1548 = vmatpush1.msra.mxu0 %v1299
    %1549 = vmatprep.subr.mxu0 %v1296
    %1550 = vmatpush1.msra.mxu0 %v1295
    %1551 = vmatprep.subr.mxu0 %v1292
    %1552 = vmatpush1.msra.mxu0 %v1291
    %1553 = vmatprep.subr.mxu0 %v1288
    %1554 = vmatpush1.msra.mxu0 %v1287
    %1555 = vmatprep.subr.mxu0 %v1284
    %1556 = vmatpush1.msra.mxu0 %v1283
    %1557 = vmatprep.subr.mxu0 %v1280
    %1558 = vmatpush1.msra.mxu0 %v1279
    %1559 = vmatprep.subr.mxu0 %v1276
    %1560 = vmatpush1.msra.mxu0 %v1275
    %1561 = vmatprep.subr.mxu0 %v1272
    %1562 = vmatpush1.msra.mxu0 %v1271
    %1563 = vmatprep.subr.mxu0 %v1268
    %1564 = vmatpush1.msra.mxu0 %v1267
    %1565 = vmatprep.subr.mxu0 %v1264
    %1566 = vmatpush1.msra.mxu0 %v1263
    %1567 = vmatprep.subr.mxu0 %v1260
    %1568 = vmatpush1.msra.mxu0 %v1259
    %1569 = vmatprep.subr.mxu0 %v1256
    %1570 = vmatpush1.msra.mxu0 %v1255
    %1571 = vmatprep.subr.mxu0 %v1252
    %1572 = vmatpush1.msra.mxu0 %v1251
    %1573 = vmatprep.subr.mxu0 %v1248
    %1574 = vmatpush1.msra.mxu0 %v1247
    %1575 = vmatprep.subr.mxu0 %v1244
    %1576 = vmatpush1.msra.mxu0 %v1243
    %1577 = vmatprep.subr.mxu0 %v1240
    %1578 = vmatpush1.msra.mxu0 %v1239
    %1579 = vmatprep.subr.mxu0 0.0
    %1580 = vmatpush2.msra.mxu0 0.0
    %1581 = vmatprep.subr.mxu0 0.0
    %1582 = vmatpush2.msra.mxu0 0.0
    %1583 = vmatprep.subr.mxu0 0.0
    %1584 = vmatpush2.msra.mxu0 0.0
    %1585 = vmatprep.subr.mxu0 0.0
    %1586 = vmatpush2.msra.mxu0 0.0
    %1587 = vmatprep.subr.mxu0 0.0
    %1588 = vmatpush2.msra.mxu0 0.0
    %1589 = vmatprep.subr.mxu0 0.0
    %1590 = vmatpush2.msra.mxu0 0.0
    %1591 = vmatprep.subr.mxu0 0.0
    %1592 = vmatpush2.msra.mxu0 0.0
    %1593 = vmatprep.subr.mxu0 0.0
    %1594 = vmatpush2.msra.mxu0 0.0
    %1595 = vmatprep.subr.mxu0 0.0
    %1596 = vmatpush2.msra.mxu0 0.0
    %1597 = vmatprep.subr.mxu0 0.0
    %1598 = vmatpush2.msra.mxu0 0.0
    %1599 = vmatprep.subr.mxu0 0.0
    %1600 = vmatpush2.msra.mxu0 0.0
    %1601 = vmatprep.subr.mxu0 0.0
    %1602 = vmatpush2.msra.mxu0 0.0
    %1603 = vmatprep.subr.mxu0 0.0
    %1604 = vmatpush2.msra.mxu0 0.0
    %1605 = vmatprep.subr.mxu0 0.0
    %1606 = vmatpush2.msra.mxu0 0.0
    %1607 = vmatprep.subr.mxu0 0.0
    %1608 = vmatpush2.msra.mxu0 0.0
    %1609 = vmatprep.subr.mxu0 0.0
    %1610 = vmatpush2.msra.mxu0 0.0
    %1611 = vmatprep.mubr.f32.mxu0 0.0
    %1612 = vmatmul.mubr.f32.gmra.mxu0 0.0
    %v1613 = vpop.f32.mrf.mxu0
    %v1614 = vadd.f32 0.0, %v1613
    %v1615 = vpop.f32.mrf.mxu0
    %v1616 = vadd.f32 0.0, %v1615
    %1617 = vdwg.mxu0
    %1618 = vmatprep.subr.mxu0 %v1234
    %1619 = vmatpush1.msra.mxu0 %v1233
    %1620 = vmatprep.subr.mxu0 %v1230
    %1621 = vmatpush1.msra.mxu0 %v1229
    %1622 = vmatprep.subr.mxu0 %v1226
    %1623 = vmatpush1.msra.mxu0 %v1225
    %1624 = vmatprep.subr.mxu0 %v1222
    %1625 = vmatpush1.msra.mxu0 %v1221
    %1626 = vmatprep.subr.mxu0 %v1218
    %1627 = vmatpush1.msra.mxu0 %v1217
    %1628 = vmatprep.subr.mxu0 %v1214
    %1629 = vmatpush1.msra.mxu0 %v1213
    %1630 = vmatprep.subr.mxu0 %v1210
    %1631 = vmatpush1.msra.mxu0 %v1209
    %1632 = vmatprep.subr.mxu0 %v1206
    %1633 = vmatpush1.msra.mxu0 %v1205
    %1634 = vmatprep.subr.mxu0 %v1202
    %1635 = vmatpush1.msra.mxu0 %v1201
    %1636 = vmatprep.subr.mxu0 %v1198
    %1637 = vmatpush1.msra.mxu0 %v1197
    %1638 = vmatprep.subr.mxu0 %v1194
    %1639 = vmatpush1.msra.mxu0 %v1193
    %1640 = vmatprep.subr.mxu0 %v1190
    %1641 = vmatpush1.msra.mxu0 %v1189
    %1642 = vmatprep.subr.mxu0 %v1186
    %1643 = vmatpush1.msra.mxu0 %v1185
    %1644 = vmatprep.subr.mxu0 %v1182
    %1645 = vmatpush1.msra.mxu0 %v1181
    %1646 = vmatprep.subr.mxu0 %v1178
    %1647 = vmatpush1.msra.mxu0 %v1177
    %1648 = vmatprep.subr.mxu0 %v1174
    %1649 = vmatpush1.msra.mxu0 %v1173
    %1650 = vmatprep.subr.mxu0 0.0
    %1651 = vmatpush2.msra.mxu0 0.0
    %1652 = vmatprep.subr.mxu0 0.0
    %1653 = vmatpush2.msra.mxu0 0.0
    %1654 = vmatprep.subr.mxu0 0.0
    %1655 = vmatpush2.msra.mxu0 0.0
    %1656 = vmatprep.subr.mxu0 0.0
    %1657 = vmatpush2.msra.mxu0 0.0
    %1658 = vmatprep.subr.mxu0 0.0
    %1659 = vmatpush2.msra.mxu0 0.0
    %1660 = vmatprep.subr.mxu0 0.0
    %1661 = vmatpush2.msra.mxu0 0.0
    %1662 = vmatprep.subr.mxu0 0.0
    %1663 = vmatpush2.msra.mxu0 0.0
    %1664 = vmatprep.subr.mxu0 0.0
    %1665 = vmatpush2.msra.mxu0 0.0
    %1666 = vmatprep.subr.mxu0 0.0
    %1667 = vmatpush2.msra.mxu0 0.0
    %1668 = vmatprep.subr.mxu0 0.0
    %1669 = vmatpush2.msra.mxu0 0.0
    %1670 = vmatprep.subr.mxu0 0.0
    %1671 = vmatpush2.msra.mxu0 0.0
    %1672 = vmatprep.subr.mxu0 0.0
    %1673 = vmatpush2.msra.mxu0 0.0
    %1674 = vmatprep.subr.mxu0 0.0
    %1675 = vmatpush2.msra.mxu0 0.0
    %1676 = vmatprep.subr.mxu0 0.0
    %1677 = vmatpush2.msra.mxu0 0.0
    %1678 = vmatprep.subr.mxu0 0.0
    %1679 = vmatpush2.msra.mxu0 0.0
    %1680 = vmatprep.subr.mxu0 0.0
    %1681 = vmatpush2.msra.mxu0 0.0
    %1682 = vmatprep.mubr.f32.mxu0 0.0
    %1683 = vmatmul.mubr.f32.gmra.mxu0 %v1475
    %v1684 = vpop.f32.mrf.mxu0
    %v1685 = vadd.f32 %v1543, %v1684
    %v1686 = vpop.f32.mrf.mxu0
    %v1687 = vadd.f32 %v1545, %v1686
    %1688 = vdwg.mxu0
    %1689 = vmatprep.subr.mxu0 %v1236
    %1690 = vmatpush1.msra.mxu0 %v1235
    %1691 = vmatprep.subr.mxu0 %v1232
    %1692 = vmatpush1.msra.mxu0 %v1231
    %1693 = vmatprep.subr.mxu0 %v1228
    %1694 = vmatpush1.msra.mxu0 %v1227
    %1695 = vmatprep.subr.mxu0 %v1224
    %1696 = vmatpush1.msra.mxu0 %v1223
    %1697 = vmatprep.subr.mxu0 %v1220
    %1698 = vmatpush1.msra.mxu0 %v1219
    %1699 = vmatprep.subr.mxu0 %v1216
    %1700 = vmatpush1.msra.mxu0 %v1215
    %1701 = vmatprep.subr.mxu0 %v1212
    %1702 = vmatpush1.msra.mxu0 %v1211
    %1703 = vmatprep.subr.mxu0 %v1208
    %1704 = vmatpush1.msra.mxu0 %v1207
    %1705 = vmatprep.subr.mxu0 %v1204
    %1706 = vmatpush1.msra.mxu0 %v1203
    %1707 = vmatprep.subr.mxu0 %v1200
    %1708 = vmatpush1.msra.mxu0 %v1199
    %1709 = vmatprep.subr.mxu0 %v1196
    %1710 = vmatpush1.msra.mxu0 %v1195
    %1711 = vmatprep.subr.mxu0 %v1192
    %1712 = vmatpush1.msra.mxu0 %v1191
    %1713 = vmatprep.subr.mxu0 %v1188
    %1714 = vmatpush1.msra.mxu0 %v1187
    %1715 = vmatprep.subr.mxu0 %v1184
    %1716 = vmatpush1.msra.mxu0 %v1183
    %1717 = vmatprep.subr.mxu0 %v1180
    %1718 = vmatpush1.msra.mxu0 %v1179
    %1719 = vmatprep.subr.mxu0 %v1176
    %1720 = vmatpush1.msra.mxu0 %v1175
    %1721 = vmatprep.subr.mxu0 0.0
    %1722 = vmatpush2.msra.mxu0 0.0
    %1723 = vmatprep.subr.mxu0 0.0
    %1724 = vmatpush2.msra.mxu0 0.0
    %1725 = vmatprep.subr.mxu0 0.0
    %1726 = vmatpush2.msra.mxu0 0.0
    %1727 = vmatprep.subr.mxu0 0.0
    %1728 = vmatpush2.msra.mxu0 0.0
    %1729 = vmatprep.subr.mxu0 0.0
    %1730 = vmatpush2.msra.mxu0 0.0
    %1731 = vmatprep.subr.mxu0 0.0
    %1732 = vmatpush2.msra.mxu0 0.0
    %1733 = vmatprep.subr.mxu0 0.0
    %1734 = vmatpush2.msra.mxu0 0.0
    %1735 = vmatprep.subr.mxu0 0.0
    %1736 = vmatpush2.msra.mxu0 0.0
    %1737 = vmatprep.subr.mxu0 0.0
    %1738 = vmatpush2.msra.mxu0 0.0
    %1739 = vmatprep.subr.mxu0 0.0
    %1740 = vmatpush2.msra.mxu0 0.0
    %1741 = vmatprep.subr.mxu0 0.0
    %1742 = vmatpush2.msra.mxu0 0.0
    %1743 = vmatprep.subr.mxu0 0.0
    %1744 = vmatpush2.msra.mxu0 0.0
    %1745 = vmatprep.subr.mxu0 0.0
    %1746 = vmatpush2.msra.mxu0 0.0
    %1747 = vmatprep.subr.mxu0 0.0
    %1748 = vmatpush2.msra.mxu0 0.0
    %1749 = vmatprep.subr.mxu0 0.0
    %1750 = vmatpush2.msra.mxu0 0.0
    %1751 = vmatprep.subr.mxu0 0.0
    %1752 = vmatpush2.msra.mxu0 0.0
    %1753 = vmatprep.mubr.f32.mxu0 0.0
    %1754 = vmatmul.mubr.f32.gmra.mxu0 %v1475
    %v1755 = vpop.f32.mrf.mxu0
    %v1756 = vadd.f32 %v1614, %v1755
    %v1757 = vpop.f32.mrf.mxu0
    %v1758 = vadd.f32 %v1616, %v1757
    %1759 = vdwg.mxu0
    %v1761 = vlaneseq
    %v1762 = vshrl.u32 %v1761, 7
    %v1763 = vsub.s32 0, %v1762
    %v1764 = vrot.slane %v1301, %v1763
    %v1765 = vlaneseq
    %v1766 = vshrl.u32 %v1765, 7
    %v1767 = vsub.s32 1, %v1766
    %v1768 = vrot.slane %v1301, %v1767
    %v1769 = vlaneseq
    %v1770 = vshrl.u32 %v1769, 7
    %v1771 = vsub.s32 2, %v1770
    %v1772 = vrot.slane %v1301, %v1771
    %v1773 = vlaneseq
    %v1774 = vshrl.u32 %v1773, 7
    %v1775 = vsub.s32 3, %v1774
    %v1776 = vrot.slane %v1301, %v1775
    %v1781 = vadd.f32 %v1685, %v1764
    %v1782 = vadd.f32 %v1687, %v1768
    %v1783 = vadd.f32 %v1756, %v1772
    %v1784 = vadd.f32 %v1758, %v1776
    %v1785 = vxor.u32 %v1781, 2147483648
    %v1786 = vmul.f32 %v1785, 1.442695
    %v1787 = vpow.pop %v1786
    %v1788 = vadd.f32 %v1787, 1.0
    %v1789 = vrcp.pop %v1788
    %v1790 = vmul.f32 1.0, %v1789
    %v1791 = vxor.u32 %v1782, 2147483648
    %v1792 = vmul.f32 %v1791, 1.442695
    %v1793 = vpow.pop %v1792
    %v1794 = vadd.f32 %v1793, 1.0
    %v1795 = vrcp.pop %v1794
    %v1796 = vmul.f32 1.0, %v1795
    %v1797 = vtanh.pop %v1783
    %v1798 = vxor.u32 %v1784, 2147483648
    %v1799 = vmul.f32 %v1798, 1.442695
    %v1800 = vpow.pop %v1799
    %v1801 = vadd.f32 %v1800, 1.0
    %v1802 = vrcp.pop %v1801
    %v1803 = vmul.f32 1.0, %v1802
    %v1804 = vmul.f32 %v1796, 0.0
    %v1805 = vmul.f32 %v1790, %v1797
    %v1806 = vadd.f32 %v1804, %v1805
    %v1807 = vtanh.pop %v1806
    %v1808 = vmul.f32 %v1803, %v1807
    %v1813 = vrot.slane %v1034, 6
    %v1814 = vrot.slane %v1036, 6
    %v1815 = vrot.slane %v1105, 6
    %v1816 = vrot.slane %v1107, 6
    %v1821 = vadd.f32 %v898, %v1813
    %v1822 = vadd.f32 %v899, %v1814
    %v1823 = vadd.f32 %v900, %v1815
    %v1824 = vadd.f32 %v901, %v1816
    %1825 = vmatprep.subr.mxu0 %v1170
    %1826 = vmatpush1.msra.mxu0 %v1169
    %1827 = vmatprep.subr.mxu0 %v1166
    %1828 = vmatpush1.msra.mxu0 %v1165
    %1829 = vmatprep.subr.mxu0 %v1162
    %1830 = vmatpush1.msra.mxu0 %v1161
    %1831 = vmatprep.subr.mxu0 %v1158
    %1832 = vmatpush1.msra.mxu0 %v1157
    %1833 = vmatprep.subr.mxu0 %v1154
    %1834 = vmatpush1.msra.mxu0 %v1153
    %1835 = vmatprep.subr.mxu0 %v1150
    %1836 = vmatpush1.msra.mxu0 %v1149
    %1837 = vmatprep.subr.mxu0 %v1146
    %1838 = vmatpush1.msra.mxu0 %v1145
    %1839 = vmatprep.subr.mxu0 %v1142
    %1840 = vmatpush1.msra.mxu0 %v1141
    %1841 = vmatprep.subr.mxu0 %v1138
    %1842 = vmatpush1.msra.mxu0 %v1137
    %1843 = vmatprep.subr.mxu0 %v1134
    %1844 = vmatpush1.msra.mxu0 %v1133
    %1845 = vmatprep.subr.mxu0 %v1130
    %1846 = vmatpush1.msra.mxu0 %v1129
    %1847 = vmatprep.subr.mxu0 %v1126
    %1848 = vmatpush1.msra.mxu0 %v1125
    %1849 = vmatprep.subr.mxu0 %v1122
    %1850 = vmatpush1.msra.mxu0 %v1121
    %1851 = vmatprep.subr.mxu0 %v1118
    %1852 = vmatpush1.msra.mxu0 %v1117
    %1853 = vmatprep.subr.mxu0 %v1114
    %1854 = vmatpush1.msra.mxu0 %v1113
    %1855 = vmatprep.subr.mxu0 %v1110
    %1856 = vmatpush1.msra.mxu0 %v1109
    %1857 = vmatprep.subr.mxu0 0.0
    %1858 = vmatpush2.msra.mxu0 0.0
    %1859 = vmatprep.subr.mxu0 0.0
    %1860 = vmatpush2.msra.mxu0 0.0
    %1861 = vmatprep.subr.mxu0 0.0
    %1862 = vmatpush2.msra.mxu0 0.0
    %1863 = vmatprep.subr.mxu0 0.0
    %1864 = vmatpush2.msra.mxu0 0.0
    %1865 = vmatprep.subr.mxu0 0.0
    %1866 = vmatpush2.msra.mxu0 0.0
    %1867 = vmatprep.subr.mxu0 0.0
    %1868 = vmatpush2.msra.mxu0 0.0
    %1869 = vmatprep.subr.mxu0 0.0
    %1870 = vmatpush2.msra.mxu0 0.0
    %1871 = vmatprep.subr.mxu0 0.0
    %1872 = vmatpush2.msra.mxu0 0.0
    %1873 = vmatprep.subr.mxu0 0.0
    %1874 = vmatpush2.msra.mxu0 0.0
    %1875 = vmatprep.subr.mxu0 0.0
    %1876 = vmatpush2.msra.mxu0 0.0
    %1877 = vmatprep.subr.mxu0 0.0
    %1878 = vmatpush2.msra.mxu0 0.0
    %1879 = vmatprep.subr.mxu0 0.0
    %1880 = vmatpush2.msra.mxu0 0.0
    %1881 = vmatprep.subr.mxu0 0.0
    %1882 = vmatpush2.msra.mxu0 0.0
    %1883 = vmatprep.subr.mxu0 0.0
    %1884 = vmatpush2.msra.mxu0 0.0
    %1885 = vmatprep.subr.mxu0 0.0
    %1886 = vmatpush2.msra.mxu0 0.0
    %1887 = vmatprep.subr.mxu0 0.0
    %1888 = vmatpush2.msra.mxu0 0.0
    %1889 = vmatprep.mubr.f32.mxu0 0.0
    %1890 = vmatmul.mubr.f32.gmra.mxu0 %v1475
    %v1891 = vpop.f32.mrf.mxu0
    %v1892 = vadd.f32 0.0, %v1891
    %v1893 = vpop.f32.mrf.mxu0
    %v1894 = vadd.f32 0.0, %v1893
    %1895 = vdwg.mxu0
    %1896 = vmatprep.subr.mxu0 %v1172
    %1897 = vmatpush1.msra.mxu0 %v1171
    %1898 = vmatprep.subr.mxu0 %v1168
    %1899 = vmatpush1.msra.mxu0 %v1167
    %1900 = vmatprep.subr.mxu0 %v1164
    %1901 = vmatpush1.msra.mxu0 %v1163
    %1902 = vmatprep.subr.mxu0 %v1160
    %1903 = vmatpush1.msra.mxu0 %v1159
    %1904 = vmatprep.subr.mxu0 %v1156
    %1905 = vmatpush1.msra.mxu0 %v1155
    %1906 = vmatprep.subr.mxu0 %v1152
    %1907 = vmatpush1.msra.mxu0 %v1151
    %1908 = vmatprep.subr.mxu0 %v1148
    %1909 = vmatpush1.msra.mxu0 %v1147
    %1910 = vmatprep.subr.mxu0 %v1144
    %1911 = vmatpush1.msra.mxu0 %v1143
    %1912 = vmatprep.subr.mxu0 %v1140
    %1913 = vmatpush1.msra.mxu0 %v1139
    %1914 = vmatprep.subr.mxu0 %v1136
    %1915 = vmatpush1.msra.mxu0 %v1135
    %1916 = vmatprep.subr.mxu0 %v1132
    %1917 = vmatpush1.msra.mxu0 %v1131
    %1918 = vmatprep.subr.mxu0 %v1128
    %1919 = vmatpush1.msra.mxu0 %v1127
    %1920 = vmatprep.subr.mxu0 %v1124
    %1921 = vmatpush1.msra.mxu0 %v1123
    %1922 = vmatprep.subr.mxu0 %v1120
    %1923 = vmatpush1.msra.mxu0 %v1119
    %1924 = vmatprep.subr.mxu0 %v1116
    %1925 = vmatpush1.msra.mxu0 %v1115
    %1926 = vmatprep.subr.mxu0 %v1112
    %1927 = vmatpush1.msra.mxu0 %v1111
    %1928 = vmatprep.subr.mxu0 0.0
    %1929 = vmatpush2.msra.mxu0 0.0
    %1930 = vmatprep.subr.mxu0 0.0
    %1931 = vmatpush2.msra.mxu0 0.0
    %1932 = vmatprep.subr.mxu0 0.0
    %1933 = vmatpush2.msra.mxu0 0.0
    %1934 = vmatprep.subr.mxu0 0.0
    %1935 = vmatpush2.msra.mxu0 0.0
    %1936 = vmatprep.subr.mxu0 0.0
    %1937 = vmatpush2.msra.mxu0 0.0
    %1938 = vmatprep.subr.mxu0 0.0
    %1939 = vmatpush2.msra.mxu0 0.0
    %1940 = vmatprep.subr.mxu0 0.0
    %1941 = vmatpush2.msra.mxu0 0.0
    %1942 = vmatprep.subr.mxu0 0.0
    %1943 = vmatpush2.msra.mxu0 0.0
    %1944 = vmatprep.subr.mxu0 0.0
    %1945 = vmatpush2.msra.mxu0 0.0
    %1946 = vmatprep.subr.mxu0 0.0
    %1947 = vmatpush2.msra.mxu0 0.0
    %1948 = vmatprep.subr.mxu0 0.0
    %1949 = vmatpush2.msra.mxu0 0.0
    %1950 = vmatprep.subr.mxu0 0.0
    %1951 = vmatpush2.msra.mxu0 0.0
    %1952 = vmatprep.subr.mxu0 0.0
    %1953 = vmatpush2.msra.mxu0 0.0
    %1954 = vmatprep.subr.mxu0 0.0
    %1955 = vmatpush2.msra.mxu0 0.0
    %1956 = vmatprep.subr.mxu0 0.0
    %1957 = vmatpush2.msra.mxu0 0.0
    %1958 = vmatprep.subr.mxu0 0.0
    %1959 = vmatpush2.msra.mxu0 0.0
    %1960 = vmatprep.mubr.f32.mxu0 0.0
    %1961 = vmatmul.mubr.f32.gmra.mxu0 %v1475
    %v1962 = vpop.f32.mrf.mxu0
    %v1963 = vadd.f32 0.0, %v1962
    %v1964 = vpop.f32.mrf.mxu0
    %v1965 = vadd.f32 0.0, %v1964
    %1966 = vdwg.mxu0
    %v1971 = vrot.slane %v1892, 6
    %v1972 = vrot.slane %v1894, 6
    %v1973 = vrot.slane %v1963, 6
    %v1974 = vrot.slane %v1965, 6
    %v1979 = vadd.f32 %v1821, %v1971
    %v1980 = vadd.f32 %v1822, %v1972
    %v1981 = vadd.f32 %v1823, %v1973
    %v1982 = vadd.f32 %v1824, %v1974
    %v1983 = vxor.u32 %v1979, 2147483648
    %v1984 = vmul.f32 %v1983, 1.442695
    %v1985 = vpow.pop %v1984
    %v1986 = vadd.f32 %v1985, 1.0
    %v1987 = vrcp.pop %v1986
    %v1988 = vmul.f32 1.0, %v1987
    %v1989 = vxor.u32 %v1980, 2147483648
    %v1990 = vmul.f32 %v1989, 1.442695
    %v1991 = vpow.pop %v1990
    %v1992 = vadd.f32 %v1991, 1.0
    %v1993 = vrcp.pop %v1992
    %v1994 = vmul.f32 1.0, %v1993
    %v1995 = vtanh.pop %v1981
    %v1996 = vxor.u32 %v1982, 2147483648
    %v1997 = vmul.f32 %v1996, 1.442695
    %v1998 = vpow.pop %v1997
    %v1999 = vadd.f32 %v1998, 1.0
    %v2000 = vrcp.pop %v1999
    %v2001 = vmul.f32 1.0, %v2000
    %v2003 = vrot.slane %v1473, 6
    %v2005 = vmul.f32 %v1994, %v2003
    %v2006 = vmul.f32 %v1988, %v1995
    %v2007 = vadd.f32 %v2005, %v2006
    %v2008 = vtanh.pop %v2007
    %v2009 = vmul.f32 %v2001, %v2008
    %2010 = vmatprep.subr.mxu0 %v1298
    %2011 = vmatpush1.msra.mxu0 %v1297
    %2012 = vmatprep.subr.mxu0 %v1294
    %2013 = vmatpush1.msra.mxu0 %v1293
    %2014 = vmatprep.subr.mxu0 %v1290
    %2015 = vmatpush1.msra.mxu0 %v1289
    %2016 = vmatprep.subr.mxu0 %v1286
    %2017 = vmatpush1.msra.mxu0 %v1285
    %2018 = vmatprep.subr.mxu0 %v1282
    %2019 = vmatpush1.msra.mxu0 %v1281
    %2020 = vmatprep.subr.mxu0 %v1278
    %2021 = vmatpush1.msra.mxu0 %v1277
    %2022 = vmatprep.subr.mxu0 %v1274
    %2023 = vmatpush1.msra.mxu0 %v1273
    %2024 = vmatprep.subr.mxu0 %v1270
    %2025 = vmatpush1.msra.mxu0 %v1269
    %2026 = vmatprep.subr.mxu0 %v1266
    %2027 = vmatpush1.msra.mxu0 %v1265
    %2028 = vmatprep.subr.mxu0 %v1262
    %2029 = vmatpush1.msra.mxu0 %v1261
    %2030 = vmatprep.subr.mxu0 %v1258
    %2031 = vmatpush1.msra.mxu0 %v1257
    %2032 = vmatprep.subr.mxu0 %v1254
    %2033 = vmatpush1.msra.mxu0 %v1253
    %2034 = vmatprep.subr.mxu0 %v1250
    %2035 = vmatpush1.msra.mxu0 %v1249
    %2036 = vmatprep.subr.mxu0 %v1246
    %2037 = vmatpush1.msra.mxu0 %v1245
    %2038 = vmatprep.subr.mxu0 %v1242
    %2039 = vmatpush1.msra.mxu0 %v1241
    %2040 = vmatprep.subr.mxu0 %v1238
    %2041 = vmatpush1.msra.mxu0 %v1237
    %2042 = vmatprep.subr.mxu0 0.0
    %2043 = vmatpush2.msra.mxu0 0.0
    %2044 = vmatprep.subr.mxu0 0.0
    %2045 = vmatpush2.msra.mxu0 0.0
    %2046 = vmatprep.subr.mxu0 0.0
    %2047 = vmatpush2.msra.mxu0 0.0
    %2048 = vmatprep.subr.mxu0 0.0
    %2049 = vmatpush2.msra.mxu0 0.0
    %2050 = vmatprep.subr.mxu0 0.0
    %2051 = vmatpush2.msra.mxu0 0.0
    %2052 = vmatprep.subr.mxu0 0.0
    %2053 = vmatpush2.msra.mxu0 0.0
    %2054 = vmatprep.subr.mxu0 0.0
    %2055 = vmatpush2.msra.mxu0 0.0
    %2056 = vmatprep.subr.mxu0 0.0
    %2057 = vmatpush2.msra.mxu0 0.0
    %2058 = vmatprep.subr.mxu0 0.0
    %2059 = vmatpush2.msra.mxu0 0.0
    %2060 = vmatprep.subr.mxu0 0.0
    %2061 = vmatpush2.msra.mxu0 0.0
    %2062 = vmatprep.subr.mxu0 0.0
    %2063 = vmatpush2.msra.mxu0 0.0
    %2064 = vmatprep.subr.mxu0 0.0
    %2065 = vmatpush2.msra.mxu0 0.0
    %2066 = vmatprep.subr.mxu0 0.0
    %2067 = vmatpush2.msra.mxu0 0.0
    %2068 = vmatprep.subr.mxu0 0.0
    %2069 = vmatpush2.msra.mxu0 0.0
    %2070 = vmatprep.subr.mxu0 0.0
    %2071 = vmatpush2.msra.mxu0 0.0
    %2072 = vmatprep.subr.mxu0 0.0
    %2073 = vmatpush2.msra.mxu0 0.0
    %2074 = vmatprep.mubr.f32.mxu0 0.0
    %2075 = vmatmul.mubr.f32.gmra.mxu0 %v1808
    %v2076 = vpop.f32.mrf.mxu0
    %v2077 = vadd.f32 0.0, %v2076
    %v2078 = vpop.f32.mrf.mxu0
    %v2079 = vadd.f32 0.0, %v2078
    %2080 = vdwg.mxu0
    %2081 = vmatprep.subr.mxu0 %v1300
    %2082 = vmatpush1.msra.mxu0 %v1299
    %2083 = vmatprep.subr.mxu0 %v1296
    %2084 = vmatpush1.msra.mxu0 %v1295
    %2085 = vmatprep.subr.mxu0 %v1292
    %2086 = vmatpush1.msra.mxu0 %v1291
    %2087 = vmatprep.subr.mxu0 %v1288
    %2088 = vmatpush1.msra.mxu0 %v1287
    %2089 = vmatprep.subr.mxu0 %v1284
    %2090 = vmatpush1.msra.mxu0 %v1283
    %2091 = vmatprep.subr.mxu0 %v1280
    %2092 = vmatpush1.msra.mxu0 %v1279
    %2093 = vmatprep.subr.mxu0 %v1276
    %2094 = vmatpush1.msra.mxu0 %v1275
    %2095 = vmatprep.subr.mxu0 %v1272
    %2096 = vmatpush1.msra.mxu0 %v1271
    %2097 = vmatprep.subr.mxu0 %v1268
    %2098 = vmatpush1.msra.mxu0 %v1267
    %2099 = vmatprep.subr.mxu0 %v1264
    %2100 = vmatpush1.msra.mxu0 %v1263
    %2101 = vmatprep.subr.mxu0 %v1260
    %2102 = vmatpush1.msra.mxu0 %v1259
    %2103 = vmatprep.subr.mxu0 %v1256
    %2104 = vmatpush1.msra.mxu0 %v1255
    %2105 = vmatprep.subr.mxu0 %v1252
    %2106 = vmatpush1.msra.mxu0 %v1251
    %2107 = vmatprep.subr.mxu0 %v1248
    %2108 = vmatpush1.msra.mxu0 %v1247
    %2109 = vmatprep.subr.mxu0 %v1244
    %2110 = vmatpush1.msra.mxu0 %v1243
    %2111 = vmatprep.subr.mxu0 %v1240
    %2112 = vmatpush1.msra.mxu0 %v1239
    %2113 = vmatprep.subr.mxu0 0.0
    %2114 = vmatpush2.msra.mxu0 0.0
    %2115 = vmatprep.subr.mxu0 0.0
    %2116 = vmatpush2.msra.mxu0 0.0
    %2117 = vmatprep.subr.mxu0 0.0
    %2118 = vmatpush2.msra.mxu0 0.0
    %2119 = vmatprep.subr.mxu0 0.0
    %2120 = vmatpush2.msra.mxu0 0.0
    %2121 = vmatprep.subr.mxu0 0.0
    %2122 = vmatpush2.msra.mxu0 0.0
    %2123 = vmatprep.subr.mxu0 0.0
    %2124 = vmatpush2.msra.mxu0 0.0
    %2125 = vmatprep.subr.mxu0 0.0
    %2126 = vmatpush2.msra.mxu0 0.0
    %2127 = vmatprep.subr.mxu0 0.0
    %2128 = vmatpush2.msra.mxu0 0.0
    %2129 = vmatprep.subr.mxu0 0.0
    %2130 = vmatpush2.msra.mxu0 0.0
    %2131 = vmatprep.subr.mxu0 0.0
    %2132 = vmatpush2.msra.mxu0 0.0
    %2133 = vmatprep.subr.mxu0 0.0
    %2134 = vmatpush2.msra.mxu0 0.0
    %2135 = vmatprep.subr.mxu0 0.0
    %2136 = vmatpush2.msra.mxu0 0.0
    %2137 = vmatprep.subr.mxu0 0.0
    %2138 = vmatpush2.msra.mxu0 0.0
    %2139 = vmatprep.subr.mxu0 0.0
    %2140 = vmatpush2.msra.mxu0 0.0
    %2141 = vmatprep.subr.mxu0 0.0
    %2142 = vmatpush2.msra.mxu0 0.0
    %2143 = vmatprep.subr.mxu0 0.0
    %2144 = vmatpush2.msra.mxu0 0.0
    %2145 = vmatprep.mubr.f32.mxu0 0.0
    %2146 = vmatmul.mubr.f32.gmra.mxu0 %v1808
    %v2147 = vpop.f32.mrf.mxu0
    %v2148 = vadd.f32 0.0, %v2147
    %v2149 = vpop.f32.mrf.mxu0
    %v2150 = vadd.f32 0.0, %v2149
    %2151 = vdwg.mxu0
    %v2153 = vrot.slane %v2009, 2
    %2155 = vmatprep.subr.mxu0 %v1234
    %2156 = vmatpush1.msra.mxu0 %v1233
    %2157 = vmatprep.subr.mxu0 %v1230
    %2158 = vmatpush1.msra.mxu0 %v1229
    %2159 = vmatprep.subr.mxu0 %v1226
    %2160 = vmatpush1.msra.mxu0 %v1225
    %2161 = vmatprep.subr.mxu0 %v1222
    %2162 = vmatpush1.msra.mxu0 %v1221
    %2163 = vmatprep.subr.mxu0 %v1218
    %2164 = vmatpush1.msra.mxu0 %v1217
    %2165 = vmatprep.subr.mxu0 %v1214
    %2166 = vmatpush1.msra.mxu0 %v1213
    %2167 = vmatprep.subr.mxu0 %v1210
    %2168 = vmatpush1.msra.mxu0 %v1209
    %2169 = vmatprep.subr.mxu0 %v1206
    %2170 = vmatpush1.msra.mxu0 %v1205
    %2171 = vmatprep.subr.mxu0 %v1202
    %2172 = vmatpush1.msra.mxu0 %v1201
    %2173 = vmatprep.subr.mxu0 %v1198
    %2174 = vmatpush1.msra.mxu0 %v1197
    %2175 = vmatprep.subr.mxu0 %v1194
    %2176 = vmatpush1.msra.mxu0 %v1193
    %2177 = vmatprep.subr.mxu0 %v1190
    %2178 = vmatpush1.msra.mxu0 %v1189
    %2179 = vmatprep.subr.mxu0 %v1186
    %2180 = vmatpush1.msra.mxu0 %v1185
    %2181 = vmatprep.subr.mxu0 %v1182
    %2182 = vmatpush1.msra.mxu0 %v1181
    %2183 = vmatprep.subr.mxu0 %v1178
    %2184 = vmatpush1.msra.mxu0 %v1177
    %2185 = vmatprep.subr.mxu0 %v1174
    %2186 = vmatpush1.msra.mxu0 %v1173
    %2187 = vmatprep.subr.mxu0 0.0
    %2188 = vmatpush2.msra.mxu0 0.0
    %2189 = vmatprep.subr.mxu0 0.0
    %2190 = vmatpush2.msra.mxu0 0.0
    %2191 = vmatprep.subr.mxu0 0.0
    %2192 = vmatpush2.msra.mxu0 0.0
    %2193 = vmatprep.subr.mxu0 0.0
    %2194 = vmatpush2.msra.mxu0 0.0
    %2195 = vmatprep.subr.mxu0 0.0
    %2196 = vmatpush2.msra.mxu0 0.0
    %2197 = vmatprep.subr.mxu0 0.0
    %2198 = vmatpush2.msra.mxu0 0.0
    %2199 = vmatprep.subr.mxu0 0.0
    %2200 = vmatpush2.msra.mxu0 0.0
    %2201 = vmatprep.subr.mxu0 0.0
    %2202 = vmatpush2.msra.mxu0 0.0
    %2203 = vmatprep.subr.mxu0 0.0
    %2204 = vmatpush2.msra.mxu0 0.0
    %2205 = vmatprep.subr.mxu0 0.0
    %2206 = vmatpush2.msra.mxu0 0.0
    %2207 = vmatprep.subr.mxu0 0.0
    %2208 = vmatpush2.msra.mxu0 0.0
    %2209 = vmatprep.subr.mxu0 0.0
    %2210 = vmatpush2.msra.mxu0 0.0
    %2211 = vmatprep.subr.mxu0 0.0
    %2212 = vmatpush2.msra.mxu0 0.0
    %2213 = vmatprep.subr.mxu0 0.0
    %2214 = vmatpush2.msra.mxu0 0.0
    %2215 = vmatprep.subr.mxu0 0.0
    %2216 = vmatpush2.msra.mxu0 0.0
    %2217 = vmatprep.subr.mxu0 0.0
    %2218 = vmatpush2.msra.mxu0 0.0
    %2219 = vmatprep.mubr.f32.mxu0 0.0
    %2220 = vmatmul.mubr.f32.gmra.mxu0 %v2153
    %v2221 = vpop.f32.mrf.mxu0
    %v2222 = vadd.f32 %v2077, %v2221
    %v2223 = vpop.f32.mrf.mxu0
    %v2224 = vadd.f32 %v2079, %v2223
    %2225 = vdwg.mxu0
    %2226 = vmatprep.subr.mxu0 %v1236
    %2227 = vmatpush1.msra.mxu0 %v1235
    %2228 = vmatprep.subr.mxu0 %v1232
    %2229 = vmatpush1.msra.mxu0 %v1231
    %2230 = vmatprep.subr.mxu0 %v1228
    %2231 = vmatpush1.msra.mxu0 %v1227
    %2232 = vmatprep.subr.mxu0 %v1224
    %2233 = vmatpush1.msra.mxu0 %v1223
    %2234 = vmatprep.subr.mxu0 %v1220
    %2235 = vmatpush1.msra.mxu0 %v1219
    %2236 = vmatprep.subr.mxu0 %v1216
    %2237 = vmatpush1.msra.mxu0 %v1215
    %2238 = vmatprep.subr.mxu0 %v1212
    %2239 = vmatpush1.msra.mxu0 %v1211
    %2240 = vmatprep.subr.mxu0 %v1208
    %2241 = vmatpush1.msra.mxu0 %v1207
    %2242 = vmatprep.subr.mxu0 %v1204
    %2243 = vmatpush1.msra.mxu0 %v1203
    %2244 = vmatprep.subr.mxu0 %v1200
    %2245 = vmatpush1.msra.mxu0 %v1199
    %2246 = vmatprep.subr.mxu0 %v1196
    %2247 = vmatpush1.msra.mxu0 %v1195
    %2248 = vmatprep.subr.mxu0 %v1192
    %2249 = vmatpush1.msra.mxu0 %v1191
    %2250 = vmatprep.subr.mxu0 %v1188
    %2251 = vmatpush1.msra.mxu0 %v1187
    %2252 = vmatprep.subr.mxu0 %v1184
    %2253 = vmatpush1.msra.mxu0 %v1183
    %2254 = vmatprep.subr.mxu0 %v1180
    %2255 = vmatpush1.msra.mxu0 %v1179
    %2256 = vmatprep.subr.mxu0 %v1176
    %2257 = vmatpush1.msra.mxu0 %v1175
    %2258 = vmatprep.subr.mxu0 0.0
    %2259 = vmatpush2.msra.mxu0 0.0
    %2260 = vmatprep.subr.mxu0 0.0
    %2261 = vmatpush2.msra.mxu0 0.0
    %2262 = vmatprep.subr.mxu0 0.0
    %2263 = vmatpush2.msra.mxu0 0.0
    %2264 = vmatprep.subr.mxu0 0.0
    %2265 = vmatpush2.msra.mxu0 0.0
    %2266 = vmatprep.subr.mxu0 0.0
    %2267 = vmatpush2.msra.mxu0 0.0
    %2268 = vmatprep.subr.mxu0 0.0
    %2269 = vmatpush2.msra.mxu0 0.0
    %2270 = vmatprep.subr.mxu0 0.0
    %2271 = vmatpush2.msra.mxu0 0.0
    %2272 = vmatprep.subr.mxu0 0.0
    %2273 = vmatpush2.msra.mxu0 0.0
    %2274 = vmatprep.subr.mxu0 0.0
    %2275 = vmatpush2.msra.mxu0 0.0
    %2276 = vmatprep.subr.mxu0 0.0
    %2277 = vmatpush2.msra.mxu0 0.0
    %2278 = vmatprep.subr.mxu0 0.0
    %2279 = vmatpush2.msra.mxu0 0.0
    %2280 = vmatprep.subr.mxu0 0.0
    %2281 = vmatpush2.msra.mxu0 0.0
    %2282 = vmatprep.subr.mxu0 0.0
    %2283 = vmatpush2.msra.mxu0 0.0
    %2284 = vmatprep.subr.mxu0 0.0
    %2285 = vmatpush2.msra.mxu0 0.0
    %2286 = vmatprep.subr.mxu0 0.0
    %2287 = vmatpush2.msra.mxu0 0.0
    %2288 = vmatprep.subr.mxu0 0.0
    %2289 = vmatpush2.msra.mxu0 0.0
    %2290 = vmatprep.mubr.f32.mxu0 0.0
    %2291 = vmatmul.mubr.f32.gmra.mxu0 %v2153
    %v2292 = vpop.f32.mrf.mxu0
    %v2293 = vadd.f32 %v2148, %v2292
    %v2294 = vpop.f32.mrf.mxu0
    %v2295 = vadd.f32 %v2150, %v2294
    %2296 = vdwg.mxu0
    %v2297 = vadd.f32 %v2222, %v1764
    %v2298 = vadd.f32 %v2224, %v1768
    %v2299 = vadd.f32 %v2293, %v1772
    %v2300 = vadd.f32 %v2295, %v1776
    %v2301 = vxor.u32 %v2297, 2147483648
    %v2302 = vmul.f32 %v2301, 1.442695
    %v2303 = vpow.pop %v2302
    %v2304 = vadd.f32 %v2303, 1.0
    %v2305 = vrcp.pop %v2304
    %v2306 = vmul.f32 1.0, %v2305
    %v2307 = vxor.u32 %v2298, 2147483648
    %v2308 = vmul.f32 %v2307, 1.442695
    %v2309 = vpow.pop %v2308
    %v2310 = vadd.f32 %v2309, 1.0
    %v2311 = vrcp.pop %v2310
    %v2312 = vmul.f32 1.0, %v2311
    %v2313 = vtanh.pop %v2299
    %v2314 = vxor.u32 %v2300, 2147483648
    %v2315 = vmul.f32 %v2314, 1.442695
    %v2316 = vpow.pop %v2315
    %v2317 = vadd.f32 %v2316, 1.0
    %v2318 = vrcp.pop %v2317
    %v2319 = vmul.f32 1.0, %v2318
    %v2320 = vmul.f32 %v2312, %v1806
    %v2321 = vmul.f32 %v2306, %v2313
    %v2322 = vadd.f32 %v2320, %v2321
    %v2323 = vtanh.pop %v2322
    %v2324 = vmul.f32 %v2319, %v2323
    %v2325 = vrot.slane %v1034, 4
    %v2326 = vrot.slane %v1036, 4
    %v2327 = vrot.slane %v1105, 4
    %v2328 = vrot.slane %v1107, 4
    %v2333 = vadd.f32 %v898, %v2325
    %v2334 = vadd.f32 %v899, %v2326
    %v2335 = vadd.f32 %v900, %v2327
    %v2336 = vadd.f32 %v901, %v2328
    %2337 = vmatprep.subr.mxu0 %v1170
    %2338 = vmatpush1.msra.mxu0 %v1169
    %2339 = vmatprep.subr.mxu0 %v1166
    %2340 = vmatpush1.msra.mxu0 %v1165
    %2341 = vmatprep.subr.mxu0 %v1162
    %2342 = vmatpush1.msra.mxu0 %v1161
    %2343 = vmatprep.subr.mxu0 %v1158
    %2344 = vmatpush1.msra.mxu0 %v1157
    %2345 = vmatprep.subr.mxu0 %v1154
    %2346 = vmatpush1.msra.mxu0 %v1153
    %2347 = vmatprep.subr.mxu0 %v1150
    %2348 = vmatpush1.msra.mxu0 %v1149
    %2349 = vmatprep.subr.mxu0 %v1146
    %2350 = vmatpush1.msra.mxu0 %v1145
    %2351 = vmatprep.subr.mxu0 %v1142
    %2352 = vmatpush1.msra.mxu0 %v1141
    %2353 = vmatprep.subr.mxu0 %v1138
    %2354 = vmatpush1.msra.mxu0 %v1137
    %2355 = vmatprep.subr.mxu0 %v1134
    %2356 = vmatpush1.msra.mxu0 %v1133
    %2357 = vmatprep.subr.mxu0 %v1130
    %2358 = vmatpush1.msra.mxu0 %v1129
    %2359 = vmatprep.subr.mxu0 %v1126
    %2360 = vmatpush1.msra.mxu0 %v1125
    %2361 = vmatprep.subr.mxu0 %v1122
    %2362 = vmatpush1.msra.mxu0 %v1121
    %2363 = vmatprep.subr.mxu0 %v1118
    %2364 = vmatpush1.msra.mxu0 %v1117
    %2365 = vmatprep.subr.mxu0 %v1114
    %2366 = vmatpush1.msra.mxu0 %v1113
    %2367 = vmatprep.subr.mxu0 %v1110
    %2368 = vmatpush1.msra.mxu0 %v1109
    %2369 = vmatprep.subr.mxu0 0.0
    %2370 = vmatpush2.msra.mxu0 0.0
    %2371 = vmatprep.subr.mxu0 0.0
    %2372 = vmatpush2.msra.mxu0 0.0
    %2373 = vmatprep.subr.mxu0 0.0
    %2374 = vmatpush2.msra.mxu0 0.0
    %2375 = vmatprep.subr.mxu0 0.0
    %2376 = vmatpush2.msra.mxu0 0.0
    %2377 = vmatprep.subr.mxu0 0.0
    %2378 = vmatpush2.msra.mxu0 0.0
    %2379 = vmatprep.subr.mxu0 0.0
    %2380 = vmatpush2.msra.mxu0 0.0
    %2381 = vmatprep.subr.mxu0 0.0
    %2382 = vmatpush2.msra.mxu0 0.0
    %2383 = vmatprep.subr.mxu0 0.0
    %2384 = vmatpush2.msra.mxu0 0.0
    %2385 = vmatprep.subr.mxu0 0.0
    %2386 = vmatpush2.msra.mxu0 0.0
    %2387 = vmatprep.subr.mxu0 0.0
    %2388 = vmatpush2.msra.mxu0 0.0
    %2389 = vmatprep.subr.mxu0 0.0
    %2390 = vmatpush2.msra.mxu0 0.0
    %2391 = vmatprep.subr.mxu0 0.0
    %2392 = vmatpush2.msra.mxu0 0.0
    %2393 = vmatprep.subr.mxu0 0.0
    %2394 = vmatpush2.msra.mxu0 0.0
    %2395 = vmatprep.subr.mxu0 0.0
    %2396 = vmatpush2.msra.mxu0 0.0
    %2397 = vmatprep.subr.mxu0 0.0
    %2398 = vmatpush2.msra.mxu0 0.0
    %2399 = vmatprep.subr.mxu0 0.0
    %2400 = vmatpush2.msra.mxu0 0.0
    %2401 = vmatprep.mubr.f32.mxu0 0.0
    %2402 = vmatmul.mubr.f32.gmra.mxu0 %v2153
    %v2403 = vpop.f32.mrf.mxu0
    %v2404 = vadd.f32 0.0, %v2403
    %v2405 = vpop.f32.mrf.mxu0
    %v2406 = vadd.f32 0.0, %v2405
    %2407 = vdwg.mxu0
    %2408 = vmatprep.subr.mxu0 %v1172
    %2409 = vmatpush1.msra.mxu0 %v1171
    %2410 = vmatprep.subr.mxu0 %v1168
    %2411 = vmatpush1.msra.mxu0 %v1167
    %2412 = vmatprep.subr.mxu0 %v1164
    %2413 = vmatpush1.msra.mxu0 %v1163
    %2414 = vmatprep.subr.mxu0 %v1160
    %2415 = vmatpush1.msra.mxu0 %v1159
    %2416 = vmatprep.subr.mxu0 %v1156
    %2417 = vmatpush1.msra.mxu0 %v1155
    %2418 = vmatprep.subr.mxu0 %v1152
    %2419 = vmatpush1.msra.mxu0 %v1151
    %2420 = vmatprep.subr.mxu0 %v1148
    %2421 = vmatpush1.msra.mxu0 %v1147
    %2422 = vmatprep.subr.mxu0 %v1144
    %2423 = vmatpush1.msra.mxu0 %v1143
    %2424 = vmatprep.subr.mxu0 %v1140
    %2425 = vmatpush1.msra.mxu0 %v1139
    %2426 = vmatprep.subr.mxu0 %v1136
    %2427 = vmatpush1.msra.mxu0 %v1135
    %2428 = vmatprep.subr.mxu0 %v1132
    %2429 = vmatpush1.msra.mxu0 %v1131
    %2430 = vmatprep.subr.mxu0 %v1128
    %2431 = vmatpush1.msra.mxu0 %v1127
    %2432 = vmatprep.subr.mxu0 %v1124
    %2433 = vmatpush1.msra.mxu0 %v1123
    %2434 = vmatprep.subr.mxu0 %v1120
    %2435 = vmatpush1.msra.mxu0 %v1119
    %2436 = vmatprep.subr.mxu0 %v1116
    %2437 = vmatpush1.msra.mxu0 %v1115
    %2438 = vmatprep.subr.mxu0 %v1112
    %2439 = vmatpush1.msra.mxu0 %v1111
    %2440 = vmatprep.subr.mxu0 0.0
    %2441 = vmatpush2.msra.mxu0 0.0
    %2442 = vmatprep.subr.mxu0 0.0
    %2443 = vmatpush2.msra.mxu0 0.0
    %2444 = vmatprep.subr.mxu0 0.0
    %2445 = vmatpush2.msra.mxu0 0.0
    %2446 = vmatprep.subr.mxu0 0.0
    %2447 = vmatpush2.msra.mxu0 0.0
    %2448 = vmatprep.subr.mxu0 0.0
    %2449 = vmatpush2.msra.mxu0 0.0
    %2450 = vmatprep.subr.mxu0 0.0
    %2451 = vmatpush2.msra.mxu0 0.0
    %2452 = vmatprep.subr.mxu0 0.0
    %2453 = vmatpush2.msra.mxu0 0.0
    %2454 = vmatprep.subr.mxu0 0.0
    %2455 = vmatpush2.msra.mxu0 0.0
    %2456 = vmatprep.subr.mxu0 0.0
    %2457 = vmatpush2.msra.mxu0 0.0
    %2458 = vmatprep.subr.mxu0 0.0
    %2459 = vmatpush2.msra.mxu0 0.0
    %2460 = vmatprep.subr.mxu0 0.0
    %2461 = vmatpush2.msra.mxu0 0.0
    %2462 = vmatprep.subr.mxu0 0.0
    %2463 = vmatpush2.msra.mxu0 0.0
    %2464 = vmatprep.subr.mxu0 0.0
    %2465 = vmatpush2.msra.mxu0 0.0
    %2466 = vmatprep.subr.mxu0 0.0
    %2467 = vmatpush2.msra.mxu0 0.0
    %2468 = vmatprep.subr.mxu0 0.0
    %2469 = vmatpush2.msra.mxu0 0.0
    %2470 = vmatprep.subr.mxu0 0.0
    %2471 = vmatpush2.msra.mxu0 0.0
    %2472 = vmatprep.mubr.f32.mxu0 0.0
    %2473 = vmatmul.mubr.f32.gmra.mxu0 %v2153
    %v2474 = vpop.f32.mrf.mxu0
    %v2475 = vadd.f32 0.0, %v2474
    %v2476 = vpop.f32.mrf.mxu0
    %v2477 = vadd.f32 0.0, %v2476
    %2478 = vdwg.mxu0
    %v2483 = vrot.slane %v2404, 4
    %v2484 = vrot.slane %v2406, 4
    %v2485 = vrot.slane %v2475, 4
    %v2486 = vrot.slane %v2477, 4
    %v2491 = vadd.f32 %v2333, %v2483
    %v2492 = vadd.f32 %v2334, %v2484
    %v2493 = vadd.f32 %v2335, %v2485
    %v2494 = vadd.f32 %v2336, %v2486
    %v2495 = vxor.u32 %v2491, 2147483648
    %v2496 = vmul.f32 %v2495, 1.442695
    %v2497 = vpow.pop %v2496
    %v2498 = vadd.f32 %v2497, 1.0
    %v2499 = vrcp.pop %v2498
    %v2500 = vmul.f32 1.0, %v2499
    %v2501 = vxor.u32 %v2492, 2147483648
    %v2502 = vmul.f32 %v2501, 1.442695
    %v2503 = vpow.pop %v2502
    %v2504 = vadd.f32 %v2503, 1.0
    %v2505 = vrcp.pop %v2504
    %v2506 = vmul.f32 1.0, %v2505
    %v2507 = vtanh.pop %v2493
    %v2508 = vxor.u32 %v2494, 2147483648
    %v2509 = vmul.f32 %v2508, 1.442695
    %v2510 = vpow.pop %v2509
    %v2511 = vadd.f32 %v2510, 1.0
    %v2512 = vrcp.pop %v2511
    %v2513 = vmul.f32 1.0, %v2512
    %v2515 = vrot.slane %v2007, 6
    %v2517 = vmul.f32 %v2506, %v2515
    %v2518 = vmul.f32 %v2500, %v2507
    %v2519 = vadd.f32 %v2517, %v2518
    %v2520 = vtanh.pop %v2519
    %v2521 = vmul.f32 %v2513, %v2520
    %2522 = vmatprep.subr.mxu0 %v1298
    %2523 = vmatpush1.msra.mxu0 %v1297
    %2524 = vmatprep.subr.mxu0 %v1294
    %2525 = vmatpush1.msra.mxu0 %v1293
    %2526 = vmatprep.subr.mxu0 %v1290
    %2527 = vmatpush1.msra.mxu0 %v1289
    %2528 = vmatprep.subr.mxu0 %v1286
    %2529 = vmatpush1.msra.mxu0 %v1285
    %2530 = vmatprep.subr.mxu0 %v1282
    %2531 = vmatpush1.msra.mxu0 %v1281
    %2532 = vmatprep.subr.mxu0 %v1278
    %2533 = vmatpush1.msra.mxu0 %v1277
    %2534 = vmatprep.subr.mxu0 %v1274
    %2535 = vmatpush1.msra.mxu0 %v1273
    %2536 = vmatprep.subr.mxu0 %v1270
    %2537 = vmatpush1.msra.mxu0 %v1269
    %2538 = vmatprep.subr.mxu0 %v1266
    %2539 = vmatpush1.msra.mxu0 %v1265
    %2540 = vmatprep.subr.mxu0 %v1262
    %2541 = vmatpush1.msra.mxu0 %v1261
    %2542 = vmatprep.subr.mxu0 %v1258
    %2543 = vmatpush1.msra.mxu0 %v1257
    %2544 = vmatprep.subr.mxu0 %v1254
    %2545 = vmatpush1.msra.mxu0 %v1253
    %2546 = vmatprep.subr.mxu0 %v1250
    %2547 = vmatpush1.msra.mxu0 %v1249
    %2548 = vmatprep.subr.mxu0 %v1246
    %2549 = vmatpush1.msra.mxu0 %v1245
    %2550 = vmatprep.subr.mxu0 %v1242
    %2551 = vmatpush1.msra.mxu0 %v1241
    %2552 = vmatprep.subr.mxu0 %v1238
    %2553 = vmatpush1.msra.mxu0 %v1237
    %2554 = vmatprep.subr.mxu0 0.0
    %2555 = vmatpush2.msra.mxu0 0.0
    %2556 = vmatprep.subr.mxu0 0.0
    %2557 = vmatpush2.msra.mxu0 0.0
    %2558 = vmatprep.subr.mxu0 0.0
    %2559 = vmatpush2.msra.mxu0 0.0
    %2560 = vmatprep.subr.mxu0 0.0
    %2561 = vmatpush2.msra.mxu0 0.0
    %2562 = vmatprep.subr.mxu0 0.0
    %2563 = vmatpush2.msra.mxu0 0.0
    %2564 = vmatprep.subr.mxu0 0.0
    %2565 = vmatpush2.msra.mxu0 0.0
    %2566 = vmatprep.subr.mxu0 0.0
    %2567 = vmatpush2.msra.mxu0 0.0
    %2568 = vmatprep.subr.mxu0 0.0
    %2569 = vmatpush2.msra.mxu0 0.0
    %2570 = vmatprep.subr.mxu0 0.0
    %2571 = vmatpush2.msra.mxu0 0.0
    %2572 = vmatprep.subr.mxu0 0.0
    %2573 = vmatpush2.msra.mxu0 0.0
    %2574 = vmatprep.subr.mxu0 0.0
    %2575 = vmatpush2.msra.mxu0 0.0
    %2576 = vmatprep.subr.mxu0 0.0
    %2577 = vmatpush2.msra.mxu0 0.0
    %2578 = vmatprep.subr.mxu0 0.0
    %2579 = vmatpush2.msra.mxu0 0.0
    %2580 = vmatprep.subr.mxu0 0.0
    %2581 = vmatpush2.msra.mxu0 0.0
    %2582 = vmatprep.subr.mxu0 0.0
    %2583 = vmatpush2.msra.mxu0 0.0
    %2584 = vmatprep.subr.mxu0 0.0
    %2585 = vmatpush2.msra.mxu0 0.0
    %2586 = vmatprep.mubr.f32.mxu0 0.0
    %2587 = vmatmul.mubr.f32.gmra.mxu0 %v2324
    %v2588 = vpop.f32.mrf.mxu0
    %v2589 = vadd.f32 0.0, %v2588
    %v2590 = vpop.f32.mrf.mxu0
    %v2591 = vadd.f32 0.0, %v2590
    %2592 = vdwg.mxu0
    %2593 = vmatprep.subr.mxu0 %v1300
    %2594 = vmatpush1.msra.mxu0 %v1299
    %2595 = vmatprep.subr.mxu0 %v1296
    %2596 = vmatpush1.msra.mxu0 %v1295
    %2597 = vmatprep.subr.mxu0 %v1292
    %2598 = vmatpush1.msra.mxu0 %v1291
    %2599 = vmatprep.subr.mxu0 %v1288
    %2600 = vmatpush1.msra.mxu0 %v1287
    %2601 = vmatprep.subr.mxu0 %v1284
    %2602 = vmatpush1.msra.mxu0 %v1283
    %2603 = vmatprep.subr.mxu0 %v1280
    %2604 = vmatpush1.msra.mxu0 %v1279
    %2605 = vmatprep.subr.mxu0 %v1276
    %2606 = vmatpush1.msra.mxu0 %v1275
    %2607 = vmatprep.subr.mxu0 %v1272
    %2608 = vmatpush1.msra.mxu0 %v1271
    %2609 = vmatprep.subr.mxu0 %v1268
    %2610 = vmatpush1.msra.mxu0 %v1267
    %2611 = vmatprep.subr.mxu0 %v1264
    %2612 = vmatpush1.msra.mxu0 %v1263
    %2613 = vmatprep.subr.mxu0 %v1260
    %2614 = vmatpush1.msra.mxu0 %v1259
    %2615 = vmatprep.subr.mxu0 %v1256
    %2616 = vmatpush1.msra.mxu0 %v1255
    %2617 = vmatprep.subr.mxu0 %v1252
    %2618 = vmatpush1.msra.mxu0 %v1251
    %2619 = vmatprep.subr.mxu0 %v1248
    %2620 = vmatpush1.msra.mxu0 %v1247
    %2621 = vmatprep.subr.mxu0 %v1244
    %2622 = vmatpush1.msra.mxu0 %v1243
    %2623 = vmatprep.subr.mxu0 %v1240
    %2624 = vmatpush1.msra.mxu0 %v1239
    %2625 = vmatprep.subr.mxu0 0.0
    %2626 = vmatpush2.msra.mxu0 0.0
    %2627 = vmatprep.subr.mxu0 0.0
    %2628 = vmatpush2.msra.mxu0 0.0
    %2629 = vmatprep.subr.mxu0 0.0
    %2630 = vmatpush2.msra.mxu0 0.0
    %2631 = vmatprep.subr.mxu0 0.0
    %2632 = vmatpush2.msra.mxu0 0.0
    %2633 = vmatprep.subr.mxu0 0.0
    %2634 = vmatpush2.msra.mxu0 0.0
    %2635 = vmatprep.subr.mxu0 0.0
    %2636 = vmatpush2.msra.mxu0 0.0
    %2637 = vmatprep.subr.mxu0 0.0
    %2638 = vmatpush2.msra.mxu0 0.0
    %2639 = vmatprep.subr.mxu0 0.0
    %2640 = vmatpush2.msra.mxu0 0.0
    %2641 = vmatprep.subr.mxu0 0.0
    %2642 = vmatpush2.msra.mxu0 0.0
    %2643 = vmatprep.subr.mxu0 0.0
    %2644 = vmatpush2.msra.mxu0 0.0
    %2645 = vmatprep.subr.mxu0 0.0
    %2646 = vmatpush2.msra.mxu0 0.0
    %2647 = vmatprep.subr.mxu0 0.0
    %2648 = vmatpush2.msra.mxu0 0.0
    %2649 = vmatprep.subr.mxu0 0.0
    %2650 = vmatpush2.msra.mxu0 0.0
    %2651 = vmatprep.subr.mxu0 0.0
    %2652 = vmatpush2.msra.mxu0 0.0
    %2653 = vmatprep.subr.mxu0 0.0
    %2654 = vmatpush2.msra.mxu0 0.0
    %2655 = vmatprep.subr.mxu0 0.0
    %2656 = vmatpush2.msra.mxu0 0.0
    %2657 = vmatprep.mubr.f32.mxu0 0.0
    %2658 = vmatmul.mubr.f32.gmra.mxu0 %v2324
    %v2659 = vpop.f32.mrf.mxu0
    %v2660 = vadd.f32 0.0, %v2659
    %v2661 = vpop.f32.mrf.mxu0
    %v2662 = vadd.f32 0.0, %v2661
    %2663 = vdwg.mxu0
    %v2665 = vrot.slane %v2521, 4
    %2667 = vmatprep.subr.mxu0 %v1234
    %2668 = vmatpush1.msra.mxu0 %v1233
    %2669 = vmatprep.subr.mxu0 %v1230
    %2670 = vmatpush1.msra.mxu0 %v1229
    %2671 = vmatprep.subr.mxu0 %v1226
    %2672 = vmatpush1.msra.mxu0 %v1225
    %2673 = vmatprep.subr.mxu0 %v1222
    %2674 = vmatpush1.msra.mxu0 %v1221
    %2675 = vmatprep.subr.mxu0 %v1218
    %2676 = vmatpush1.msra.mxu0 %v1217
    %2677 = vmatprep.subr.mxu0 %v1214
    %2678 = vmatpush1.msra.mxu0 %v1213
    %2679 = vmatprep.subr.mxu0 %v1210
    %2680 = vmatpush1.msra.mxu0 %v1209
    %2681 = vmatprep.subr.mxu0 %v1206
    %2682 = vmatpush1.msra.mxu0 %v1205
    %2683 = vmatprep.subr.mxu0 %v1202
    %2684 = vmatpush1.msra.mxu0 %v1201
    %2685 = vmatprep.subr.mxu0 %v1198
    %2686 = vmatpush1.msra.mxu0 %v1197
    %2687 = vmatprep.subr.mxu0 %v1194
    %2688 = vmatpush1.msra.mxu0 %v1193
    %2689 = vmatprep.subr.mxu0 %v1190
    %2690 = vmatpush1.msra.mxu0 %v1189
    %2691 = vmatprep.subr.mxu0 %v1186
    %2692 = vmatpush1.msra.mxu0 %v1185
    %2693 = vmatprep.subr.mxu0 %v1182
    %2694 = vmatpush1.msra.mxu0 %v1181
    %2695 = vmatprep.subr.mxu0 %v1178
    %2696 = vmatpush1.msra.mxu0 %v1177
    %2697 = vmatprep.subr.mxu0 %v1174
    %2698 = vmatpush1.msra.mxu0 %v1173
    %2699 = vmatprep.subr.mxu0 0.0
    %2700 = vmatpush2.msra.mxu0 0.0
    %2701 = vmatprep.subr.mxu0 0.0
    %2702 = vmatpush2.msra.mxu0 0.0
    %2703 = vmatprep.subr.mxu0 0.0
    %2704 = vmatpush2.msra.mxu0 0.0
    %2705 = vmatprep.subr.mxu0 0.0
    %2706 = vmatpush2.msra.mxu0 0.0
    %2707 = vmatprep.subr.mxu0 0.0
    %2708 = vmatpush2.msra.mxu0 0.0
    %2709 = vmatprep.subr.mxu0 0.0
    %2710 = vmatpush2.msra.mxu0 0.0
    %2711 = vmatprep.subr.mxu0 0.0
    %2712 = vmatpush2.msra.mxu0 0.0
    %2713 = vmatprep.subr.mxu0 0.0
    %2714 = vmatpush2.msra.mxu0 0.0
    %2715 = vmatprep.subr.mxu0 0.0
    %2716 = vmatpush2.msra.mxu0 0.0
    %2717 = vmatprep.subr.mxu0 0.0
    %2718 = vmatpush2.msra.mxu0 0.0
    %2719 = vmatprep.subr.mxu0 0.0
    %2720 = vmatpush2.msra.mxu0 0.0
    %2721 = vmatprep.subr.mxu0 0.0
    %2722 = vmatpush2.msra.mxu0 0.0
    %2723 = vmatprep.subr.mxu0 0.0
    %2724 = vmatpush2.msra.mxu0 0.0
    %2725 = vmatprep.subr.mxu0 0.0
    %2726 = vmatpush2.msra.mxu0 0.0
    %2727 = vmatprep.subr.mxu0 0.0
    %2728 = vmatpush2.msra.mxu0 0.0
    %2729 = vmatprep.subr.mxu0 0.0
    %2730 = vmatpush2.msra.mxu0 0.0
    %2731 = vmatprep.mubr.f32.mxu0 0.0
    %2732 = vmatmul.mubr.f32.gmra.mxu0 %v2665
    %v2733 = vpop.f32.mrf.mxu0
    %v2734 = vadd.f32 %v2589, %v2733
    %v2735 = vpop.f32.mrf.mxu0
    %v2736 = vadd.f32 %v2591, %v2735
    %2737 = vdwg.mxu0
    %2738 = vmatprep.subr.mxu0 %v1236
    %2739 = vmatpush1.msra.mxu0 %v1235
    %2740 = vmatprep.subr.mxu0 %v1232
    %2741 = vmatpush1.msra.mxu0 %v1231
    %2742 = vmatprep.subr.mxu0 %v1228
    %2743 = vmatpush1.msra.mxu0 %v1227
    %2744 = vmatprep.subr.mxu0 %v1224
    %2745 = vmatpush1.msra.mxu0 %v1223
    %2746 = vmatprep.subr.mxu0 %v1220
    %2747 = vmatpush1.msra.mxu0 %v1219
    %2748 = vmatprep.subr.mxu0 %v1216
    %2749 = vmatpush1.msra.mxu0 %v1215
    %2750 = vmatprep.subr.mxu0 %v1212
    %2751 = vmatpush1.msra.mxu0 %v1211
    %2752 = vmatprep.subr.mxu0 %v1208
    %2753 = vmatpush1.msra.mxu0 %v1207
    %2754 = vmatprep.subr.mxu0 %v1204
    %2755 = vmatpush1.msra.mxu0 %v1203
    %2756 = vmatprep.subr.mxu0 %v1200
    %2757 = vmatpush1.msra.mxu0 %v1199
    %2758 = vmatprep.subr.mxu0 %v1196
    %2759 = vmatpush1.msra.mxu0 %v1195
    %2760 = vmatprep.subr.mxu0 %v1192
    %2761 = vmatpush1.msra.mxu0 %v1191
    %2762 = vmatprep.subr.mxu0 %v1188
    %2763 = vmatpush1.msra.mxu0 %v1187
    %2764 = vmatprep.subr.mxu0 %v1184
    %2765 = vmatpush1.msra.mxu0 %v1183
    %2766 = vmatprep.subr.mxu0 %v1180
    %2767 = vmatpush1.msra.mxu0 %v1179
    %2768 = vmatprep.subr.mxu0 %v1176
    %2769 = vmatpush1.msra.mxu0 %v1175
    %2770 = vmatprep.subr.mxu0 0.0
    %2771 = vmatpush2.msra.mxu0 0.0
    %2772 = vmatprep.subr.mxu0 0.0
    %2773 = vmatpush2.msra.mxu0 0.0
    %2774 = vmatprep.subr.mxu0 0.0
    %2775 = vmatpush2.msra.mxu0 0.0
    %2776 = vmatprep.subr.mxu0 0.0
    %2777 = vmatpush2.msra.mxu0 0.0
    %2778 = vmatprep.subr.mxu0 0.0
    %2779 = vmatpush2.msra.mxu0 0.0
    %2780 = vmatprep.subr.mxu0 0.0
    %2781 = vmatpush2.msra.mxu0 0.0
    %2782 = vmatprep.subr.mxu0 0.0
    %2783 = vmatpush2.msra.mxu0 0.0
    %2784 = vmatprep.subr.mxu0 0.0
    %2785 = vmatpush2.msra.mxu0 0.0
    %2786 = vmatprep.subr.mxu0 0.0
    %2787 = vmatpush2.msra.mxu0 0.0
    %2788 = vmatprep.subr.mxu0 0.0
    %2789 = vmatpush2.msra.mxu0 0.0
    %2790 = vmatprep.subr.mxu0 0.0
    %2791 = vmatpush2.msra.mxu0 0.0
    %2792 = vmatprep.subr.mxu0 0.0
    %2793 = vmatpush2.msra.mxu0 0.0
    %2794 = vmatprep.subr.mxu0 0.0
    %2795 = vmatpush2.msra.mxu0 0.0
    %2796 = vmatprep.subr.mxu0 0.0
    %2797 = vmatpush2.msra.mxu0 0.0
    %2798 = vmatprep.subr.mxu0 0.0
    %2799 = vmatpush2.msra.mxu0 0.0
    %2800 = vmatprep.subr.mxu0 0.0
    %2801 = vmatpush2.msra.mxu0 0.0
    %2802 = vmatprep.mubr.f32.mxu0 0.0
    %2803 = vmatmul.mubr.f32.gmra.mxu0 %v2665
    %v2804 = vpop.f32.mrf.mxu0
    %v2805 = vadd.f32 %v2660, %v2804
    %v2806 = vpop.f32.mrf.mxu0
    %v2807 = vadd.f32 %v2662, %v2806
    %2808 = vdwg.mxu0
    %v2809 = vadd.f32 %v2734, %v1764
    %v2810 = vadd.f32 %v2736, %v1768
    %v2811 = vadd.f32 %v2805, %v1772
    %v2812 = vadd.f32 %v2807, %v1776
    %v2813 = vxor.u32 %v2809, 2147483648
    %v2814 = vmul.f32 %v2813, 1.442695
    %v2815 = vpow.pop %v2814
    %v2816 = vadd.f32 %v2815, 1.0
    %v2817 = vrcp.pop %v2816
    %v2818 = vmul.f32 1.0, %v2817
    %v2819 = vxor.u32 %v2810, 2147483648
    %v2820 = vmul.f32 %v2819, 1.442695
    %v2821 = vpow.pop %v2820
    %v2822 = vadd.f32 %v2821, 1.0
    %v2823 = vrcp.pop %v2822
    %v2824 = vmul.f32 1.0, %v2823
    %v2825 = vtanh.pop %v2811
    %v2826 = vxor.u32 %v2812, 2147483648
    %v2827 = vmul.f32 %v2826, 1.442695
    %v2828 = vpow.pop %v2827
    %v2829 = vadd.f32 %v2828, 1.0
    %v2830 = vrcp.pop %v2829
    %v2831 = vmul.f32 1.0, %v2830
    %v2832 = vmul.f32 %v2824, %v2322
    %v2833 = vmul.f32 %v2818, %v2825
    %v2834 = vadd.f32 %v2832, %v2833
    %v2835 = vtanh.pop %v2834
    %v2836 = vmul.f32 %v2831, %v2835
    %v2837 = vrot.slane %v1034, 2
    %v2838 = vrot.slane %v1036, 2
    %v2839 = vrot.slane %v1105, 2
    %v2840 = vrot.slane %v1107, 2
    %v2845 = vadd.f32 %v898, %v2837
    %v2846 = vadd.f32 %v899, %v2838
    %v2847 = vadd.f32 %v900, %v2839
    %v2848 = vadd.f32 %v901, %v2840
    %2849 = vmatprep.subr.mxu0 %v1170
    %2850 = vmatpush1.msra.mxu0 %v1169
    %2851 = vmatprep.subr.mxu0 %v1166
    %2852 = vmatpush1.msra.mxu0 %v1165
    %2853 = vmatprep.subr.mxu0 %v1162
    %2854 = vmatpush1.msra.mxu0 %v1161
    %2855 = vmatprep.subr.mxu0 %v1158
    %2856 = vmatpush1.msra.mxu0 %v1157
    %2857 = vmatprep.subr.mxu0 %v1154
    %2858 = vmatpush1.msra.mxu0 %v1153
    %2859 = vmatprep.subr.mxu0 %v1150
    %2860 = vmatpush1.msra.mxu0 %v1149
    %2861 = vmatprep.subr.mxu0 %v1146
    %2862 = vmatpush1.msra.mxu0 %v1145
    %2863 = vmatprep.subr.mxu0 %v1142
    %2864 = vmatpush1.msra.mxu0 %v1141
    %2865 = vmatprep.subr.mxu0 %v1138
    %2866 = vmatpush1.msra.mxu0 %v1137
    %2867 = vmatprep.subr.mxu0 %v1134
    %2868 = vmatpush1.msra.mxu0 %v1133
    %2869 = vmatprep.subr.mxu0 %v1130
    %2870 = vmatpush1.msra.mxu0 %v1129
    %2871 = vmatprep.subr.mxu0 %v1126
    %2872 = vmatpush1.msra.mxu0 %v1125
    %2873 = vmatprep.subr.mxu0 %v1122
    %2874 = vmatpush1.msra.mxu0 %v1121
    %2875 = vmatprep.subr.mxu0 %v1118
    %2876 = vmatpush1.msra.mxu0 %v1117
    %2877 = vmatprep.subr.mxu0 %v1114
    %2878 = vmatpush1.msra.mxu0 %v1113
    %2879 = vmatprep.subr.mxu0 %v1110
    %2880 = vmatpush1.msra.mxu0 %v1109
    %2881 = vmatprep.subr.mxu0 0.0
    %2882 = vmatpush2.msra.mxu0 0.0
    %2883 = vmatprep.subr.mxu0 0.0
    %2884 = vmatpush2.msra.mxu0 0.0
    %2885 = vmatprep.subr.mxu0 0.0
    %2886 = vmatpush2.msra.mxu0 0.0
    %2887 = vmatprep.subr.mxu0 0.0
    %2888 = vmatpush2.msra.mxu0 0.0
    %2889 = vmatprep.subr.mxu0 0.0
    %2890 = vmatpush2.msra.mxu0 0.0
    %2891 = vmatprep.subr.mxu0 0.0
    %2892 = vmatpush2.msra.mxu0 0.0
    %2893 = vmatprep.subr.mxu0 0.0
    %2894 = vmatpush2.msra.mxu0 0.0
    %2895 = vmatprep.subr.mxu0 0.0
    %2896 = vmatpush2.msra.mxu0 0.0
    %2897 = vmatprep.subr.mxu0 0.0
    %2898 = vmatpush2.msra.mxu0 0.0
    %2899 = vmatprep.subr.mxu0 0.0
    %2900 = vmatpush2.msra.mxu0 0.0
    %2901 = vmatprep.subr.mxu0 0.0
    %2902 = vmatpush2.msra.mxu0 0.0
    %2903 = vmatprep.subr.mxu0 0.0
    %2904 = vmatpush2.msra.mxu0 0.0
    %2905 = vmatprep.subr.mxu0 0.0
    %2906 = vmatpush2.msra.mxu0 0.0
    %2907 = vmatprep.subr.mxu0 0.0
    %2908 = vmatpush2.msra.mxu0 0.0
    %2909 = vmatprep.subr.mxu0 0.0
    %2910 = vmatpush2.msra.mxu0 0.0
    %2911 = vmatprep.subr.mxu0 0.0
    %2912 = vmatpush2.msra.mxu0 0.0
    %2913 = vmatprep.mubr.f32.mxu0 0.0
    %2914 = vmatmul.mubr.f32.gmra.mxu0 %v2665
    %v2915 = vpop.f32.mrf.mxu0
    %v2916 = vadd.f32 0.0, %v2915
    %v2917 = vpop.f32.mrf.mxu0
    %v2918 = vadd.f32 0.0, %v2917
    %2919 = vdwg.mxu0
    %2920 = vmatprep.subr.mxu0 %v1172
    %2921 = vmatpush1.msra.mxu0 %v1171
    %2922 = vmatprep.subr.mxu0 %v1168
    %2923 = vmatpush1.msra.mxu0 %v1167
    %2924 = vmatprep.subr.mxu0 %v1164
    %2925 = vmatpush1.msra.mxu0 %v1163
    %2926 = vmatprep.subr.mxu0 %v1160
    %2927 = vmatpush1.msra.mxu0 %v1159
    %2928 = vmatprep.subr.mxu0 %v1156
    %2929 = vmatpush1.msra.mxu0 %v1155
    %2930 = vmatprep.subr.mxu0 %v1152
    %2931 = vmatpush1.msra.mxu0 %v1151
    %2932 = vmatprep.subr.mxu0 %v1148
    %2933 = vmatpush1.msra.mxu0 %v1147
    %2934 = vmatprep.subr.mxu0 %v1144
    %2935 = vmatpush1.msra.mxu0 %v1143
    %2936 = vmatprep.subr.mxu0 %v1140
    %2937 = vmatpush1.msra.mxu0 %v1139
    %2938 = vmatprep.subr.mxu0 %v1136
    %2939 = vmatpush1.msra.mxu0 %v1135
    %2940 = vmatprep.subr.mxu0 %v1132
    %2941 = vmatpush1.msra.mxu0 %v1131
    %2942 = vmatprep.subr.mxu0 %v1128
    %2943 = vmatpush1.msra.mxu0 %v1127
    %2944 = vmatprep.subr.mxu0 %v1124
    %2945 = vmatpush1.msra.mxu0 %v1123
    %2946 = vmatprep.subr.mxu0 %v1120
    %2947 = vmatpush1.msra.mxu0 %v1119
    %2948 = vmatprep.subr.mxu0 %v1116
    %2949 = vmatpush1.msra.mxu0 %v1115
    %2950 = vmatprep.subr.mxu0 %v1112
    %2951 = vmatpush1.msra.mxu0 %v1111
    %2952 = vmatprep.subr.mxu0 0.0
    %2953 = vmatpush2.msra.mxu0 0.0
    %2954 = vmatprep.subr.mxu0 0.0
    %2955 = vmatpush2.msra.mxu0 0.0
    %2956 = vmatprep.subr.mxu0 0.0
    %2957 = vmatpush2.msra.mxu0 0.0
    %2958 = vmatprep.subr.mxu0 0.0
    %2959 = vmatpush2.msra.mxu0 0.0
    %2960 = vmatprep.subr.mxu0 0.0
    %2961 = vmatpush2.msra.mxu0 0.0
    %2962 = vmatprep.subr.mxu0 0.0
    %2963 = vmatpush2.msra.mxu0 0.0
    %2964 = vmatprep.subr.mxu0 0.0
    %2965 = vmatpush2.msra.mxu0 0.0
    %2966 = vmatprep.subr.mxu0 0.0
    %2967 = vmatpush2.msra.mxu0 0.0
    %2968 = vmatprep.subr.mxu0 0.0
    %2969 = vmatpush2.msra.mxu0 0.0
    %2970 = vmatprep.subr.mxu0 0.0
    %2971 = vmatpush2.msra.mxu0 0.0
    %2972 = vmatprep.subr.mxu0 0.0
    %2973 = vmatpush2.msra.mxu0 0.0
    %2974 = vmatprep.subr.mxu0 0.0
    %2975 = vmatpush2.msra.mxu0 0.0
    %2976 = vmatprep.subr.mxu0 0.0
    %2977 = vmatpush2.msra.mxu0 0.0
    %2978 = vmatprep.subr.mxu0 0.0
    %2979 = vmatpush2.msra.mxu0 0.0
    %2980 = vmatprep.subr.mxu0 0.0
    %2981 = vmatpush2.msra.mxu0 0.0
    %2982 = vmatprep.subr.mxu0 0.0
    %2983 = vmatpush2.msra.mxu0 0.0
    %2984 = vmatprep.mubr.f32.mxu0 0.0
    %2985 = vmatmul.mubr.f32.gmra.mxu0 %v2665
    %v2986 = vpop.f32.mrf.mxu0
    %v2987 = vadd.f32 0.0, %v2986
    %v2988 = vpop.f32.mrf.mxu0
    %v2989 = vadd.f32 0.0, %v2988
    %2990 = vdwg.mxu0
    %v2995 = vrot.slane %v2916, 2
    %v2996 = vrot.slane %v2918, 2
    %v2997 = vrot.slane %v2987, 2
    %v2998 = vrot.slane %v2989, 2
    %v3003 = vadd.f32 %v2845, %v2995
    %v3004 = vadd.f32 %v2846, %v2996
    %v3005 = vadd.f32 %v2847, %v2997
    %v3006 = vadd.f32 %v2848, %v2998
    %v3007 = vxor.u32 %v3003, 2147483648
    %v3008 = vmul.f32 %v3007, 1.442695
    %v3009 = vpow.pop %v3008
    %v3010 = vadd.f32 %v3009, 1.0
    %v3011 = vrcp.pop %v3010
    %v3012 = vmul.f32 1.0, %v3011
    %v3013 = vxor.u32 %v3004, 2147483648
    %v3014 = vmul.f32 %v3013, 1.442695
    %v3015 = vpow.pop %v3014
    %v3016 = vadd.f32 %v3015, 1.0
    %v3017 = vrcp.pop %v3016
    %v3018 = vmul.f32 1.0, %v3017
    %v3019 = vtanh.pop %v3005
    %v3020 = vxor.u32 %v3006, 2147483648
    %v3021 = vmul.f32 %v3020, 1.442695
    %v3022 = vpow.pop %v3021
    %v3023 = vadd.f32 %v3022, 1.0
    %v3024 = vrcp.pop %v3023
    %v3025 = vmul.f32 1.0, %v3024
    %v3027 = vrot.slane %v2519, 6
    %v3029 = vmul.f32 %v3018, %v3027
    %v3030 = vmul.f32 %v3012, %v3019
    %v3031 = vadd.f32 %v3029, %v3030
    %v3032 = vtanh.pop %v3031
    %v3033 = vmul.f32 %v3025, %v3032
    %3034 = vmatprep.subr.mxu0 %v1298
    %3035 = vmatpush1.msra.mxu0 %v1297
    %3036 = vmatprep.subr.mxu0 %v1294
    %3037 = vmatpush1.msra.mxu0 %v1293
    %3038 = vmatprep.subr.mxu0 %v1290
    %3039 = vmatpush1.msra.mxu0 %v1289
    %3040 = vmatprep.subr.mxu0 %v1286
    %3041 = vmatpush1.msra.mxu0 %v1285
    %3042 = vmatprep.subr.mxu0 %v1282
    %3043 = vmatpush1.msra.mxu0 %v1281
    %3044 = vmatprep.subr.mxu0 %v1278
    %3045 = vmatpush1.msra.mxu0 %v1277
    %3046 = vmatprep.subr.mxu0 %v1274
    %3047 = vmatpush1.msra.mxu0 %v1273
    %3048 = vmatprep.subr.mxu0 %v1270
    %3049 = vmatpush1.msra.mxu0 %v1269
    %3050 = vmatprep.subr.mxu0 %v1266
    %3051 = vmatpush1.msra.mxu0 %v1265
    %3052 = vmatprep.subr.mxu0 %v1262
    %3053 = vmatpush1.msra.mxu0 %v1261
    %3054 = vmatprep.subr.mxu0 %v1258
    %3055 = vmatpush1.msra.mxu0 %v1257
    %3056 = vmatprep.subr.mxu0 %v1254
    %3057 = vmatpush1.msra.mxu0 %v1253
    %3058 = vmatprep.subr.mxu0 %v1250
    %3059 = vmatpush1.msra.mxu0 %v1249
    %3060 = vmatprep.subr.mxu0 %v1246
    %3061 = vmatpush1.msra.mxu0 %v1245
    %3062 = vmatprep.subr.mxu0 %v1242
    %3063 = vmatpush1.msra.mxu0 %v1241
    %3064 = vmatprep.subr.mxu0 %v1238
    %3065 = vmatpush1.msra.mxu0 %v1237
    %3066 = vmatprep.subr.mxu0 0.0
    %3067 = vmatpush2.msra.mxu0 0.0
    %3068 = vmatprep.subr.mxu0 0.0
    %3069 = vmatpush2.msra.mxu0 0.0
    %3070 = vmatprep.subr.mxu0 0.0
    %3071 = vmatpush2.msra.mxu0 0.0
    %3072 = vmatprep.subr.mxu0 0.0
    %3073 = vmatpush2.msra.mxu0 0.0
    %3074 = vmatprep.subr.mxu0 0.0
    %3075 = vmatpush2.msra.mxu0 0.0
    %3076 = vmatprep.subr.mxu0 0.0
    %3077 = vmatpush2.msra.mxu0 0.0
    %3078 = vmatprep.subr.mxu0 0.0
    %3079 = vmatpush2.msra.mxu0 0.0
    %3080 = vmatprep.subr.mxu0 0.0
    %3081 = vmatpush2.msra.mxu0 0.0
    %3082 = vmatprep.subr.mxu0 0.0
    %3083 = vmatpush2.msra.mxu0 0.0
    %3084 = vmatprep.subr.mxu0 0.0
    %3085 = vmatpush2.msra.mxu0 0.0
    %3086 = vmatprep.subr.mxu0 0.0
    %3087 = vmatpush2.msra.mxu0 0.0
    %3088 = vmatprep.subr.mxu0 0.0
    %3089 = vmatpush2.msra.mxu0 0.0
    %3090 = vmatprep.subr.mxu0 0.0
    %3091 = vmatpush2.msra.mxu0 0.0
    %3092 = vmatprep.subr.mxu0 0.0
    %3093 = vmatpush2.msra.mxu0 0.0
    %3094 = vmatprep.subr.mxu0 0.0
    %3095 = vmatpush2.msra.mxu0 0.0
    %3096 = vmatprep.subr.mxu0 0.0
    %3097 = vmatpush2.msra.mxu0 0.0
    %3098 = vmatprep.mubr.f32.mxu0 0.0
    %3099 = vmatmul.mubr.f32.gmra.mxu0 %v2836
    %v3100 = vpop.f32.mrf.mxu0
    %v3101 = vadd.f32 0.0, %v3100
    %v3102 = vpop.f32.mrf.mxu0
    %v3103 = vadd.f32 0.0, %v3102
    %3104 = vdwg.mxu0
    %3105 = vmatprep.subr.mxu0 %v1300
    %3106 = vmatpush1.msra.mxu0 %v1299
    %3107 = vmatprep.subr.mxu0 %v1296
    %3108 = vmatpush1.msra.mxu0 %v1295
    %3109 = vmatprep.subr.mxu0 %v1292
    %3110 = vmatpush1.msra.mxu0 %v1291
    %3111 = vmatprep.subr.mxu0 %v1288
    %3112 = vmatpush1.msra.mxu0 %v1287
    %3113 = vmatprep.subr.mxu0 %v1284
    %3114 = vmatpush1.msra.mxu0 %v1283
    %3115 = vmatprep.subr.mxu0 %v1280
    %3116 = vmatpush1.msra.mxu0 %v1279
    %3117 = vmatprep.subr.mxu0 %v1276
    %3118 = vmatpush1.msra.mxu0 %v1275
    %3119 = vmatprep.subr.mxu0 %v1272
    %3120 = vmatpush1.msra.mxu0 %v1271
    %3121 = vmatprep.subr.mxu0 %v1268
    %3122 = vmatpush1.msra.mxu0 %v1267
    %3123 = vmatprep.subr.mxu0 %v1264
    %3124 = vmatpush1.msra.mxu0 %v1263
    %3125 = vmatprep.subr.mxu0 %v1260
    %3126 = vmatpush1.msra.mxu0 %v1259
    %3127 = vmatprep.subr.mxu0 %v1256
    %3128 = vmatpush1.msra.mxu0 %v1255
    %3129 = vmatprep.subr.mxu0 %v1252
    %3130 = vmatpush1.msra.mxu0 %v1251
    %3131 = vmatprep.subr.mxu0 %v1248
    %3132 = vmatpush1.msra.mxu0 %v1247
    %3133 = vmatprep.subr.mxu0 %v1244
    %3134 = vmatpush1.msra.mxu0 %v1243
    %3135 = vmatprep.subr.mxu0 %v1240
    %3136 = vmatpush1.msra.mxu0 %v1239
    %3137 = vmatprep.subr.mxu0 0.0
    %3138 = vmatpush2.msra.mxu0 0.0
    %3139 = vmatprep.subr.mxu0 0.0
    %3140 = vmatpush2.msra.mxu0 0.0
    %3141 = vmatprep.subr.mxu0 0.0
    %3142 = vmatpush2.msra.mxu0 0.0
    %3143 = vmatprep.subr.mxu0 0.0
    %3144 = vmatpush2.msra.mxu0 0.0
    %3145 = vmatprep.subr.mxu0 0.0
    %3146 = vmatpush2.msra.mxu0 0.0
    %3147 = vmatprep.subr.mxu0 0.0
    %3148 = vmatpush2.msra.mxu0 0.0
    %3149 = vmatprep.subr.mxu0 0.0
    %3150 = vmatpush2.msra.mxu0 0.0
    %3151 = vmatprep.subr.mxu0 0.0
    %3152 = vmatpush2.msra.mxu0 0.0
    %3153 = vmatprep.subr.mxu0 0.0
    %3154 = vmatpush2.msra.mxu0 0.0
    %3155 = vmatprep.subr.mxu0 0.0
    %3156 = vmatpush2.msra.mxu0 0.0
    %3157 = vmatprep.subr.mxu0 0.0
    %3158 = vmatpush2.msra.mxu0 0.0
    %3159 = vmatprep.subr.mxu0 0.0
    %3160 = vmatpush2.msra.mxu0 0.0
    %3161 = vmatprep.subr.mxu0 0.0
    %3162 = vmatpush2.msra.mxu0 0.0
    %3163 = vmatprep.subr.mxu0 0.0
    %3164 = vmatpush2.msra.mxu0 0.0
    %3165 = vmatprep.subr.mxu0 0.0
    %3166 = vmatpush2.msra.mxu0 0.0
    %3167 = vmatprep.subr.mxu0 0.0
    %3168 = vmatpush2.msra.mxu0 0.0
    %3169 = vmatprep.mubr.f32.mxu0 0.0
    %3170 = vmatmul.mubr.f32.gmra.mxu0 %v2836
    %v3171 = vpop.f32.mrf.mxu0
    %v3172 = vadd.f32 0.0, %v3171
    %v3173 = vpop.f32.mrf.mxu0
    %v3174 = vadd.f32 0.0, %v3173
    %3175 = vdwg.mxu0
    %v3177 = vrot.slane %v3033, 6
    %3179 = vmatprep.subr.mxu0 %v1234
    %3180 = vmatpush1.msra.mxu0 %v1233
    %3181 = vmatprep.subr.mxu0 %v1230
    %3182 = vmatpush1.msra.mxu0 %v1229
    %3183 = vmatprep.subr.mxu0 %v1226
    %3184 = vmatpush1.msra.mxu0 %v1225
    %3185 = vmatprep.subr.mxu0 %v1222
    %3186 = vmatpush1.msra.mxu0 %v1221
    %3187 = vmatprep.subr.mxu0 %v1218
    %3188 = vmatpush1.msra.mxu0 %v1217
    %3189 = vmatprep.subr.mxu0 %v1214
    %3190 = vmatpush1.msra.mxu0 %v1213
    %3191 = vmatprep.subr.mxu0 %v1210
    %3192 = vmatpush1.msra.mxu0 %v1209
    %3193 = vmatprep.subr.mxu0 %v1206
    %3194 = vmatpush1.msra.mxu0 %v1205
    %3195 = vmatprep.subr.mxu0 %v1202
    %3196 = vmatpush1.msra.mxu0 %v1201
    %3197 = vmatprep.subr.mxu0 %v1198
    %3198 = vmatpush1.msra.mxu0 %v1197
    %3199 = vmatprep.subr.mxu0 %v1194
    %3200 = vmatpush1.msra.mxu0 %v1193
    %3201 = vmatprep.subr.mxu0 %v1190
    %3202 = vmatpush1.msra.mxu0 %v1189
    %3203 = vmatprep.subr.mxu0 %v1186
    %3204 = vmatpush1.msra.mxu0 %v1185
    %3205 = vmatprep.subr.mxu0 %v1182
    %3206 = vmatpush1.msra.mxu0 %v1181
    %3207 = vmatprep.subr.mxu0 %v1178
    %3208 = vmatpush1.msra.mxu0 %v1177
    %3209 = vmatprep.subr.mxu0 %v1174
    %3210 = vmatpush1.msra.mxu0 %v1173
    %3211 = vmatprep.subr.mxu0 0.0
    %3212 = vmatpush2.msra.mxu0 0.0
    %3213 = vmatprep.subr.mxu0 0.0
    %3214 = vmatpush2.msra.mxu0 0.0
    %3215 = vmatprep.subr.mxu0 0.0
    %3216 = vmatpush2.msra.mxu0 0.0
    %3217 = vmatprep.subr.mxu0 0.0
    %3218 = vmatpush2.msra.mxu0 0.0
    %3219 = vmatprep.subr.mxu0 0.0
    %3220 = vmatpush2.msra.mxu0 0.0
    %3221 = vmatprep.subr.mxu0 0.0
    %3222 = vmatpush2.msra.mxu0 0.0
    %3223 = vmatprep.subr.mxu0 0.0
    %3224 = vmatpush2.msra.mxu0 0.0
    %3225 = vmatprep.subr.mxu0 0.0
    %3226 = vmatpush2.msra.mxu0 0.0
    %3227 = vmatprep.subr.mxu0 0.0
    %3228 = vmatpush2.msra.mxu0 0.0
    %3229 = vmatprep.subr.mxu0 0.0
    %3230 = vmatpush2.msra.mxu0 0.0
    %3231 = vmatprep.subr.mxu0 0.0
    %3232 = vmatpush2.msra.mxu0 0.0
    %3233 = vmatprep.subr.mxu0 0.0
    %3234 = vmatpush2.msra.mxu0 0.0
    %3235 = vmatprep.subr.mxu0 0.0
    %3236 = vmatpush2.msra.mxu0 0.0
    %3237 = vmatprep.subr.mxu0 0.0
    %3238 = vmatpush2.msra.mxu0 0.0
    %3239 = vmatprep.subr.mxu0 0.0
    %3240 = vmatpush2.msra.mxu0 0.0
    %3241 = vmatprep.subr.mxu0 0.0
    %3242 = vmatpush2.msra.mxu0 0.0
    %3243 = vmatprep.mubr.f32.mxu0 0.0
    %3244 = vmatmul.mubr.f32.gmra.mxu0 %v3177
    %v3245 = vpop.f32.mrf.mxu0
    %v3246 = vadd.f32 %v3101, %v3245
    %v3247 = vpop.f32.mrf.mxu0
    %v3248 = vadd.f32 %v3103, %v3247
    %3249 = vdwg.mxu0
    %3250 = vmatprep.subr.mxu0 %v1236
    %3251 = vmatpush1.msra.mxu0 %v1235
    %3252 = vmatprep.subr.mxu0 %v1232
    %3253 = vmatpush1.msra.mxu0 %v1231
    %3254 = vmatprep.subr.mxu0 %v1228
    %3255 = vmatpush1.msra.mxu0 %v1227
    %3256 = vmatprep.subr.mxu0 %v1224
    %3257 = vmatpush1.msra.mxu0 %v1223
    %3258 = vmatprep.subr.mxu0 %v1220
    %3259 = vmatpush1.msra.mxu0 %v1219
    %3260 = vmatprep.subr.mxu0 %v1216
    %3261 = vmatpush1.msra.mxu0 %v1215
    %3262 = vmatprep.subr.mxu0 %v1212
    %3263 = vmatpush1.msra.mxu0 %v1211
    %3264 = vmatprep.subr.mxu0 %v1208
    %3265 = vmatpush1.msra.mxu0 %v1207
    %3266 = vmatprep.subr.mxu0 %v1204
    %3267 = vmatpush1.msra.mxu0 %v1203
    %3268 = vmatprep.subr.mxu0 %v1200
    %3269 = vmatpush1.msra.mxu0 %v1199
    %3270 = vmatprep.subr.mxu0 %v1196
    %3271 = vmatpush1.msra.mxu0 %v1195
    %3272 = vmatprep.subr.mxu0 %v1192
    %3273 = vmatpush1.msra.mxu0 %v1191
    %3274 = vmatprep.subr.mxu0 %v1188
    %3275 = vmatpush1.msra.mxu0 %v1187
    %3276 = vmatprep.subr.mxu0 %v1184
    %3277 = vmatpush1.msra.mxu0 %v1183
    %3278 = vmatprep.subr.mxu0 %v1180
    %3279 = vmatpush1.msra.mxu0 %v1179
    %3280 = vmatprep.subr.mxu0 %v1176
    %3281 = vmatpush1.msra.mxu0 %v1175
    %3282 = vmatprep.subr.mxu0 0.0
    %3283 = vmatpush2.msra.mxu0 0.0
    %3284 = vmatprep.subr.mxu0 0.0
    %3285 = vmatpush2.msra.mxu0 0.0
    %3286 = vmatprep.subr.mxu0 0.0
    %3287 = vmatpush2.msra.mxu0 0.0
    %3288 = vmatprep.subr.mxu0 0.0
    %3289 = vmatpush2.msra.mxu0 0.0
    %3290 = vmatprep.subr.mxu0 0.0
    %3291 = vmatpush2.msra.mxu0 0.0
    %3292 = vmatprep.subr.mxu0 0.0
    %3293 = vmatpush2.msra.mxu0 0.0
    %3294 = vmatprep.subr.mxu0 0.0
    %3295 = vmatpush2.msra.mxu0 0.0
    %3296 = vmatprep.subr.mxu0 0.0
    %3297 = vmatpush2.msra.mxu0 0.0
    %3298 = vmatprep.subr.mxu0 0.0
    %3299 = vmatpush2.msra.mxu0 0.0
    %3300 = vmatprep.subr.mxu0 0.0
    %3301 = vmatpush2.msra.mxu0 0.0
    %3302 = vmatprep.subr.mxu0 0.0
    %3303 = vmatpush2.msra.mxu0 0.0
    %3304 = vmatprep.subr.mxu0 0.0
    %3305 = vmatpush2.msra.mxu0 0.0
    %3306 = vmatprep.subr.mxu0 0.0
    %3307 = vmatpush2.msra.mxu0 0.0
    %3308 = vmatprep.subr.mxu0 0.0
    %3309 = vmatpush2.msra.mxu0 0.0
    %3310 = vmatprep.subr.mxu0 0.0
    %3311 = vmatpush2.msra.mxu0 0.0
    %3312 = vmatprep.subr.mxu0 0.0
    %3313 = vmatpush2.msra.mxu0 0.0
    %3314 = vmatprep.mubr.f32.mxu0 0.0
    %3315 = vmatmul.mubr.f32.gmra.mxu0 %v3177
    %v3316 = vpop.f32.mrf.mxu0
    %v3317 = vadd.f32 %v3172, %v3316
    %v3318 = vpop.f32.mrf.mxu0
    %v3319 = vadd.f32 %v3174, %v3318
    %3320 = vdwg.mxu0
    %v3321 = vadd.f32 %v3246, %v1764
    %v3322 = vadd.f32 %v3248, %v1768
    %v3323 = vadd.f32 %v3317, %v1772
    %v3324 = vadd.f32 %v3319, %v1776
    %v3325 = vxor.u32 %v3321, 2147483648
    %v3326 = vmul.f32 %v3325, 1.442695
    %v3327 = vpow.pop %v3326
    %v3328 = vadd.f32 %v3327, 1.0
    %v3329 = vrcp.pop %v3328
    %v3330 = vmul.f32 1.0, %v3329
    %v3331 = vxor.u32 %v3322, 2147483648
    %v3332 = vmul.f32 %v3331, 1.442695
    %v3333 = vpow.pop %v3332
    %v3334 = vadd.f32 %v3333, 1.0
    %v3335 = vrcp.pop %v3334
    %v3336 = vmul.f32 1.0, %v3335
    %v3337 = vtanh.pop %v3323
    %v3338 = vxor.u32 %v3324, 2147483648
    %v3339 = vmul.f32 %v3338, 1.442695
    %v3340 = vpow.pop %v3339
    %v3341 = vadd.f32 %v3340, 1.0
    %v3342 = vrcp.pop %v3341
    %v3343 = vmul.f32 1.0, %v3342
    %v3344 = vmul.f32 %v3336, %v2834
    %v3345 = vmul.f32 %v3330, %v3337
    %v3346 = vadd.f32 %v3344, %v3345
    %v3347 = vtanh.pop %v3346
    %v3348 = vmul.f32 %v3343, %v3347
    %v3349 = vld [vmem:[%s14] sm:$0xff]
    %v3350 = vld [vmem:[%s14 + $0x8] sm:$0xff]
    %v3351 = vld [vmem:[%s14 + $0x10] sm:$0xff]
    %v3352 = vld [vmem:[%s14 + $0x18] sm:$0xff]
    %v3353 = vld [vmem:[%s14 + $0x20] sm:$0xff]
    %v3354 = vld [vmem:[%s14 + $0x28] sm:$0xff]
    %v3355 = vld [vmem:[%s14 + $0x30] sm:$0xff]
    %v3356 = vld [vmem:[%s14 + $0x38] sm:$0xff]
    %v3357 = vld [vmem:[%s14 + $0x40] sm:$0xff]
    %v3358 = vld [vmem:[%s14 + $0x48] sm:$0xff]
    %v3359 = vld [vmem:[%s14 + $0x50] sm:$0xff]
    %v3360 = vld [vmem:[%s14 + $0x58] sm:$0xff]
    %v3361 = vld [vmem:[%s14 + $0x60] sm:$0xff]
    %v3362 = vld [vmem:[%s14 + $0x68] sm:$0xff]
    %v3363 = vld [vmem:[%s14 + $0x70] sm:$0xff]
    %v3364 = vld [vmem:[%s14 + $0x78] sm:$0xff]
    %v3365 = vld [vmem:[%s2] sm:$0x3]
    %v3366 = vld [vmem:[%s15] sm:$0x7f]
    %vm3367 = vcmask 56320
    %v3369 = vsel %vm3367, %v3365, 0
    %vm3371 = vcmask 1046528
    %v3373 = vsel %vm3371, %v3366, 0
    %3375 = vmatprep.subr.mxu0 0.0
    %3376 = vmatpush1.msra.mxu0 0.0
    %3377 = vmatprep.subr.mxu0 0.0
    %3378 = vmatpush1.msra.mxu0 0.0
    %3379 = vmatprep.subr.mxu0 0.0
    %3380 = vmatpush1.msra.mxu0 0.0
    %3381 = vmatprep.subr.mxu0 0.0
    %3382 = vmatpush1.msra.mxu0 0.0
    %3383 = vmatprep.subr.mxu0 0.0
    %3384 = vmatpush1.msra.mxu0 0.0
    %3385 = vmatprep.subr.mxu0 0.0
    %3386 = vmatpush1.msra.mxu0 0.0
    %3387 = vmatprep.subr.mxu0 0.0
    %3388 = vmatpush1.msra.mxu0 0.0
    %3389 = vmatprep.subr.mxu0 0.0
    %3390 = vmatpush1.msra.mxu0 0.0
    %3391 = vmatprep.subr.mxu0 0.0
    %3392 = vmatpush1.msra.mxu0 0.0
    %3393 = vmatprep.subr.mxu0 0.0
    %3394 = vmatpush1.msra.mxu0 0.0
    %3395 = vmatprep.subr.mxu0 0.0
    %3396 = vmatpush1.msra.mxu0 0.0
    %3397 = vmatprep.subr.mxu0 0.0
    %3398 = vmatpush1.msra.mxu0 0.0
    %3399 = vmatprep.subr.mxu0 0.0
    %3400 = vmatpush1.msra.mxu0 0.0
    %3401 = vmatprep.subr.mxu0 0.0
    %3402 = vmatpush1.msra.mxu0 0.0
    %3403 = vmatprep.subr.mxu0 0.0
    %3404 = vmatpush1.msra.mxu0 0.0
    %3405 = vmatprep.subr.mxu0 0.0
    %3406 = vmatpush1.msra.mxu0 %v3373
    %3407 = vmatprep.subr.mxu0 0.0
    %3408 = vmatpush2.msra.mxu0 0.0
    %3409 = vmatprep.subr.mxu0 0.0
    %3410 = vmatpush2.msra.mxu0 0.0
    %3411 = vmatprep.subr.mxu0 0.0
    %3412 = vmatpush2.msra.mxu0 0.0
    %3413 = vmatprep.subr.mxu0 0.0
    %3414 = vmatpush2.msra.mxu0 0.0
    %3415 = vmatprep.subr.mxu0 0.0
    %3416 = vmatpush2.msra.mxu0 0.0
    %3417 = vmatprep.subr.mxu0 0.0
    %3418 = vmatpush2.msra.mxu0 0.0
    %3419 = vmatprep.subr.mxu0 0.0
    %3420 = vmatpush2.msra.mxu0 0.0
    %3421 = vmatprep.subr.mxu0 0.0
    %3422 = vmatpush2.msra.mxu0 0.0
    %3423 = vmatprep.subr.mxu0 0.0
    %3424 = vmatpush2.msra.mxu0 0.0
    %3425 = vmatprep.subr.mxu0 0.0
    %3426 = vmatpush2.msra.mxu0 0.0
    %3427 = vmatprep.subr.mxu0 0.0
    %3428 = vmatpush2.msra.mxu0 0.0
    %3429 = vmatprep.subr.mxu0 0.0
    %3430 = vmatpush2.msra.mxu0 0.0
    %3431 = vmatprep.subr.mxu0 0.0
    %3432 = vmatpush2.msra.mxu0 0.0
    %3433 = vmatprep.subr.mxu0 0.0
    %3434 = vmatpush2.msra.mxu0 0.0
    %3435 = vmatprep.subr.mxu0 0.0
    %3436 = vmatpush2.msra.mxu0 0.0
    %3437 = vmatprep.subr.mxu0 0.0
    %3438 = vmatpush2.msra.mxu0 0.0
    %3439 = vmatprep.mubr.f32.mxu0 0.0
    %3440 = vmatmul.mubr.f32.gmra.mxu0 %v3369
    %v3441 = vpop.f32.mrf.mxu0
    %v3442 = vadd.f32 0.0, %v3441
    %v3443 = vpop.f32.mrf.mxu0
    %3444 = vdwg.mxu0
    %3445 = vmatprep.subr.mxu0 0.0
    %3446 = vmatpush1.msra.mxu0 %v3364
    %3447 = vmatprep.subr.mxu0 0.0
    %3448 = vmatpush1.msra.mxu0 %v3363
    %3449 = vmatprep.subr.mxu0 0.0
    %3450 = vmatpush1.msra.mxu0 %v3362
    %3451 = vmatprep.subr.mxu0 0.0
    %3452 = vmatpush1.msra.mxu0 %v3361
    %3453 = vmatprep.subr.mxu0 0.0
    %3454 = vmatpush1.msra.mxu0 %v3360
    %3455 = vmatprep.subr.mxu0 0.0
    %3456 = vmatpush1.msra.mxu0 %v3359
    %3457 = vmatprep.subr.mxu0 0.0
    %3458 = vmatpush1.msra.mxu0 %v3358
    %3459 = vmatprep.subr.mxu0 0.0
    %3460 = vmatpush1.msra.mxu0 %v3357
    %3461 = vmatprep.subr.mxu0 0.0
    %3462 = vmatpush1.msra.mxu0 %v3356
    %3463 = vmatprep.subr.mxu0 0.0
    %3464 = vmatpush1.msra.mxu0 %v3355
    %3465 = vmatprep.subr.mxu0 0.0
    %3466 = vmatpush1.msra.mxu0 %v3354
    %3467 = vmatprep.subr.mxu0 0.0
    %3468 = vmatpush1.msra.mxu0 %v3353
    %3469 = vmatprep.subr.mxu0 0.0
    %3470 = vmatpush1.msra.mxu0 %v3352
    %3471 = vmatprep.subr.mxu0 0.0
    %3472 = vmatpush1.msra.mxu0 %v3351
    %3473 = vmatprep.subr.mxu0 0.0
    %3474 = vmatpush1.msra.mxu0 %v3350
    %3475 = vmatprep.subr.mxu0 0.0
    %3476 = vmatpush1.msra.mxu0 %v3349
    %3477 = vmatprep.subr.mxu0 0.0
    %3478 = vmatpush2.msra.mxu0 0.0
    %3479 = vmatprep.subr.mxu0 0.0
    %3480 = vmatpush2.msra.mxu0 0.0
    %3481 = vmatprep.subr.mxu0 0.0
    %3482 = vmatpush2.msra.mxu0 0.0
    %3483 = vmatprep.subr.mxu0 0.0
    %3484 = vmatpush2.msra.mxu0 0.0
    %3485 = vmatprep.subr.mxu0 0.0
    %3486 = vmatpush2.msra.mxu0 0.0
    %3487 = vmatprep.subr.mxu0 0.0
    %3488 = vmatpush2.msra.mxu0 0.0
    %3489 = vmatprep.subr.mxu0 0.0
    %3490 = vmatpush2.msra.mxu0 0.0
    %3491 = vmatprep.subr.mxu0 0.0
    %3492 = vmatpush2.msra.mxu0 0.0
    %3493 = vmatprep.subr.mxu0 0.0
    %3494 = vmatpush2.msra.mxu0 0.0
    %3495 = vmatprep.subr.mxu0 0.0
    %3496 = vmatpush2.msra.mxu0 0.0
    %3497 = vmatprep.subr.mxu0 0.0
    %3498 = vmatpush2.msra.mxu0 0.0
    %3499 = vmatprep.subr.mxu0 0.0
    %3500 = vmatpush2.msra.mxu0 0.0
    %3501 = vmatprep.subr.mxu0 0.0
    %3502 = vmatpush2.msra.mxu0 0.0
    %3503 = vmatprep.subr.mxu0 0.0
    %3504 = vmatpush2.msra.mxu0 0.0
    %3505 = vmatprep.subr.mxu0 0.0
    %3506 = vmatpush2.msra.mxu0 0.0
    %3507 = vmatprep.subr.mxu0 0.0
    %3508 = vmatpush2.msra.mxu0 0.0
    %3509 = vmatprep.mubr.f32.mxu0 0.0
    %3510 = vmatmul.mubr.f32.gmra.mxu0 %v3348
    %v3511 = vpop.f32.mrf.mxu0
    %v3512 = vadd.f32 %v3442, %v3511
    %v3513 = vpop.f32.mrf.mxu0
    %3514 = vdwg.mxu0
    %v3515 = vld [vmem:[%s16] sm:$0x1]
    %v3517 = vlaneseq
    %v3518 = vshrl.u32 %v3517, 7
    %v3519 = vsub.s32 0, %v3518
    %v3520 = vrot.slane %v3515, %v3519
    %v3522 = vadd.f32 %v3512, %v3520
    %v3523 = vmax.f32 %v3522, 0.0
    %v3524 = vld [vmem:[%s17] sm:$0xff]
    %v3525 = vld [vmem:[%s17 + $0x8] sm:$0xff]
    %v3526 = vld [vmem:[%s17 + $0x10] sm:$0xff]
    %v3527 = vld [vmem:[%s17 + $0x18] sm:$0xff]
    %v3528 = vld [vmem:[%s17 + $0x20] sm:$0xff]
    %v3529 = vld [vmem:[%s17 + $0x28] sm:$0xff]
    %v3530 = vld [vmem:[%s17 + $0x30] sm:$0xff]
    %v3531 = vld [vmem:[%s17 + $0x38] sm:$0xff]
    %v3532 = vld [vmem:[%s17 + $0x40] sm:$0xff]
    %v3533 = vld [vmem:[%s17 + $0x48] sm:$0xff]
    %v3534 = vld [vmem:[%s17 + $0x50] sm:$0xff]
    %v3535 = vld [vmem:[%s17 + $0x58] sm:$0xff]
    %v3536 = vld [vmem:[%s17 + $0x60] sm:$0xff]
    %v3537 = vld [vmem:[%s17 + $0x68] sm:$0xff]
    %v3538 = vld [vmem:[%s17 + $0x70] sm:$0xff]
    %v3539 = vld [vmem:[%s17 + $0x78] sm:$0xff]
    %v3540 = vld [vmem:[#allocation2] sm:$0x1]
    %v3542 = vlaneseq
    %v3543 = vshrl.u32 %v3542, 7
    %v3544 = vsub.s32 0, %v3543
    %v3545 = vrot.slane %v3540, %v3544
    %3547 = vmatprep.subr.mxu0 0.0
    %3548 = vmatpush1.msra.mxu0 %v3539
    %3549 = vmatprep.subr.mxu0 0.0
    %3550 = vmatpush1.msra.mxu0 %v3538
    %3551 = vmatprep.subr.mxu0 0.0
    %3552 = vmatpush1.msra.mxu0 %v3537
    %3553 = vmatprep.subr.mxu0 0.0
    %3554 = vmatpush1.msra.mxu0 %v3536
    %3555 = vmatprep.subr.mxu0 0.0
    %3556 = vmatpush1.msra.mxu0 %v3535
    %3557 = vmatprep.subr.mxu0 0.0
    %3558 = vmatpush1.msra.mxu0 %v3534
    %3559 = vmatprep.subr.mxu0 0.0
    %3560 = vmatpush1.msra.mxu0 %v3533
    %3561 = vmatprep.subr.mxu0 0.0
    %3562 = vmatpush1.msra.mxu0 %v3532
    %3563 = vmatprep.subr.mxu0 0.0
    %3564 = vmatpush1.msra.mxu0 %v3531
    %3565 = vmatprep.subr.mxu0 0.0
    %3566 = vmatpush1.msra.mxu0 %v3530
    %3567 = vmatprep.subr.mxu0 0.0
    %3568 = vmatpush1.msra.mxu0 %v3529
    %3569 = vmatprep.subr.mxu0 0.0
    %3570 = vmatpush1.msra.mxu0 %v3528
    %3571 = vmatprep.subr.mxu0 0.0
    %3572 = vmatpush1.msra.mxu0 %v3527
    %3573 = vmatprep.subr.mxu0 0.0
    %3574 = vmatpush1.msra.mxu0 %v3526
    %3575 = vmatprep.subr.mxu0 0.0
    %3576 = vmatpush1.msra.mxu0 %v3525
    %3577 = vmatprep.subr.mxu0 0.0
    %3578 = vmatpush1.msra.mxu0 %v3524
    %3579 = vmatprep.subr.mxu0 0.0
    %3580 = vmatpush2.msra.mxu0 0.0
    %3581 = vmatprep.subr.mxu0 0.0
    %3582 = vmatpush2.msra.mxu0 0.0
    %3583 = vmatprep.subr.mxu0 0.0
    %3584 = vmatpush2.msra.mxu0 0.0
    %3585 = vmatprep.subr.mxu0 0.0
    %3586 = vmatpush2.msra.mxu0 0.0
    %3587 = vmatprep.subr.mxu0 0.0
    %3588 = vmatpush2.msra.mxu0 0.0
    %3589 = vmatprep.subr.mxu0 0.0
    %3590 = vmatpush2.msra.mxu0 0.0
    %3591 = vmatprep.subr.mxu0 0.0
    %3592 = vmatpush2.msra.mxu0 0.0
    %3593 = vmatprep.subr.mxu0 0.0
    %3594 = vmatpush2.msra.mxu0 0.0
    %3595 = vmatprep.subr.mxu0 0.0
    %3596 = vmatpush2.msra.mxu0 0.0
    %3597 = vmatprep.subr.mxu0 0.0
    %3598 = vmatpush2.msra.mxu0 0.0
    %3599 = vmatprep.subr.mxu0 0.0
    %3600 = vmatpush2.msra.mxu0 0.0
    %3601 = vmatprep.subr.mxu0 0.0
    %3602 = vmatpush2.msra.mxu0 0.0
    %3603 = vmatprep.subr.mxu0 0.0
    %3604 = vmatpush2.msra.mxu0 0.0
    %3605 = vmatprep.subr.mxu0 0.0
    %3606 = vmatpush2.msra.mxu0 0.0
    %3607 = vmatprep.subr.mxu0 0.0
    %3608 = vmatpush2.msra.mxu0 0.0
    %3609 = vmatprep.subr.mxu0 0.0
    %3610 = vmatpush2.msra.mxu0 0.0
    %3611 = vmatprep.mubr.f32.mxu0 0.0
    %3612 = vmatmul.mubr.f32.gmra.mxu0 %v3523
    %v3613 = vpop.f32.mrf.mxu0
    %v3614 = vadd.f32 %v3545, %v3613
    %v3615 = vpop.f32.mrf.mxu0
    %3616 = vdwg.mxu0
    %v3617 = vxor.u32 %v3614, 2147483648
    %v3618 = vmul.f32 %v3617, 1.442695
    %v3619 = vpow.pop %v3618
    %v3620 = vadd.f32 %v3619, 1.0
    %v3621 = vrcp.pop %v3620
    %v3622 = vmul.f32 1.0, %v3621
    %3624 = vrot.lane.b32.xlu0 %v3622, 1
    %v3625 = vpop.permute.xlu0 %3624
    %vm3627 = vcmask 7168
    %v3628 = vsel %vm3627, %v3614, %v3625
    %vm3629 = vcmask 9216
    %3630 = vst.msk [vmem:[#allocation18] sm:$0x3] %vm3629, %v3628
    // Predicated region
    $region114: #{tpu_custom_call.1} parent=1 // pred_check
      _
    $region115: #{tpu_custom_call.1} parent=1 // pred_check_branch
      %3632 = sbr.rel (0) target = $region117
    $region116: #{tpu_custom_call.1} parent=1 // pred_region
      %s3634 = ssub.s32 32, 32
      %3635 = vsyncadd [#allocation5], %s3634
      %s3637 = sshll.u32 [#allocation18], 4
      %s3638 = int_to_ptr.vmem [resolvable:$true] %s3637
      %3640 = dma.vmem_to_hbm [thread:$0]  %s3638, 32, %s19, [#allocation5]
    $region117: #{tpu_custom_call.1} parent=1 // pred_fallthru
      _
    // Predicated region
    $region118: #{tpu_custom_call.1} parent=1 // pred_check
      _
    $region119: #{tpu_custom_call.1} parent=1 // pred_check_branch
      %3642 = sbr.rel (0) target = $region121
    $region120: #{tpu_custom_call.1} parent=1 // pred_region
      %3643 = dma.done [#allocation5], 32
    $region121: #{tpu_custom_call.1} parent=1 // pred_fallthru
      _
    %3644 = vsyncpa [#allocation4], 1
    %3645 = vsyncpa [#allocation7], 1
    %3646 = vsyncpa [#allocation10], 1
    %3647 = vsyncpa [#allocation13], 1
    %3648 = vsyncpa [#allocation16], 1
    %3649 = vsyncpa [#allocation5], 1

</llo_original>
